<compile_context>
chip_gen: v6e
topology: v6e:2x2x1
jax: 0.10.0
libtpu: 0.0.40
codegen_flags: <defaults>
</compile_context>

<pallas_src>
import math
import numpy as np
import jax
import jax.numpy as jnp
from jax.experimental import pallas as pl
from jax.experimental.pallas import tpu as pltpu

EPS = 1e-5
KH = KW = 5
F32 = jnp.float32
BF16 = jnp.bfloat16


# ----------------------- host-side (once-per-params) builders --------------------------------

def _toeplitz_k(wconv, win, cb):
    """K-stacked block-Toeplitz conv matrix, shape (KH*Kin, OW*OC), bf16.

    The layer input is a 2D VMEM image (rows = n*H + h, cols = w*cb + ic, ic < Cin).
    With LHS[g, i*Kin + k] = X[g+i, k] (rows-only im2col), the conv is ONE matmul:
      Y[g, ow*OC+oc] = LHS[g, :] @ T,  T[i*Kin + w*cb + ic, ow*OC + oc] = wconv[i, w-ow, ic, oc].
    """
    kh, kw, cin, oc = wconv.shape
    ow = win - kw + 1
    j = np.arange(kw)[:, None, None]
    w = np.arange(win)[None, :, None]
    o = np.arange(ow)[None, None, :]
    place = jnp.asarray((w == o + j).astype(np.float32))          # (kw, win, ow)
    t = jnp.einsum("jwo,ijcd->iwcod", place, wconv)               # (kh, win, cin, ow, oc)
    if cb > cin:                                                  # post-pool storage has cb-wide blocks
        t = jnp.pad(t, ((0, 0), (0, 0), (0, cb - cin), (0, 0), (0, 0)))
    t = t.reshape(kh, win * cb, ow * oc)
    kin = (win - 1) * cb + cin
    return t[:, :kin, :].reshape(kh * kin, ow * oc).astype(BF16)


def prepare_params(p):
    """Kernel-ready constants; build ONCE per parameter set (outside the jitted forward)."""
    def row128(v):
        return jnp.pad(v.astype(F32), ((0, 0), (0, 128 - v.shape[1])))

    return {
        "t1": _toeplitz_k(p["c1_w"], 32, 1),                              # (160, 168)
        "t2": _toeplitz_k(p["c2_w"], 14, 12),                             # (810, 160)
        "t3": _toeplitz_k(p["c3_w"], 5, 32),                              # (720, 120)
        "w1": p["fc1_w"].astype(BF16),                                    # (120, 84)
        "w2": jnp.pad(p["fc2_w"], ((0, 0), (0, 128 - 10))).astype(BF16),  # (84, 128) lane-padded
        # BN gammas/betas + FC biases packed into a single (8,128) f32 tile (one DMA).
        "consts": jnp.concatenate(
            [row128(p["bn1_g"]), row128(p["bn1_b"]),
             row128(p["bn2_g"]), row128(p["bn2_b"]),
             row128(p["bn3_g"]), row128(p["bn3_b"]),
             row128(p["fc1_b"]), row128(p["fc2_b"])], axis=0),
    }


# ----------------------- in-kernel constant generators (zero DMAs) ---------------------------

def _iota(shape, dim):
    return jax.lax.broadcasted_iota(jnp.int32, shape, dim)


def _fdiv(x, d):
    """Exact x // d for small non-negative int32 x via float reciprocal (no vector int div)."""
    return ((x.astype(F32) + 0.5) * (1.0 / float(d))).astype(jnp.int32)


def _chan_sel(ow, oc):
    """(ow*oc, oc) 0/1 f32: gathers per-channel BN sums from ow-strided columns."""
    i, j = _iota((ow * oc, oc), 0), _iota((ow * oc, oc), 1)
    return jnp.where(i - oc * _fdiv(i, oc) == j, 1.0, 0.0)


def _chan_selt(ow, oc):
    """(oc, ow*oc) 0/1 f32: broadcasts the per-channel affine back to all columns."""
    j, i = _iota((oc, ow * oc), 0), _iota((oc, ow * oc), 1)
    return jnp.where(i - oc * _fdiv(i, oc) == j, 1.0, 0.0)


def _valid_row_mask(rows, hp, oh):
    """(rows, 1) f32 mask of conv-output rows that do not straddle an image boundary."""
    g = _iota((rows, 1), 0)
    return jnp.where(g - hp * _fdiv(g, hp) < oh, 1.0, 0.0)


def _pool_row_sel(n, hp, ohh, cols):
    """(n*ohh, cols) 0/1 bf16 selecting conv-output rows img*hp + 2r (even rows, compacted)."""
    p, g = _iota((n * ohh, cols), 0), _iota((n * ohh, cols), 1)
    img = _fdiv(p, ohh)
    return jnp.where(g == hp * img + 2 * (p - ohh * img), 1.0, 0.0).astype(BF16)


def _fc_row_sel(n, hp, cols):
    """(n, cols) 0/1 bf16 extracting the single valid conv3 row per image (flatten)."""
    i, g = _iota((n, cols), 0), _iota((n, cols), 1)
    return jnp.where(g == hp * i, 1.0, 0.0).astype(BF16)


# ---------------------------------------- model ----------------------------------------------

def batchnorm_net_forward(x_nchw, kp):
    n = x_nchw.shape[0]

    # Static geometry: conv1 28x28x1 (pad 2 -> 32x32) -> 28x28x6, pool -> 14x14x6;
    #                  conv2 -> 10x10x16, pool -> 5x5x16; conv3 -> 1x1x120.
    HP1, OH1, OC1, K1 = 32, 28, 6, 32
    HP2, OH2, OC2, K2 = 14, 10, 16, 162
    HP3, OH3, OC3, K3 = 5, 1, 120, 144
    R1, R2, R3 = n * HP1 - KH + 1, n * HP2 - KH + 1, n * HP3 - KH + 1
    CNT1, CNT2, CNT3 = float(n * OH1 * OH1), float(n * OH2 * OH2), float(n * OH3 * OH3)

    # Input: zero-pad to 32x32, pack as the layer-1 2D image (rows = n*32 + h, cols = w),
    # cast to bf16 once here (every conv LHS is bf16).
    xp = jnp.pad(x_nchw[:, 0].astype(F32), ((0, 0), (2, 2), (2, 2)))
    xp = xp.reshape(n * HP1, HP1).astype(BF16)

    def kernel(x_ref, t1_ref, t2_ref, t3_ref, w1_ref, w2_ref, c_ref, o_ref,
               lhs1_ref, lhs2_ref, lhs3_ref):

        def conv_bn_relu(xin_bf, lhs_ref, t_ref, rows_out, kin, mask, gamma, beta,
                         sel, selt, count):
            # Rows-only im2col: 5 row-shifted slices stored side by side in VMEM scratch,
            # then ONE K-stacked bf16 MXU matmul with f32 accumulation.
            for i in range(KH):
                lhs_ref[:, i * kin:(i + 1) * kin] = xin_bf[i:i + rows_out, :]
            y = jnp.dot(lhs_ref[...], t_ref[...], preferred_element_type=F32)
            # One-pass training-mode BatchNorm over valid rows (conv bias folded away: it is
            # exactly cancelled by the mean subtraction).
            ym = y * mask
            s1 = jnp.sum(ym, axis=0, keepdims=True)
            s2 = jnp.sum(ym * y, axis=0, keepdims=True)
            if sel is not None:                 # gather per-channel stats from ow-strided cols
                s1 = jnp.dot(s1, sel, preferred_element_type=F32)
                s2 = jnp.dot(s2, sel, preferred_element_type=F32)
            mean = s1 * (1.0 / count)
            var = jnp.maximum(s2 * (1.0 / count) - mean * mean, 0.0)   # one-pass var, clamped
            scale = gamma * jax.lax.rsqrt(var + EPS)
            shift = beta - mean * scale
            if selt is not None:                # broadcast per-channel affine back to columns
                scale = jnp.dot(scale, selt, preferred_element_type=F32)
                shift = jnp.dot(shift, selt, preferred_element_type=F32)
            return jnp.maximum(y * scale + shift, 0.0)                 # ReLU (f32)

        def maxpool2x2(z, rsel_bf, oc):
            rm = jnp.maximum(z[:-1, :], z[1:, :])                      # oh-pair max
            pr = jnp.dot(rsel_bf, rm.astype(BF16),                     # even rows, per-image compact
                         preferred_element_type=F32)
            w = pr.shape[1]
            return jnp.maximum(pr[:, :w - oc], pr[:, oc:]).astype(BF16)  # ow-pair max -> bf16 input

        c = c_ref[...]
        g1, be1 = c[0:1, 0:OC1], c[1:2, 0:OC1]
        g2, be2 = c[2:3, 0:OC2], c[3:4, 0:OC2]
        g3, be3 = c[4:5, 0:OC3], c[5:6, 0:OC3]
        fb1, fb2 = c[6:7, 0:84], c[7:8, :]      # fb2 kept 128 wide for the unmasked output store

        z1 = conv_bn_relu(x_ref[...], lhs1_ref, t1_ref, R1, K1, _valid_row_mask(R1, HP1, OH1),
                          g1, be1, _chan_sel(OH1, OC1), _chan_selt(OH1, OC1), CNT1)
        x2 = maxpool2x2(z1, _pool_row_sel(n, HP1, OH1 // 2, R1 - 1), OC1)

        z2 = conv_bn_relu(x2, lhs2_ref, t2_ref, R2, K2, _valid_row_mask(R2, HP2, OH2),
                          g2, be2, _chan_sel(OH2, OC2), _chan_selt(OH2, OC2), CNT2)
        x3 = maxpool2x2(z2, _pool_row_sel(n, HP2, OH2 // 2, R2 - 1), OC2)

        z3 = conv_bn_relu(x3, lhs3_ref, t3_ref, R3, K3, _valid_row_mask(R3, HP3, OH3),
                          g3, be3, None, None, CNT3)        # 1x1 spatial: columns are channels

        xf = jnp.dot(_fc_row_sel(n, HP3, R3), z3.astype(BF16),          # flatten -> (n, 120)
                     preferred_element_type=F32)
        h = jnp.maximum(jnp.dot(xf.astype(BF16), w1_ref[...],
                                preferred_element_type=F32) + fb1, 0.0)
        o_ref[...] = jnp.dot(h.astype(BF16), w2_ref[...],
                             preferred_element_type=F32) + fb2

    operands = (xp, kp["t1"], kp["t2"], kp["t3"], kp["w1"], kp["w2"], kp["consts"])
    out = pl.pallas_call(
        kernel,
        out_shape=jax.ShapeDtypeStruct((n, 128), F32),      # lane-padded; sliced to 10 below
        in_specs=[pl.BlockSpec(memory_space=pltpu.MemorySpace.VMEM) for _ in operands],
        out_specs=pl.BlockSpec(memory_space=pltpu.MemorySpace.VMEM),
        scratch_shapes=[pltpu.VMEM((R1, KH * K1), BF16),    # rows-only im2col staging buffers
                        pltpu.VMEM((R2, KH * K2), BF16),
                        pltpu.VMEM((R3, KH * K3), BF16)],
        compiler_params=pltpu.CompilerParams(vmem_limit_bytes=32 * 1024 * 1024),
    )(*operands)
    return out[:, :10]


def init_params(key):
    ks = jax.random.split(key, 10)

    def uni(k, shape, fan_in):
        bound = 1.0 / math.sqrt(fan_in)
        return jax.random.uniform(k, shape, jnp.float32, -bound, bound)

    p = {}
    # Conv weights in (KH, KW, Cin, OC) layout (what the Toeplitz builder consumes).
    p["c1_w"] = uni(ks[0], (5, 5, 1, 6), 25 * 1)
    p["c2_w"] = uni(ks[1], (5, 5, 6, 16), 25 * 6)
    p["c3_w"] = uni(ks[2], (5, 5, 16, 120), 25 * 16)
    # Conv biases exist in the PyTorch module (bias=True) but are exactly cancelled by the
    # BatchNorm mean subtraction that follows every conv, so they are never fed to the kernel.
    p["c1_b"] = uni(ks[3], (1, 6), 25 * 1)
    p["c2_b"] = uni(ks[4], (1, 16), 25 * 6)
    p["c3_b"] = uni(ks[5], (1, 120), 25 * 16)
    p["bn1_g"], p["bn1_b"] = jnp.ones((1, 6), jnp.float32), jnp.zeros((1, 6), jnp.float32)
    p["bn2_g"], p["bn2_b"] = jnp.ones((1, 16), jnp.float32), jnp.zeros((1, 16), jnp.float32)
    p["bn3_g"], p["bn3_b"] = jnp.ones((1, 120), jnp.float32), jnp.zeros((1, 120), jnp.float32)
    p["fc1_w"] = uni(ks[6], (120, 84), 120)
    p["fc1_b"] = uni(ks[7], (1, 84), 120)
    p["fc2_w"] = uni(ks[8], (84, 10), 84)
    p["fc2_b"] = uni(ks[9], (1, 10), 84)
    return p


# TODO(synk): BatchNorm2d running_mean/running_var buffers are not updated; the forward uses
# training-mode batch statistics exactly like the nn.Module's default .train() forward.

if __name__ == "__main__":
    key = jax.random.PRNGKey(0)
    k_x, k_p = jax.random.split(key)
    # Input implied by the module: 1-channel 28x28 (LeNet/MNIST); batch=2.
    x = jax.random.normal(k_x, (2, 1, 28, 28), dtype=jnp.float32)
    params = init_params(k_p)
    kp = prepare_params(params)          # kernel-ready constants, built once per parameter set

    out = jax.block_until_ready(jax.jit(batchnorm_net_forward)(x, kp))
    assert out.shape == (2, 10) and out.dtype == jnp.float32
    assert bool(jnp.all(jnp.isfinite(out)))
    print("KERNEL_OK")
</pallas_src>

<mosaic_0001>
module attributes {stable_mosaic.version = 11 : i64} {
  func.func @kernel(%arg0: memref<64x32xbf16, #tpu.memory_space<vmem>>, %arg1: memref<160x168xbf16, #tpu.memory_space<vmem>>, %arg2: memref<810x160xbf16, #tpu.memory_space<vmem>>, %arg3: memref<720x120xbf16, #tpu.memory_space<vmem>>, %arg4: memref<120x84xbf16, #tpu.memory_space<vmem>>, %arg5: memref<84x128xbf16, #tpu.memory_space<vmem>>, %arg6: memref<8x128xf32, #tpu.memory_space<vmem>>, %arg7: memref<2x128xf32, #tpu.memory_space<vmem>>, %arg8: memref<60x160xbf16, #tpu.memory_space<vmem>>, %arg9: memref<24x810xbf16, #tpu.memory_space<vmem>>, %arg10: memref<6x720xbf16, #tpu.memory_space<vmem>>) attributes {dimension_semantics = [], scalar_prefetch = 0 : i64, scratch_operands = 3 : i64, tpu.core_type = #tpu.core_type<tc>} {
    %c0 = arith.constant 0 : index
    %c0_0 = arith.constant 0 : index
    %0 = vector.load %arg6[%c0, %c0_0] : memref<8x128xf32, #tpu.memory_space<vmem>>, vector<8x128xf32>
    %1 = vector.extract_strided_slice %0 {offsets = [0, 0], sizes = [1, 6], strides = [1, 1]} : vector<8x128xf32> to vector<1x6xf32>
    %2 = vector.extract_strided_slice %0 {offsets = [1, 0], sizes = [1, 6], strides = [1, 1]} : vector<8x128xf32> to vector<1x6xf32>
    %3 = vector.extract_strided_slice %0 {offsets = [2, 0], sizes = [1, 16], strides = [1, 1]} : vector<8x128xf32> to vector<1x16xf32>
    %4 = vector.extract_strided_slice %0 {offsets = [3, 0], sizes = [1, 16], strides = [1, 1]} : vector<8x128xf32> to vector<1x16xf32>
    %5 = vector.extract_strided_slice %0 {offsets = [4, 0], sizes = [1, 120], strides = [1, 1]} : vector<8x128xf32> to vector<1x120xf32>
    %6 = vector.extract_strided_slice %0 {offsets = [5, 0], sizes = [1, 120], strides = [1, 1]} : vector<8x128xf32> to vector<1x120xf32>
    %7 = vector.extract_strided_slice %0 {offsets = [6, 0], sizes = [1, 84], strides = [1, 1]} : vector<8x128xf32> to vector<1x84xf32>
    %8 = vector.extract_strided_slice %0 {offsets = [7, 0], sizes = [1, 128], strides = [1, 1]} : vector<8x128xf32> to vector<1x128xf32>
    %c0_1 = arith.constant 0 : index
    %c0_2 = arith.constant 0 : index
    %9 = vector.load %arg0[%c0_1, %c0_2] : memref<64x32xbf16, #tpu.memory_space<vmem>>, vector<64x32xbf16>
    %10 = tpu.iota {dimensions = array<i32: 0>} : vector<60x1xi32>
    %11 = arith.sitofp %10 : vector<60x1xi32> to vector<60x1xf32>
    %cst = arith.constant 5.000000e-01 : f32
    %12 = vector.broadcast %cst : f32 to vector<60x1xf32>
    %13 = arith.addf %11, %12 : vector<60x1xf32>
    %cst_3 = arith.constant 3.125000e-02 : f32
    %14 = vector.broadcast %cst_3 : f32 to vector<60x1xf32>
    %15 = arith.mulf %13, %14 : vector<60x1xf32>
    %16 = arith.fptosi %15 : vector<60x1xf32> to vector<60x1xi32>
    %c32_i32 = arith.constant 32 : i32
    %17 = vector.broadcast %c32_i32 : i32 to vector<60x1xi32>
    %18 = arith.muli %17, %16 : vector<60x1xi32>
    %19 = arith.subi %10, %18 : vector<60x1xi32>
    %c28_i32 = arith.constant 28 : i32
    %20 = vector.broadcast %c28_i32 : i32 to vector<60x1xi32>
    %21 = arith.cmpi slt, %19, %20 : vector<60x1xi32>
    %cst_4 = arith.constant 1.000000e+00 : f32
    %cst_5 = arith.constant 0.000000e+00 : f32
    %22 = vector.broadcast %cst_4 : f32 to vector<60x1xf32>
    %23 = vector.broadcast %cst_5 : f32 to vector<60x1xf32>
    %24 = arith.select %21, %22, %23 : vector<60x1xi1>, vector<60x1xf32>
    %25 = tpu.iota {dimensions = array<i32: 0>} : vector<168x6xi32>
    %26 = tpu.iota {dimensions = array<i32: 1>} : vector<168x6xi32>
    %27 = arith.sitofp %25 : vector<168x6xi32> to vector<168x6xf32>
    %cst_6 = arith.constant 5.000000e-01 : f32
    %28 = vector.broadcast %cst_6 : f32 to vector<168x6xf32>
    %29 = arith.addf %27, %28 : vector<168x6xf32>
    %cst_7 = arith.constant 0.166666672 : f32
    %30 = vector.broadcast %cst_7 : f32 to vector<168x6xf32>
    %31 = arith.mulf %29, %30 : vector<168x6xf32>
    %32 = arith.fptosi %31 : vector<168x6xf32> to vector<168x6xi32>
    %c6_i32 = arith.constant 6 : i32
    %33 = vector.broadcast %c6_i32 : i32 to vector<168x6xi32>
    %34 = arith.muli %33, %32 : vector<168x6xi32>
    %35 = arith.subi %25, %34 : vector<168x6xi32>
    %36 = arith.cmpi eq, %35, %26 : vector<168x6xi32>
    %cst_8 = arith.constant 1.000000e+00 : f32
    %cst_9 = arith.constant 0.000000e+00 : f32
    %37 = vector.broadcast %cst_8 : f32 to vector<168x6xf32>
    %38 = vector.broadcast %cst_9 : f32 to vector<168x6xf32>
    %39 = arith.select %36, %37, %38 : vector<168x6xi1>, vector<168x6xf32>
    %40 = tpu.iota {dimensions = array<i32: 0>} : vector<6x168xi32>
    %41 = tpu.iota {dimensions = array<i32: 1>} : vector<6x168xi32>
    %42 = arith.sitofp %41 : vector<6x168xi32> to vector<6x168xf32>
    %cst_10 = arith.constant 5.000000e-01 : f32
    %43 = vector.broadcast %cst_10 : f32 to vector<6x168xf32>
    %44 = arith.addf %42, %43 : vector<6x168xf32>
    %cst_11 = arith.constant 0.166666672 : f32
    %45 = vector.broadcast %cst_11 : f32 to vector<6x168xf32>
    %46 = arith.mulf %44, %45 : vector<6x168xf32>
    %47 = arith.fptosi %46 : vector<6x168xf32> to vector<6x168xi32>
    %c6_i32_12 = arith.constant 6 : i32
    %48 = vector.broadcast %c6_i32_12 : i32 to vector<6x168xi32>
    %49 = arith.muli %48, %47 : vector<6x168xi32>
    %50 = arith.subi %41, %49 : vector<6x168xi32>
    %51 = arith.cmpi eq, %50, %40 : vector<6x168xi32>
    %cst_13 = arith.constant 1.000000e+00 : f32
    %cst_14 = arith.constant 0.000000e+00 : f32
    %52 = vector.broadcast %cst_13 : f32 to vector<6x168xf32>
    %53 = vector.broadcast %cst_14 : f32 to vector<6x168xf32>
    %54 = arith.select %51, %52, %53 : vector<6x168xi1>, vector<6x168xf32>
    %55 = vector.extract_strided_slice %9 {offsets = [0, 0], sizes = [60, 32], strides = [1, 1]} : vector<64x32xbf16> to vector<60x32xbf16>
    %c0_15 = arith.constant 0 : index
    %c0_16 = arith.constant 0 : index
    %56 = vector.load %arg8[%c0_15, %c0_16] : memref<60x160xbf16, #tpu.memory_space<vmem>>, vector<60x32xbf16>
    tpu.vector_store %arg8[%c0_15, %c0_16], %55 {strides = array<i32>} : memref<60x160xbf16, #tpu.memory_space<vmem>>, vector<60x32xbf16>,
    %57 = vector.extract_strided_slice %9 {offsets = [1, 0], sizes = [60, 32], strides = [1, 1]} : vector<64x32xbf16> to vector<60x32xbf16>
    %c0_17 = arith.constant 0 : index
    %c32 = arith.constant 32 : index
    %58 = vector.load %arg8[%c0_17, %c32] : memref<60x160xbf16, #tpu.memory_space<vmem>>, vector<60x32xbf16>
    tpu.vector_store %arg8[%c0_17, %c32], %57 {strides = array<i32>} : memref<60x160xbf16, #tpu.memory_space<vmem>>, vector<60x32xbf16>,
    %59 = vector.extract_strided_slice %9 {offsets = [2, 0], sizes = [60, 32], strides = [1, 1]} : vector<64x32xbf16> to vector<60x32xbf16>
    %c0_18 = arith.constant 0 : index
    %c64 = arith.constant 64 : index
    %60 = vector.load %arg8[%c0_18, %c64] : memref<60x160xbf16, #tpu.memory_space<vmem>>, vector<60x32xbf16>
    tpu.vector_store %arg8[%c0_18, %c64], %59 {strides = array<i32>} : memref<60x160xbf16, #tpu.memory_space<vmem>>, vector<60x32xbf16>,
    %61 = vector.extract_strided_slice %9 {offsets = [3, 0], sizes = [60, 32], strides = [1, 1]} : vector<64x32xbf16> to vector<60x32xbf16>
    %c0_19 = arith.constant 0 : index
    %c96 = arith.constant 96 : index
    %62 = vector.load %arg8[%c0_19, %c96] : memref<60x160xbf16, #tpu.memory_space<vmem>>, vector<60x32xbf16>
    tpu.vector_store %arg8[%c0_19, %c96], %61 {strides = array<i32>} : memref<60x160xbf16, #tpu.memory_space<vmem>>, vector<60x32xbf16>,
    %63 = vector.extract_strided_slice %9 {offsets = [4, 0], sizes = [60, 32], strides = [1, 1]} : vector<64x32xbf16> to vector<60x32xbf16>
    %c0_20 = arith.constant 0 : index
    %c128 = arith.constant 128 : index
    %64 = vector.load %arg8[%c0_20, %c128] : memref<60x160xbf16, #tpu.memory_space<vmem>>, vector<60x32xbf16>
    tpu.vector_store %arg8[%c0_20, %c128], %63 {strides = array<i32>} : memref<60x160xbf16, #tpu.memory_space<vmem>>, vector<60x32xbf16>,
    %c0_21 = arith.constant 0 : index
    %c0_22 = arith.constant 0 : index
    %65 = vector.load %arg8[%c0_21, %c0_22] : memref<60x160xbf16, #tpu.memory_space<vmem>>, vector<60x160xbf16>
    %c0_23 = arith.constant 0 : index
    %c0_24 = arith.constant 0 : index
    %66 = vector.load %arg1[%c0_23, %c0_24] : memref<160x168xbf16, #tpu.memory_space<vmem>>, vector<160x168xbf16>
    %cst_25 = arith.constant dense<0.000000e+00> : vector<60x168xf32>
    %67 = tpu.matmul %65, %66, %cst_25 {dimension_numbers = #tpu.dot_dimension_numbers<[1], [0], [0], [1], [0, 0, 1, 1], [], []>} : vector<60x160xbf16>, vector<160x168xbf16>, vector<60x168xf32> -> vector<60x168xf32>
    %68 = vector.broadcast %24 : vector<60x1xf32> to vector<60x168xf32>
    %69 = arith.mulf %67, %68 : vector<60x168xf32>
    %cst_26 = arith.constant dense<0.000000e+00> : vector<168xf32>
    %70 = vector.multi_reduction <add>, %69, %cst_26 [0] : vector<60x168xf32> to vector<168xf32>
    %71 = vector.shape_cast %70 : vector<168xf32> to vector<1x168xf32>
    %72 = arith.mulf %69, %67 : vector<60x168xf32>
    %cst_27 = arith.constant dense<0.000000e+00> : vector<168xf32>
    %73 = vector.multi_reduction <add>, %72, %cst_27 [0] : vector<60x168xf32> to vector<168xf32>
    %74 = vector.shape_cast %73 : vector<168xf32> to vector<1x168xf32>
    %cst_28 = arith.constant dense<0.000000e+00> : vector<1x6xf32>
    %75 = tpu.matmul %71, %39, %cst_28 {dimension_numbers = #tpu.dot_dimension_numbers<[1], [0], [0], [1], [0, 0, 1, 1], [], []>} : vector<1x168xf32>, vector<168x6xf32>, vector<1x6xf32> -> vector<1x6xf32>
    %cst_29 = arith.constant dense<0.000000e+00> : vector<1x6xf32>
    %76 = tpu.matmul %74, %39, %cst_29 {dimension_numbers = #tpu.dot_dimension_numbers<[1], [0], [0], [1], [0, 0, 1, 1], [], []>} : vector<1x168xf32>, vector<168x6xf32>, vector<1x6xf32> -> vector<1x6xf32>
    %cst_30 = arith.constant 6.37755089E-4 : f32
    %77 = vector.broadcast %cst_30 : f32 to vector<1x6xf32>
    %78 = arith.mulf %75, %77 : vector<1x6xf32>
    %cst_31 = arith.constant 6.37755089E-4 : f32
    %79 = vector.broadcast %cst_31 : f32 to vector<1x6xf32>
    %80 = arith.mulf %76, %79 : vector<1x6xf32>
    %81 = arith.mulf %78, %78 : vector<1x6xf32>
    %82 = arith.subf %80, %81 : vector<1x6xf32>
    %cst_32 = arith.constant 0.000000e+00 : f32
    %83 = vector.broadcast %cst_32 : f32 to vector<1x6xf32>
    %84 = arith.maximumf %82, %83 : vector<1x6xf32>
    %cst_33 = arith.constant 9.99999974E-6 : f32
    %85 = vector.broadcast %cst_33 : f32 to vector<1x6xf32>
    %86 = arith.addf %84, %85 : vector<1x6xf32>
    %87 = math.rsqrt %86 : vector<1x6xf32>
    %88 = arith.mulf %1, %87 : vector<1x6xf32>
    %89 = arith.mulf %78, %88 : vector<1x6xf32>
    %90 = arith.subf %2, %89 : vector<1x6xf32>
    %cst_34 = arith.constant dense<0.000000e+00> : vector<1x168xf32>
    %91 = tpu.matmul %88, %54, %cst_34 {dimension_numbers = #tpu.dot_dimension_numbers<[1], [0], [0], [1], [0, 0, 1, 1], [], []>} : vector<1x6xf32>, vector<6x168xf32>, vector<1x168xf32> -> vector<1x168xf32>
    %cst_35 = arith.constant dense<0.000000e+00> : vector<1x168xf32>
    %92 = tpu.matmul %90, %54, %cst_35 {dimension_numbers = #tpu.dot_dimension_numbers<[1], [0], [0], [1], [0, 0, 1, 1], [], []>} : vector<1x6xf32>, vector<6x168xf32>, vector<1x168xf32> -> vector<1x168xf32>
    %93 = vector.broadcast %91 : vector<1x168xf32> to vector<60x168xf32>
    %94 = arith.mulf %67, %93 : vector<60x168xf32>
    %95 = vector.broadcast %92 : vector<1x168xf32> to vector<60x168xf32>
    %96 = arith.addf %94, %95 : vector<60x168xf32>
    %cst_36 = arith.constant 0.000000e+00 : f32
    %97 = vector.broadcast %cst_36 : f32 to vector<60x168xf32>
    %98 = arith.maximumf %96, %97 : vector<60x168xf32>
    %99 = tpu.iota {dimensions = array<i32: 0>} : vector<28x59xi32>
    %100 = tpu.iota {dimensions = array<i32: 1>} : vector<28x59xi32>
    %101 = arith.sitofp %99 : vector<28x59xi32> to vector<28x59xf32>
    %cst_37 = arith.constant 5.000000e-01 : f32
    %102 = vector.broadcast %cst_37 : f32 to vector<28x59xf32>
    %103 = arith.addf %101, %102 : vector<28x59xf32>
    %cst_38 = arith.constant 0.0714285746 : f32
    %104 = vector.broadcast %cst_38 : f32 to vector<28x59xf32>
    %105 = arith.mulf %103, %104 : vector<28x59xf32>
    %106 = arith.fptosi %105 : vector<28x59xf32> to vector<28x59xi32>
    %c32_i32_39 = arith.constant 32 : i32
    %107 = vector.broadcast %c32_i32_39 : i32 to vector<28x59xi32>
    %108 = arith.muli %107, %106 : vector<28x59xi32>
    %c14_i32 = arith.constant 14 : i32
    %109 = vector.broadcast %c14_i32 : i32 to vector<28x59xi32>
    %110 = arith.muli %109, %106 : vector<28x59xi32>
    %111 = arith.subi %99, %110 : vector<28x59xi32>
    %c2_i32 = arith.constant 2 : i32
    %112 = vector.broadcast %c2_i32 : i32 to vector<28x59xi32>
    %113 = arith.muli %112, %111 : vector<28x59xi32>
    %114 = arith.addi %108, %113 : vector<28x59xi32>
    %115 = arith.cmpi eq, %100, %114 : vector<28x59xi32>
    %cst_40 = arith.constant 1.000000e+00 : f32
    %cst_41 = arith.constant 0.000000e+00 : f32
    %116 = vector.broadcast %cst_40 : f32 to vector<28x59xf32>
    %117 = vector.broadcast %cst_41 : f32 to vector<28x59xf32>
    %118 = arith.select %115, %116, %117 : vector<28x59xi1>, vector<28x59xf32>
    %119 = arith.truncf %118 : vector<28x59xf32> to vector<28x59xbf16>
    %120 = vector.extract_strided_slice %98 {offsets = [0, 0], sizes = [59, 168], strides = [1, 1]} : vector<60x168xf32> to vector<59x168xf32>
    %121 = vector.extract_strided_slice %98 {offsets = [1, 0], sizes = [59, 168], strides = [1, 1]} : vector<60x168xf32> to vector<59x168xf32>
    %122 = arith.maximumf %120, %121 : vector<59x168xf32>
    %123 = arith.truncf %122 : vector<59x168xf32> to vector<59x168xbf16>
    %cst_42 = arith.constant dense<0.000000e+00> : vector<28x168xf32>
    %124 = tpu.matmul %119, %123, %cst_42 {dimension_numbers = #tpu.dot_dimension_numbers<[1], [0], [0], [1], [0, 0, 1, 1], [], []>} : vector<28x59xbf16>, vector<59x168xbf16>, vector<28x168xf32> -> vector<28x168xf32>
    %125 = vector.extract_strided_slice %124 {offsets = [0, 0], sizes = [28, 162], strides = [1, 1]} : vector<28x168xf32> to vector<28x162xf32>
    %126 = vector.extract_strided_slice %124 {offsets = [0, 6], sizes = [28, 162], strides = [1, 1]} : vector<28x168xf32> to vector<28x162xf32>
    %127 = arith.maximumf %125, %126 : vector<28x162xf32>
    %128 = arith.truncf %127 : vector<28x162xf32> to vector<28x162xbf16>
    %129 = tpu.iota {dimensions = array<i32: 0>} : vector<24x1xi32>
    %130 = arith.sitofp %129 : vector<24x1xi32> to vector<24x1xf32>
    %cst_43 = arith.constant 5.000000e-01 : f32
    %131 = vector.broadcast %cst_43 : f32 to vector<24x1xf32>
    %132 = arith.addf %130, %131 : vector<24x1xf32>
    %cst_44 = arith.constant 0.0714285746 : f32
    %133 = vector.broadcast %cst_44 : f32 to vector<24x1xf32>
    %134 = arith.mulf %132, %133 : vector<24x1xf32>
    %135 = arith.fptosi %134 : vector<24x1xf32> to vector<24x1xi32>
    %c14_i32_45 = arith.constant 14 : i32
    %136 = vector.broadcast %c14_i32_45 : i32 to vector<24x1xi32>
    %137 = arith.muli %136, %135 : vector<24x1xi32>
    %138 = arith.subi %129, %137 : vector<24x1xi32>
    %c10_i32 = arith.constant 10 : i32
    %139 = vector.broadcast %c10_i32 : i32 to vector<24x1xi32>
    %140 = arith.cmpi slt, %138, %139 : vector<24x1xi32>
    %cst_46 = arith.constant 1.000000e+00 : f32
    %cst_47 = arith.constant 0.000000e+00 : f32
    %141 = vector.broadcast %cst_46 : f32 to vector<24x1xf32>
    %142 = vector.broadcast %cst_47 : f32 to vector<24x1xf32>
    %143 = arith.select %140, %141, %142 : vector<24x1xi1>, vector<24x1xf32>
    %144 = tpu.iota {dimensions = array<i32: 0>} : vector<160x16xi32>
    %145 = tpu.iota {dimensions = array<i32: 1>} : vector<160x16xi32>
    %146 = arith.sitofp %144 : vector<160x16xi32> to vector<160x16xf32>
    %cst_48 = arith.constant 5.000000e-01 : f32
    %147 = vector.broadcast %cst_48 : f32 to vector<160x16xf32>
    %148 = arith.addf %146, %147 : vector<160x16xf32>
    %cst_49 = arith.constant 6.250000e-02 : f32
    %149 = vector.broadcast %cst_49 : f32 to vector<160x16xf32>
    %150 = arith.mulf %148, %149 : vector<160x16xf32>
    %151 = arith.fptosi %150 : vector<160x16xf32> to vector<160x16xi32>
    %c16_i32 = arith.constant 16 : i32
    %152 = vector.broadcast %c16_i32 : i32 to vector<160x16xi32>
    %153 = arith.muli %152, %151 : vector<160x16xi32>
    %154 = arith.subi %144, %153 : vector<160x16xi32>
    %155 = arith.cmpi eq, %154, %145 : vector<160x16xi32>
    %cst_50 = arith.constant 1.000000e+00 : f32
    %cst_51 = arith.constant 0.000000e+00 : f32
    %156 = vector.broadcast %cst_50 : f32 to vector<160x16xf32>
    %157 = vector.broadcast %cst_51 : f32 to vector<160x16xf32>
    %158 = arith.select %155, %156, %157 : vector<160x16xi1>, vector<160x16xf32>
    %159 = tpu.iota {dimensions = array<i32: 0>} : vector<16x160xi32>
    %160 = tpu.iota {dimensions = array<i32: 1>} : vector<16x160xi32>
    %161 = arith.sitofp %160 : vector<16x160xi32> to vector<16x160xf32>
    %cst_52 = arith.constant 5.000000e-01 : f32
    %162 = vector.broadcast %cst_52 : f32 to vector<16x160xf32>
    %163 = arith.addf %161, %162 : vector<16x160xf32>
    %cst_53 = arith.constant 6.250000e-02 : f32
    %164 = vector.broadcast %cst_53 : f32 to vector<16x160xf32>
    %165 = arith.mulf %163, %164 : vector<16x160xf32>
    %166 = arith.fptosi %165 : vector<16x160xf32> to vector<16x160xi32>
    %c16_i32_54 = arith.constant 16 : i32
    %167 = vector.broadcast %c16_i32_54 : i32 to vector<16x160xi32>
    %168 = arith.muli %167, %166 : vector<16x160xi32>
    %169 = arith.subi %160, %168 : vector<16x160xi32>
    %170 = arith.cmpi eq, %169, %159 : vector<16x160xi32>
    %cst_55 = arith.constant 1.000000e+00 : f32
    %cst_56 = arith.constant 0.000000e+00 : f32
    %171 = vector.broadcast %cst_55 : f32 to vector<16x160xf32>
    %172 = vector.broadcast %cst_56 : f32 to vector<16x160xf32>
    %173 = arith.select %170, %171, %172 : vector<16x160xi1>, vector<16x160xf32>
    %174 = vector.extract_strided_slice %128 {offsets = [0, 0], sizes = [24, 162], strides = [1, 1]} : vector<28x162xbf16> to vector<24x162xbf16>
    %c0_57 = arith.constant 0 : index
    %c0_58 = arith.constant 0 : index
    %175 = vector.load %arg9[%c0_57, %c0_58] : memref<24x810xbf16, #tpu.memory_space<vmem>>, vector<24x162xbf16>
    tpu.vector_store %arg9[%c0_57, %c0_58], %174 {strides = array<i32>} : memref<24x810xbf16, #tpu.memory_space<vmem>>, vector<24x162xbf16>,
    %176 = vector.extract_strided_slice %128 {offsets = [1, 0], sizes = [24, 162], strides = [1, 1]} : vector<28x162xbf16> to vector<24x162xbf16>
    %c0_59 = arith.constant 0 : index
    %c162 = arith.constant 162 : index
    %177 = vector.load %arg9[%c0_59, %c162] : memref<24x810xbf16, #tpu.memory_space<vmem>>, vector<24x162xbf16>
    tpu.vector_store %arg9[%c0_59, %c162], %176 {strides = array<i32>} : memref<24x810xbf16, #tpu.memory_space<vmem>>, vector<24x162xbf16>,
    %178 = vector.extract_strided_slice %128 {offsets = [2, 0], sizes = [24, 162], strides = [1, 1]} : vector<28x162xbf16> to vector<24x162xbf16>
    %c0_60 = arith.constant 0 : index
    %c324 = arith.constant 324 : index
    %179 = vector.load %arg9[%c0_60, %c324] : memref<24x810xbf16, #tpu.memory_space<vmem>>, vector<24x162xbf16>
    tpu.vector_store %arg9[%c0_60, %c324], %178 {strides = array<i32>} : memref<24x810xbf16, #tpu.memory_space<vmem>>, vector<24x162xbf16>,
    %180 = vector.extract_strided_slice %128 {offsets = [3, 0], sizes = [24, 162], strides = [1, 1]} : vector<28x162xbf16> to vector<24x162xbf16>
    %c0_61 = arith.constant 0 : index
    %c486 = arith.constant 486 : index
    %181 = vector.load %arg9[%c0_61, %c486] : memref<24x810xbf16, #tpu.memory_space<vmem>>, vector<24x162xbf16>
    tpu.vector_store %arg9[%c0_61, %c486], %180 {strides = array<i32>} : memref<24x810xbf16, #tpu.memory_space<vmem>>, vector<24x162xbf16>,
    %182 = vector.extract_strided_slice %128 {offsets = [4, 0], sizes = [24, 162], strides = [1, 1]} : vector<28x162xbf16> to vector<24x162xbf16>
    %c0_62 = arith.constant 0 : index
    %c648 = arith.constant 648 : index
    %183 = vector.load %arg9[%c0_62, %c648] : memref<24x810xbf16, #tpu.memory_space<vmem>>, vector<24x162xbf16>
    tpu.vector_store %arg9[%c0_62, %c648], %182 {strides = array<i32>} : memref<24x810xbf16, #tpu.memory_space<vmem>>, vector<24x162xbf16>,
    %c0_63 = arith.constant 0 : index
    %c0_64 = arith.constant 0 : index
    %184 = vector.load %arg9[%c0_63, %c0_64] : memref<24x810xbf16, #tpu.memory_space<vmem>>, vector<24x810xbf16>
    %c0_65 = arith.constant 0 : index
    %c0_66 = arith.constant 0 : index
    %185 = vector.load %arg2[%c0_65, %c0_66] : memref<810x160xbf16, #tpu.memory_space<vmem>>, vector<810x160xbf16>
    %cst_67 = arith.constant dense<0.000000e+00> : vector<24x160xf32>
    %186 = tpu.matmul %184, %185, %cst_67 {dimension_numbers = #tpu.dot_dimension_numbers<[1], [0], [0], [1], [0, 0, 1, 1], [], []>} : vector<24x810xbf16>, vector<810x160xbf16>, vector<24x160xf32> -> vector<24x160xf32>
    %187 = vector.broadcast %143 : vector<24x1xf32> to vector<24x160xf32>
    %188 = arith.mulf %186, %187 : vector<24x160xf32>
    %cst_68 = arith.constant dense<0.000000e+00> : vector<160xf32>
    %189 = vector.multi_reduction <add>, %188, %cst_68 [0] : vector<24x160xf32> to vector<160xf32>
    %190 = vector.shape_cast %189 : vector<160xf32> to vector<1x160xf32>
    %191 = arith.mulf %188, %186 : vector<24x160xf32>
    %cst_69 = arith.constant dense<0.000000e+00> : vector<160xf32>
    %192 = vector.multi_reduction <add>, %191, %cst_69 [0] : vector<24x160xf32> to vector<160xf32>
    %193 = vector.shape_cast %192 : vector<160xf32> to vector<1x160xf32>
    %cst_70 = arith.constant dense<0.000000e+00> : vector<1x16xf32>
    %194 = tpu.matmul %190, %158, %cst_70 {dimension_numbers = #tpu.dot_dimension_numbers<[1], [0], [0], [1], [0, 0, 1, 1], [], []>} : vector<1x160xf32>, vector<160x16xf32>, vector<1x16xf32> -> vector<1x16xf32>
    %cst_71 = arith.constant dense<0.000000e+00> : vector<1x16xf32>
    %195 = tpu.matmul %193, %158, %cst_71 {dimension_numbers = #tpu.dot_dimension_numbers<[1], [0], [0], [1], [0, 0, 1, 1], [], []>} : vector<1x160xf32>, vector<160x16xf32>, vector<1x16xf32> -> vector<1x16xf32>
    %cst_72 = arith.constant 5.000000e-03 : f32
    %196 = vector.broadcast %cst_72 : f32 to vector<1x16xf32>
    %197 = arith.mulf %194, %196 : vector<1x16xf32>
    %cst_73 = arith.constant 5.000000e-03 : f32
    %198 = vector.broadcast %cst_73 : f32 to vector<1x16xf32>
    %199 = arith.mulf %195, %198 : vector<1x16xf32>
    %200 = arith.mulf %197, %197 : vector<1x16xf32>
    %201 = arith.subf %199, %200 : vector<1x16xf32>
    %cst_74 = arith.constant 0.000000e+00 : f32
    %202 = vector.broadcast %cst_74 : f32 to vector<1x16xf32>
    %203 = arith.maximumf %201, %202 : vector<1x16xf32>
    %cst_75 = arith.constant 9.99999974E-6 : f32
    %204 = vector.broadcast %cst_75 : f32 to vector<1x16xf32>
    %205 = arith.addf %203, %204 : vector<1x16xf32>
    %206 = math.rsqrt %205 : vector<1x16xf32>
    %207 = arith.mulf %3, %206 : vector<1x16xf32>
    %208 = arith.mulf %197, %207 : vector<1x16xf32>
    %209 = arith.subf %4, %208 : vector<1x16xf32>
    %cst_76 = arith.constant dense<0.000000e+00> : vector<1x160xf32>
    %210 = tpu.matmul %207, %173, %cst_76 {dimension_numbers = #tpu.dot_dimension_numbers<[1], [0], [0], [1], [0, 0, 1, 1], [], []>} : vector<1x16xf32>, vector<16x160xf32>, vector<1x160xf32> -> vector<1x160xf32>
    %cst_77 = arith.constant dense<0.000000e+00> : vector<1x160xf32>
    %211 = tpu.matmul %209, %173, %cst_77 {dimension_numbers = #tpu.dot_dimension_numbers<[1], [0], [0], [1], [0, 0, 1, 1], [], []>} : vector<1x16xf32>, vector<16x160xf32>, vector<1x160xf32> -> vector<1x160xf32>
    %212 = vector.broadcast %210 : vector<1x160xf32> to vector<24x160xf32>
    %213 = arith.mulf %186, %212 : vector<24x160xf32>
    %214 = vector.broadcast %211 : vector<1x160xf32> to vector<24x160xf32>
    %215 = arith.addf %213, %214 : vector<24x160xf32>
    %cst_78 = arith.constant 0.000000e+00 : f32
    %216 = vector.broadcast %cst_78 : f32 to vector<24x160xf32>
    %217 = arith.maximumf %215, %216 : vector<24x160xf32>
    %218 = tpu.iota {dimensions = array<i32: 0>} : vector<10x23xi32>
    %219 = tpu.iota {dimensions = array<i32: 1>} : vector<10x23xi32>
    %220 = arith.sitofp %218 : vector<10x23xi32> to vector<10x23xf32>
    %cst_79 = arith.constant 5.000000e-01 : f32
    %221 = vector.broadcast %cst_79 : f32 to vector<10x23xf32>
    %222 = arith.addf %220, %221 : vector<10x23xf32>
    %cst_80 = arith.constant 2.000000e-01 : f32
    %223 = vector.broadcast %cst_80 : f32 to vector<10x23xf32>
    %224 = arith.mulf %222, %223 : vector<10x23xf32>
    %225 = arith.fptosi %224 : vector<10x23xf32> to vector<10x23xi32>
    %c14_i32_81 = arith.constant 14 : i32
    %226 = vector.broadcast %c14_i32_81 : i32 to vector<10x23xi32>
    %227 = arith.muli %226, %225 : vector<10x23xi32>
    %c5_i32 = arith.constant 5 : i32
    %228 = vector.broadcast %c5_i32 : i32 to vector<10x23xi32>
    %229 = arith.muli %228, %225 : vector<10x23xi32>
    %230 = arith.subi %218, %229 : vector<10x23xi32>
    %c2_i32_82 = arith.constant 2 : i32
    %231 = vector.broadcast %c2_i32_82 : i32 to vector<10x23xi32>
    %232 = arith.muli %231, %230 : vector<10x23xi32>
    %233 = arith.addi %227, %232 : vector<10x23xi32>
    %234 = arith.cmpi eq, %219, %233 : vector<10x23xi32>
    %cst_83 = arith.constant 1.000000e+00 : f32
    %cst_84 = arith.constant 0.000000e+00 : f32
    %235 = vector.broadcast %cst_83 : f32 to vector<10x23xf32>
    %236 = vector.broadcast %cst_84 : f32 to vector<10x23xf32>
    %237 = arith.select %234, %235, %236 : vector<10x23xi1>, vector<10x23xf32>
    %238 = arith.truncf %237 : vector<10x23xf32> to vector<10x23xbf16>
    %239 = vector.extract_strided_slice %217 {offsets = [0, 0], sizes = [23, 160], strides = [1, 1]} : vector<24x160xf32> to vector<23x160xf32>
    %240 = vector.extract_strided_slice %217 {offsets = [1, 0], sizes = [23, 160], strides = [1, 1]} : vector<24x160xf32> to vector<23x160xf32>
    %241 = arith.maximumf %239, %240 : vector<23x160xf32>
    %242 = arith.truncf %241 : vector<23x160xf32> to vector<23x160xbf16>
    %cst_85 = arith.constant dense<0.000000e+00> : vector<10x160xf32>
    %243 = tpu.matmul %238, %242, %cst_85 {dimension_numbers = #tpu.dot_dimension_numbers<[1], [0], [0], [1], [0, 0, 1, 1], [], []>} : vector<10x23xbf16>, vector<23x160xbf16>, vector<10x160xf32> -> vector<10x160xf32>
    %244 = vector.extract_strided_slice %243 {offsets = [0, 0], sizes = [10, 144], strides = [1, 1]} : vector<10x160xf32> to vector<10x144xf32>
    %245 = vector.extract_strided_slice %243 {offsets = [0, 16], sizes = [10, 144], strides = [1, 1]} : vector<10x160xf32> to vector<10x144xf32>
    %246 = arith.maximumf %244, %245 : vector<10x144xf32>
    %247 = arith.truncf %246 : vector<10x144xf32> to vector<10x144xbf16>
    %248 = tpu.iota {dimensions = array<i32: 0>} : vector<6x1xi32>
    %249 = arith.sitofp %248 : vector<6x1xi32> to vector<6x1xf32>
    %cst_86 = arith.constant 5.000000e-01 : f32
    %250 = vector.broadcast %cst_86 : f32 to vector<6x1xf32>
    %251 = arith.addf %249, %250 : vector<6x1xf32>
    %cst_87 = arith.constant 2.000000e-01 : f32
    %252 = vector.broadcast %cst_87 : f32 to vector<6x1xf32>
    %253 = arith.mulf %251, %252 : vector<6x1xf32>
    %254 = arith.fptosi %253 : vector<6x1xf32> to vector<6x1xi32>
    %c5_i32_88 = arith.constant 5 : i32
    %255 = vector.broadcast %c5_i32_88 : i32 to vector<6x1xi32>
    %256 = arith.muli %255, %254 : vector<6x1xi32>
    %257 = arith.subi %248, %256 : vector<6x1xi32>
    %c1_i32 = arith.constant 1 : i32
    %258 = vector.broadcast %c1_i32 : i32 to vector<6x1xi32>
    %259 = arith.cmpi slt, %257, %258 : vector<6x1xi32>
    %cst_89 = arith.constant 1.000000e+00 : f32
    %cst_90 = arith.constant 0.000000e+00 : f32
    %260 = vector.broadcast %cst_89 : f32 to vector<6x1xf32>
    %261 = vector.broadcast %cst_90 : f32 to vector<6x1xf32>
    %262 = arith.select %259, %260, %261 : vector<6x1xi1>, vector<6x1xf32>
    %263 = vector.extract_strided_slice %247 {offsets = [0, 0], sizes = [6, 144], strides = [1, 1]} : vector<10x144xbf16> to vector<6x144xbf16>
    %c0_91 = arith.constant 0 : index
    %c0_92 = arith.constant 0 : index
    %264 = vector.load %arg10[%c0_91, %c0_92] : memref<6x720xbf16, #tpu.memory_space<vmem>>, vector<6x144xbf16>
    tpu.vector_store %arg10[%c0_91, %c0_92], %263 {strides = array<i32>} : memref<6x720xbf16, #tpu.memory_space<vmem>>, vector<6x144xbf16>,
    %265 = vector.extract_strided_slice %247 {offsets = [1, 0], sizes = [6, 144], strides = [1, 1]} : vector<10x144xbf16> to vector<6x144xbf16>
    %c0_93 = arith.constant 0 : index
    %c144 = arith.constant 144 : index
    %266 = vector.load %arg10[%c0_93, %c144] : memref<6x720xbf16, #tpu.memory_space<vmem>>, vector<6x144xbf16>
    tpu.vector_store %arg10[%c0_93, %c144], %265 {strides = array<i32>} : memref<6x720xbf16, #tpu.memory_space<vmem>>, vector<6x144xbf16>,
    %267 = vector.extract_strided_slice %247 {offsets = [2, 0], sizes = [6, 144], strides = [1, 1]} : vector<10x144xbf16> to vector<6x144xbf16>
    %c0_94 = arith.constant 0 : index
    %c288 = arith.constant 288 : index
    %268 = vector.load %arg10[%c0_94, %c288] : memref<6x720xbf16, #tpu.memory_space<vmem>>, vector<6x144xbf16>
    tpu.vector_store %arg10[%c0_94, %c288], %267 {strides = array<i32>} : memref<6x720xbf16, #tpu.memory_space<vmem>>, vector<6x144xbf16>,
    %269 = vector.extract_strided_slice %247 {offsets = [3, 0], sizes = [6, 144], strides = [1, 1]} : vector<10x144xbf16> to vector<6x144xbf16>
    %c0_95 = arith.constant 0 : index
    %c432 = arith.constant 432 : index
    %270 = vector.load %arg10[%c0_95, %c432] : memref<6x720xbf16, #tpu.memory_space<vmem>>, vector<6x144xbf16>
    tpu.vector_store %arg10[%c0_95, %c432], %269 {strides = array<i32>} : memref<6x720xbf16, #tpu.memory_space<vmem>>, vector<6x144xbf16>,
    %271 = vector.extract_strided_slice %247 {offsets = [4, 0], sizes = [6, 144], strides = [1, 1]} : vector<10x144xbf16> to vector<6x144xbf16>
    %c0_96 = arith.constant 0 : index
    %c576 = arith.constant 576 : index
    %272 = vector.load %arg10[%c0_96, %c576] : memref<6x720xbf16, #tpu.memory_space<vmem>>, vector<6x144xbf16>
    tpu.vector_store %arg10[%c0_96, %c576], %271 {strides = array<i32>} : memref<6x720xbf16, #tpu.memory_space<vmem>>, vector<6x144xbf16>,
    %c0_97 = arith.constant 0 : index
    %c0_98 = arith.constant 0 : index
    %273 = vector.load %arg10[%c0_97, %c0_98] : memref<6x720xbf16, #tpu.memory_space<vmem>>, vector<6x720xbf16>
    %c0_99 = arith.constant 0 : index
    %c0_100 = arith.constant 0 : index
    %274 = vector.load %arg3[%c0_99, %c0_100] : memref<720x120xbf16, #tpu.memory_space<vmem>>, vector<720x120xbf16>
    %cst_101 = arith.constant dense<0.000000e+00> : vector<6x120xf32>
    %275 = tpu.matmul %273, %274, %cst_101 {dimension_numbers = #tpu.dot_dimension_numbers<[1], [0], [0], [1], [0, 0, 1, 1], [], []>} : vector<6x720xbf16>, vector<720x120xbf16>, vector<6x120xf32> -> vector<6x120xf32>
    %276 = vector.broadcast %262 : vector<6x1xf32> to vector<6x120xf32>
    %277 = arith.mulf %275, %276 : vector<6x120xf32>
    %cst_102 = arith.constant dense<0.000000e+00> : vector<120xf32>
    %278 = vector.multi_reduction <add>, %277, %cst_102 [0] : vector<6x120xf32> to vector<120xf32>
    %279 = vector.shape_cast %278 : vector<120xf32> to vector<1x120xf32>
    %280 = arith.mulf %277, %275 : vector<6x120xf32>
    %cst_103 = arith.constant dense<0.000000e+00> : vector<120xf32>
    %281 = vector.multi_reduction <add>, %280, %cst_103 [0] : vector<6x120xf32> to vector<120xf32>
    %282 = vector.shape_cast %281 : vector<120xf32> to vector<1x120xf32>
    %cst_104 = arith.constant 5.000000e-01 : f32
    %283 = vector.broadcast %cst_104 : f32 to vector<1x120xf32>
    %284 = arith.mulf %279, %283 : vector<1x120xf32>
    %cst_105 = arith.constant 5.000000e-01 : f32
    %285 = vector.broadcast %cst_105 : f32 to vector<1x120xf32>
    %286 = arith.mulf %282, %285 : vector<1x120xf32>
    %287 = arith.mulf %284, %284 : vector<1x120xf32>
    %288 = arith.subf %286, %287 : vector<1x120xf32>
    %cst_106 = arith.constant 0.000000e+00 : f32
    %289 = vector.broadcast %cst_106 : f32 to vector<1x120xf32>
    %290 = arith.maximumf %288, %289 : vector<1x120xf32>
    %cst_107 = arith.constant 9.99999974E-6 : f32
    %291 = vector.broadcast %cst_107 : f32 to vector<1x120xf32>
    %292 = arith.addf %290, %291 : vector<1x120xf32>
    %293 = math.rsqrt %292 : vector<1x120xf32>
    %294 = arith.mulf %5, %293 : vector<1x120xf32>
    %295 = arith.mulf %284, %294 : vector<1x120xf32>
    %296 = arith.subf %6, %295 : vector<1x120xf32>
    %297 = vector.broadcast %294 : vector<1x120xf32> to vector<6x120xf32>
    %298 = arith.mulf %275, %297 : vector<6x120xf32>
    %299 = vector.broadcast %296 : vector<1x120xf32> to vector<6x120xf32>
    %300 = arith.addf %298, %299 : vector<6x120xf32>
    %cst_108 = arith.constant 0.000000e+00 : f32
    %301 = vector.broadcast %cst_108 : f32 to vector<6x120xf32>
    %302 = arith.maximumf %300, %301 : vector<6x120xf32>
    %303 = tpu.iota {dimensions = array<i32: 0>} : vector<2x6xi32>
    %304 = tpu.iota {dimensions = array<i32: 1>} : vector<2x6xi32>
    %c5_i32_109 = arith.constant 5 : i32
    %305 = vector.broadcast %c5_i32_109 : i32 to vector<2x6xi32>
    %306 = arith.muli %305, %303 : vector<2x6xi32>
    %307 = arith.cmpi eq, %304, %306 : vector<2x6xi32>
    %cst_110 = arith.constant 1.000000e+00 : f32
    %cst_111 = arith.constant 0.000000e+00 : f32
    %308 = vector.broadcast %cst_110 : f32 to vector<2x6xf32>
    %309 = vector.broadcast %cst_111 : f32 to vector<2x6xf32>
    %310 = arith.select %307, %308, %309 : vector<2x6xi1>, vector<2x6xf32>
    %311 = arith.truncf %310 : vector<2x6xf32> to vector<2x6xbf16>
    %312 = arith.truncf %302 : vector<6x120xf32> to vector<6x120xbf16>
    %cst_112 = arith.constant dense<0.000000e+00> : vector<2x120xf32>
    %313 = tpu.matmul %311, %312, %cst_112 {dimension_numbers = #tpu.dot_dimension_numbers<[1], [0], [0], [1], [0, 0, 1, 1], [], []>} : vector<2x6xbf16>, vector<6x120xbf16>, vector<2x120xf32> -> vector<2x120xf32>
    %314 = arith.truncf %313 : vector<2x120xf32> to vector<2x120xbf16>
    %c0_113 = arith.constant 0 : index
    %c0_114 = arith.constant 0 : index
    %315 = vector.load %arg4[%c0_113, %c0_114] : memref<120x84xbf16, #tpu.memory_space<vmem>>, vector<120x84xbf16>
    %cst_115 = arith.constant dense<0.000000e+00> : vector<2x84xf32>
    %316 = tpu.matmul %314, %315, %cst_115 {dimension_numbers = #tpu.dot_dimension_numbers<[1], [0], [0], [1], [0, 0, 1, 1], [], []>} : vector<2x120xbf16>, vector<120x84xbf16>, vector<2x84xf32> -> vector<2x84xf32>
    %317 = vector.broadcast %7 : vector<1x84xf32> to vector<2x84xf32>
    %318 = arith.addf %316, %317 : vector<2x84xf32>
    %cst_116 = arith.constant 0.000000e+00 : f32
    %319 = vector.broadcast %cst_116 : f32 to vector<2x84xf32>
    %320 = arith.maximumf %318, %319 : vector<2x84xf32>
    %321 = arith.truncf %320 : vector<2x84xf32> to vector<2x84xbf16>
    %c0_117 = arith.constant 0 : index
    %c0_118 = arith.constant 0 : index
    %322 = vector.load %arg5[%c0_117, %c0_118] : memref<84x128xbf16, #tpu.memory_space<vmem>>, vector<84x128xbf16>
    %cst_119 = arith.constant dense<0.000000e+00> : vector<2x128xf32>
    %323 = tpu.matmul %321, %322, %cst_119 {dimension_numbers = #tpu.dot_dimension_numbers<[1], [0], [0], [1], [0, 0, 1, 1], [], []>} : vector<2x84xbf16>, vector<84x128xbf16>, vector<2x128xf32> -> vector<2x128xf32>
    %324 = vector.broadcast %8 : vector<1x128xf32> to vector<2x128xf32>
    %325 = arith.addf %323, %324 : vector<2x128xf32>
    %c0_120 = arith.constant 0 : index
    %c0_121 = arith.constant 0 : index
    %326 = vector.load %arg7[%c0_120, %c0_121] : memref<2x128xf32, #tpu.memory_space<vmem>>, vector<2x128xf32>
    tpu.vector_store %arg7[%c0_120, %c0_121], %325 {strides = array<i32>} : memref<2x128xf32, #tpu.memory_space<vmem>>, vector<2x128xf32>,
    return
  }
}

</mosaic_0001>

<llo_original>
// kernel: batchnorm_net_forward.1
$region0: #{batchnorm_net_forward.1}
  #allocation0 [shape = 'u32[]', space=smem, size = 0x4, offset = 0x4, fixed_abs, tag = 'smem constant byte address 0x4 - core index']
  #allocation1 [shape = 'u32[144,128]{1,0:T(1,128)}', space=vmem, size = 0x12000, scoped, tag = 'internal scratch']
  #allocation2 [shape = 'bf16[60,160]{1,0:T(8,128)(2,1)}', space=vmem, size = 0x8000, scoped, tag = 'scratch operand']
  #allocation3 [shape = 'bf16[24,810]{1,0:T(8,128)(2,1)}', space=vmem, size = 0xa800, scoped, tag = 'scratch operand']
  #allocation4 [shape = 'bf16[6,720]{1,0:T(8,128)(2,1)}', space=vmem, size = 0x3000, scoped, tag = 'scratch operand']
  %s0 = inlined_call_operand.vmem [shape: bf16[64,32], index: 0, kind: input, shape index: {}]
  %s1 = inlined_call_operand.vmem [shape: bf16[160,168], index: 1, kind: input, shape index: {}]
  %s2 = inlined_call_operand.vmem [shape: bf16[810,160], index: 2, kind: input, shape index: {}]
  %s3 = inlined_call_operand.vmem [shape: bf16[720,120], index: 3, kind: input, shape index: {}]
  %s4 = inlined_call_operand.vmem [shape: bf16[120,84], index: 4, kind: input, shape index: {}]
  %s5 = inlined_call_operand.vmem [shape: bf16[84,128], index: 5, kind: input, shape index: {}]
  %s6 = inlined_call_operand.vmem [shape: f32[8,128], index: 6, kind: input, shape index: {}]
  %s7 = inlined_call_operand.hbm [shape: f32[2,128], index: 7, kind: output, shape index: {}]
  %s8 = sld [smem:[#allocation0]]
  $region38: #{batchnorm_net_forward.1} parent=0
    _
  %s10 = ssub.s32 1, %s8
  %s11 = scalar_select 0, %s10, %s8
  $region1: #{batchnorm_net_forward.1} parent=0
    #allocation5 [shape = 'u8[1024]{0}', space=vmem, size = 0x400, scoped, tag = 'output window, operand 0, single buffered']
    #allocation6 [shape = 's32[1]{0}', space=sflag, size = 0x4, scoped, tag = 'scoped memory for batchnorm_net_forward.1']
    %12 = vsyncpa [#allocation6], 0
    // Predicated region
    $region2: #{batchnorm_net_forward.1} parent=1 // pred_check
      _
    $region3: #{batchnorm_net_forward.1} parent=1 // pred_check_branch
      %14 = sbr.rel (0) target = $region5
    $region4: #{batchnorm_net_forward.1} parent=1 // pred_region
      _
    $region5: #{batchnorm_net_forward.1} parent=1 // pred_fallthru
      _
    // Predicated region
    $region6: #{batchnorm_net_forward.1} parent=1 // pred_check
      _
    $region7: #{batchnorm_net_forward.1} parent=1 // pred_check_branch
      %16 = sbr.rel (0) target = $region9
    $region8: #{batchnorm_net_forward.1} parent=1 // pred_region
      _
    $region9: #{batchnorm_net_forward.1} parent=1 // pred_fallthru
      _
    // Predicated region
    $region10: #{batchnorm_net_forward.1} parent=1 // pred_check
      _
    $region11: #{batchnorm_net_forward.1} parent=1 // pred_check_branch
      %18 = sbr.rel (0) target = $region13
    $region12: #{batchnorm_net_forward.1} parent=1 // pred_region
      _
    $region13: #{batchnorm_net_forward.1} parent=1 // pred_fallthru
      _
    // Predicated region
    $region14: #{batchnorm_net_forward.1} parent=1 // pred_check
      _
    $region15: #{batchnorm_net_forward.1} parent=1 // pred_check_branch
      %20 = sbr.rel (0) target = $region17
    $region16: #{batchnorm_net_forward.1} parent=1 // pred_region
      _
    $region17: #{batchnorm_net_forward.1} parent=1 // pred_fallthru
      _
    // Predicated region
    $region18: #{batchnorm_net_forward.1} parent=1 // pred_check
      _
    $region19: #{batchnorm_net_forward.1} parent=1 // pred_check_branch
      %22 = sbr.rel (0) target = $region21
    $region20: #{batchnorm_net_forward.1} parent=1 // pred_region
      _
    $region21: #{batchnorm_net_forward.1} parent=1 // pred_fallthru
      _
    // Predicated region
    $region22: #{batchnorm_net_forward.1} parent=1 // pred_check
      _
    $region23: #{batchnorm_net_forward.1} parent=1 // pred_check_branch
      %24 = sbr.rel (0) target = $region25
    $region24: #{batchnorm_net_forward.1} parent=1 // pred_region
      _
    $region25: #{batchnorm_net_forward.1} parent=1 // pred_fallthru
      _
    // Predicated region
    $region26: #{batchnorm_net_forward.1} parent=1 // pred_check
      _
    $region27: #{batchnorm_net_forward.1} parent=1 // pred_check_branch
      %26 = sbr.rel (0) target = $region29
    $region28: #{batchnorm_net_forward.1} parent=1 // pred_region
      _
    $region29: #{batchnorm_net_forward.1} parent=1 // pred_fallthru
      _
    %v28 = vld [vmem:[%s6] sm:$0xff]
    %v29 = vld [vmem:[%s0] sm:$0xf]
    %v30 = vld [vmem:[%s0 + $0x4] sm:$0xf]
    %v31 = vld [vmem:[%s0 + $0x8] sm:$0xf]
    %v32 = vld [vmem:[%s0 + $0xc] sm:$0xf]
    %v33 = vld [vmem:[%s0 + $0x10] sm:$0xf]
    %v34 = vld [vmem:[%s0 + $0x14] sm:$0xf]
    %v35 = vld [vmem:[%s0 + $0x18] sm:$0xf]
    %v36 = vld [vmem:[%s0 + $0x1c] sm:$0xf]
    %v37 = vlaneseq
    %v38 = vshrl.u32 %v37, 7
    %v39 = vadd.s32 %v38, 8
    %v40 = vadd.s32 %v38, 16
    %v41 = vadd.s32 %v38, 24
    %v42 = vadd.s32 %v38, 32
    %v43 = vadd.s32 %v38, 40
    %v44 = vadd.s32 %v38, 48
    %v45 = vadd.s32 %v38, 56
    %v46 = vcvt.s32.f32 %v38
    %v47 = vcvt.s32.f32 %v39
    %v48 = vcvt.s32.f32 %v40
    %v49 = vcvt.s32.f32 %v41
    %v50 = vcvt.s32.f32 %v42
    %v51 = vcvt.s32.f32 %v43
    %v52 = vcvt.s32.f32 %v44
    %v53 = vcvt.s32.f32 %v45
    %v54 = vadd.f32 %v46, 0.5
    %v55 = vadd.f32 %v47, 0.5
    %v56 = vadd.f32 %v48, 0.5
    %v57 = vadd.f32 %v49, 0.5
    %v58 = vadd.f32 %v50, 0.5
    %v59 = vadd.f32 %v51, 0.5
    %v60 = vadd.f32 %v52, 0.5
    %v61 = vadd.f32 %v53, 0.5
    %v62 = vmul.f32 %v54, 0.03125
    %v63 = vmul.f32 %v55, 0.03125
    %v64 = vmul.f32 %v56, 0.03125
    %v65 = vmul.f32 %v57, 0.03125
    %v66 = vmul.f32 %v58, 0.03125
    %v67 = vmul.f32 %v59, 0.03125
    %v68 = vmul.f32 %v60, 0.03125
    %v69 = vmul.f32 %v61, 0.03125
    %v70 = vcvt.f32.s32.to.zero.pseudo %v62
    %v71 = vcvt.f32.s32.to.zero.pseudo %v63
    %v72 = vcvt.f32.s32.to.zero.pseudo %v64
    %v73 = vcvt.f32.s32.to.zero.pseudo %v65
    %v74 = vcvt.f32.s32.to.zero.pseudo %v66
    %v75 = vcvt.f32.s32.to.zero.pseudo %v67
    %v76 = vcvt.f32.s32.to.zero.pseudo %v68
    %v77 = vcvt.f32.s32.to.zero.pseudo %v69
    %v78 = vmul.u32 %v70, 32
    %v79 = vmul.u32 %v71, 32
    %v80 = vmul.u32 %v72, 32
    %v81 = vmul.u32 %v73, 32
    %v82 = vmul.u32 %v74, 32
    %v83 = vmul.u32 %v75, 32
    %v84 = vmul.u32 %v76, 32
    %v85 = vmul.u32 %v77, 32
    %v86 = vsub.s32 %v38, %v78
    %v87 = vsub.s32 %v39, %v79
    %v88 = vsub.s32 %v40, %v80
    %v89 = vsub.s32 %v41, %v81
    %v90 = vsub.s32 %v42, %v82
    %v91 = vsub.s32 %v43, %v83
    %v92 = vsub.s32 %v44, %v84
    %v93 = vsub.s32 %v45, %v85
    %vm94 = vcmp.lt.s32.totalorder %v86, 28
    %vm95 = vcmp.lt.s32.totalorder %v87, 28
    %vm96 = vcmp.lt.s32.totalorder %v88, 28
    %vm97 = vcmp.lt.s32.totalorder %v89, 28
    %vm98 = vcmp.lt.s32.totalorder %v90, 28
    %vm99 = vcmp.lt.s32.totalorder %v91, 28
    %vm100 = vcmp.lt.s32.totalorder %v92, 28
    %vm101 = vcmp.lt.s32.totalorder %v93, 28
    %v102 = vsel %vm94, 1.0, 0.0
    %v103 = vsel %vm95, 1.0, 0.0
    %v104 = vsel %vm96, 1.0, 0.0
    %v105 = vsel %vm97, 1.0, 0.0
    %v106 = vsel %vm98, 1.0, 0.0
    %v107 = vsel %vm99, 1.0, 0.0
    %v108 = vsel %vm100, 1.0, 0.0
    %v109 = vsel %vm101, 1.0, 0.0
    %v110 = vadd.s32 %v38, 64
    %v111 = vadd.s32 %v38, 72
    %v112 = vadd.s32 %v38, 80
    %v113 = vadd.s32 %v38, 88
    %v114 = vadd.s32 %v38, 96
    %v115 = vadd.s32 %v38, 104
    %v116 = vadd.s32 %v38, 112
    %v117 = vadd.s32 %v38, 120
    %v118 = vadd.s32 %v38, 128
    %v119 = vadd.s32 %v38, 136
    %v120 = vadd.s32 %v38, 144
    %v121 = vadd.s32 %v38, 152
    %v122 = vadd.s32 %v38, 160
    %v123 = vlaneseq
    %v124 = vand.u32 %v123, 127
    %v125 = vcvt.s32.f32 %v110
    %v126 = vcvt.s32.f32 %v111
    %v127 = vcvt.s32.f32 %v112
    %v128 = vcvt.s32.f32 %v113
    %v129 = vcvt.s32.f32 %v114
    %v130 = vcvt.s32.f32 %v115
    %v131 = vcvt.s32.f32 %v116
    %v132 = vcvt.s32.f32 %v117
    %v133 = vcvt.s32.f32 %v118
    %v134 = vcvt.s32.f32 %v119
    %v135 = vcvt.s32.f32 %v120
    %v136 = vcvt.s32.f32 %v121
    %v137 = vcvt.s32.f32 %v122
    %v138 = vadd.f32 %v125, 0.5
    %v139 = vadd.f32 %v126, 0.5
    %v140 = vadd.f32 %v127, 0.5
    %v141 = vadd.f32 %v128, 0.5
    %v142 = vadd.f32 %v129, 0.5
    %v143 = vadd.f32 %v130, 0.5
    %v144 = vadd.f32 %v131, 0.5
    %v145 = vadd.f32 %v132, 0.5
    %v146 = vadd.f32 %v133, 0.5
    %v147 = vadd.f32 %v134, 0.5
    %v148 = vadd.f32 %v135, 0.5
    %v149 = vadd.f32 %v136, 0.5
    %v150 = vadd.f32 %v137, 0.5
    %v151 = vmul.f32 %v54, 0.16666667
    %v152 = vmul.f32 %v55, 0.16666667
    %v153 = vmul.f32 %v56, 0.16666667
    %v154 = vmul.f32 %v57, 0.16666667
    %v155 = vmul.f32 %v58, 0.16666667
    %v156 = vmul.f32 %v59, 0.16666667
    %v157 = vmul.f32 %v60, 0.16666667
    %v158 = vmul.f32 %v61, 0.16666667
    %v159 = vmul.f32 %v138, 0.16666667
    %v160 = vmul.f32 %v139, 0.16666667
    %v161 = vmul.f32 %v140, 0.16666667
    %v162 = vmul.f32 %v141, 0.16666667
    %v163 = vmul.f32 %v142, 0.16666667
    %v164 = vmul.f32 %v143, 0.16666667
    %v165 = vmul.f32 %v144, 0.16666667
    %v166 = vmul.f32 %v145, 0.16666667
    %v167 = vmul.f32 %v146, 0.16666667
    %v168 = vmul.f32 %v147, 0.16666667
    %v169 = vmul.f32 %v148, 0.16666667
    %v170 = vmul.f32 %v149, 0.16666667
    %v171 = vmul.f32 %v150, 0.16666667
    %v172 = vcvt.f32.s32.to.zero.pseudo %v151
    %v173 = vcvt.f32.s32.to.zero.pseudo %v152
    %v174 = vcvt.f32.s32.to.zero.pseudo %v153
    %v175 = vcvt.f32.s32.to.zero.pseudo %v154
    %v176 = vcvt.f32.s32.to.zero.pseudo %v155
    %v177 = vcvt.f32.s32.to.zero.pseudo %v156
    %v178 = vcvt.f32.s32.to.zero.pseudo %v157
    %v179 = vcvt.f32.s32.to.zero.pseudo %v158
    %v180 = vcvt.f32.s32.to.zero.pseudo %v159
    %v181 = vcvt.f32.s32.to.zero.pseudo %v160
    %v182 = vcvt.f32.s32.to.zero.pseudo %v161
    %v183 = vcvt.f32.s32.to.zero.pseudo %v162
    %v184 = vcvt.f32.s32.to.zero.pseudo %v163
    %v185 = vcvt.f32.s32.to.zero.pseudo %v164
    %v186 = vcvt.f32.s32.to.zero.pseudo %v165
    %v187 = vcvt.f32.s32.to.zero.pseudo %v166
    %v188 = vcvt.f32.s32.to.zero.pseudo %v167
    %v189 = vcvt.f32.s32.to.zero.pseudo %v168
    %v190 = vcvt.f32.s32.to.zero.pseudo %v169
    %v191 = vcvt.f32.s32.to.zero.pseudo %v170
    %v192 = vcvt.f32.s32.to.zero.pseudo %v171
    %v193 = vmul.u32 %v172, 6
    %v194 = vmul.u32 %v173, 6
    %v195 = vmul.u32 %v174, 6
    %v196 = vmul.u32 %v175, 6
    %v197 = vmul.u32 %v176, 6
    %v198 = vmul.u32 %v177, 6
    %v199 = vmul.u32 %v178, 6
    %v200 = vmul.u32 %v179, 6
    %v201 = vmul.u32 %v180, 6
    %v202 = vmul.u32 %v181, 6
    %v203 = vmul.u32 %v182, 6
    %v204 = vmul.u32 %v183, 6
    %v205 = vmul.u32 %v184, 6
    %v206 = vmul.u32 %v185, 6
    %v207 = vmul.u32 %v186, 6
    %v208 = vmul.u32 %v187, 6
    %v209 = vmul.u32 %v188, 6
    %v210 = vmul.u32 %v189, 6
    %v211 = vmul.u32 %v190, 6
    %v212 = vmul.u32 %v191, 6
    %v213 = vmul.u32 %v192, 6
    %v214 = vsub.s32 %v38, %v193
    %v215 = vsub.s32 %v39, %v194
    %v216 = vsub.s32 %v40, %v195
    %v217 = vsub.s32 %v41, %v196
    %v218 = vsub.s32 %v42, %v197
    %v219 = vsub.s32 %v43, %v198
    %v220 = vsub.s32 %v44, %v199
    %v221 = vsub.s32 %v45, %v200
    %v222 = vsub.s32 %v110, %v201
    %v223 = vsub.s32 %v111, %v202
    %v224 = vsub.s32 %v112, %v203
    %v225 = vsub.s32 %v113, %v204
    %v226 = vsub.s32 %v114, %v205
    %v227 = vsub.s32 %v115, %v206
    %v228 = vsub.s32 %v116, %v207
    %v229 = vsub.s32 %v117, %v208
    %v230 = vsub.s32 %v118, %v209
    %v231 = vsub.s32 %v119, %v210
    %v232 = vsub.s32 %v120, %v211
    %v233 = vsub.s32 %v121, %v212
    %v234 = vsub.s32 %v122, %v213
    %vm235 = vcmp.eq.s32.totalorder %v214, %v124
    %vm236 = vcmp.eq.s32.totalorder %v215, %v124
    %vm237 = vcmp.eq.s32.totalorder %v216, %v124
    %vm238 = vcmp.eq.s32.totalorder %v217, %v124
    %vm239 = vcmp.eq.s32.totalorder %v218, %v124
    %vm240 = vcmp.eq.s32.totalorder %v219, %v124
    %vm241 = vcmp.eq.s32.totalorder %v220, %v124
    %vm242 = vcmp.eq.s32.totalorder %v221, %v124
    %vm243 = vcmp.eq.s32.totalorder %v222, %v124
    %vm244 = vcmp.eq.s32.totalorder %v223, %v124
    %vm245 = vcmp.eq.s32.totalorder %v224, %v124
    %vm246 = vcmp.eq.s32.totalorder %v225, %v124
    %vm247 = vcmp.eq.s32.totalorder %v226, %v124
    %vm248 = vcmp.eq.s32.totalorder %v227, %v124
    %vm249 = vcmp.eq.s32.totalorder %v228, %v124
    %vm250 = vcmp.eq.s32.totalorder %v229, %v124
    %vm251 = vcmp.eq.s32.totalorder %v230, %v124
    %vm252 = vcmp.eq.s32.totalorder %v231, %v124
    %vm253 = vcmp.eq.s32.totalorder %v232, %v124
    %vm254 = vcmp.eq.s32.totalorder %v233, %v124
    %vm255 = vcmp.eq.s32.totalorder %v234, %v124
    %v256 = vsel %vm235, 1.0, 0.0
    %v257 = vsel %vm236, 1.0, 0.0
    %v258 = vsel %vm237, 1.0, 0.0
    %v259 = vsel %vm238, 1.0, 0.0
    %v260 = vsel %vm239, 1.0, 0.0
    %v261 = vsel %vm240, 1.0, 0.0
    %v262 = vsel %vm241, 1.0, 0.0
    %v263 = vsel %vm242, 1.0, 0.0
    %v264 = vsel %vm243, 1.0, 0.0
    %v265 = vsel %vm244, 1.0, 0.0
    %v266 = vsel %vm245, 1.0, 0.0
    %v267 = vsel %vm246, 1.0, 0.0
    %v268 = vsel %vm247, 1.0, 0.0
    %v269 = vsel %vm248, 1.0, 0.0
    %v270 = vsel %vm249, 1.0, 0.0
    %v271 = vsel %vm250, 1.0, 0.0
    %v272 = vsel %vm251, 1.0, 0.0
    %v273 = vsel %vm252, 1.0, 0.0
    %v274 = vsel %vm253, 1.0, 0.0
    %v275 = vsel %vm254, 1.0, 0.0
    %v276 = vsel %vm255, 1.0, 0.0
    %v277 = vadd.s32 %v124, 128
    %v278 = vcvt.s32.f32 %v124
    %v279 = vcvt.s32.f32 %v277
    %v280 = vadd.f32 %v278, 0.5
    %v281 = vadd.f32 %v279, 0.5
    %v282 = vmul.f32 %v280, 0.16666667
    %v283 = vmul.f32 %v281, 0.16666667
    %v284 = vcvt.f32.s32.to.zero.pseudo %v282
    %v285 = vcvt.f32.s32.to.zero.pseudo %v283
    %v286 = vmul.u32 %v284, 6
    %v287 = vmul.u32 %v285, 6
    %v288 = vsub.s32 %v124, %v286
    %v289 = vsub.s32 %v277, %v287
    %vm290 = vcmp.eq.s32.totalorder %v288, %v38
    %vm291 = vcmp.eq.s32.totalorder %v289, %v38
    %v292 = vsel %vm290, 1.0, 0.0
    %v293 = vsel %vm291, 1.0, 0.0
    %vm294 = vcmask 257024
    %295 = vst.msk [vmem:[#allocation2] sm:$0xf] %vm294, %v29
    %296 = vst.msk [vmem:[#allocation2 + $0x8] sm:$0xf] %vm294, %v30
    %297 = vst.msk [vmem:[#allocation2 + $0x10] sm:$0xf] %vm294, %v31
    %298 = vst.msk [vmem:[#allocation2 + $0x18] sm:$0xf] %vm294, %v32
    %299 = vst.msk [vmem:[#allocation2 + $0x20] sm:$0xf] %vm294, %v33
    %300 = vst.msk [vmem:[#allocation2 + $0x28] sm:$0xf] %vm294, %v34
    %301 = vst.msk [vmem:[#allocation2 + $0x30] sm:$0xf] %vm294, %v35
    %vm302 = vcmask 254976
    %303 = vst.msk [vmem:[#allocation2 + $0x38] sm:$0x3] %vm302, %v36
    %vm304 = vsmask.f32 3328
    %vm305 = vsmask.f32 7440
    %vm306 = vmor %vm304, %vm305
    %v308 = vshrl.u32 %v29, 16
    %v310 = vrot.slane %v308, 4
    %v311 = vshll.u32 %v29, 16
    %v313 = vrot.slane %v311, 5
    %v314 = vor.u32 %v310, %v313
    %v315 = vrot.slane %v314, 4
    %v317 = vshll.u32 %v30, 16
    %v319 = vrot.slane %v317, 5
    %v320 = vsel %vm306, %v315, %v319
    %v321 = vshrl.u32 %v30, 16
    %v323 = vrot.slane %v321, 4
    %v324 = vor.u32 %v323, %v319
    %v325 = vrot.slane %v324, 4
    %v327 = vshll.u32 %v31, 16
    %v329 = vrot.slane %v327, 5
    %v330 = vsel %vm306, %v325, %v329
    %v331 = vshrl.u32 %v31, 16
    %v333 = vrot.slane %v331, 4
    %v334 = vor.u32 %v333, %v329
    %v335 = vrot.slane %v334, 4
    %v337 = vshll.u32 %v32, 16
    %v339 = vrot.slane %v337, 5
    %v340 = vsel %vm306, %v335, %v339
    %v341 = vshrl.u32 %v32, 16
    %v343 = vrot.slane %v341, 4
    %v344 = vor.u32 %v343, %v339
    %v345 = vrot.slane %v344, 4
    %v347 = vshll.u32 %v33, 16
    %v349 = vrot.slane %v347, 5
    %v350 = vsel %vm306, %v345, %v349
    %v351 = vshrl.u32 %v33, 16
    %v353 = vrot.slane %v351, 4
    %v354 = vor.u32 %v353, %v349
    %v355 = vrot.slane %v354, 4
    %v357 = vshll.u32 %v34, 16
    %v359 = vrot.slane %v357, 5
    %v360 = vsel %vm306, %v355, %v359
    %v361 = vshrl.u32 %v34, 16
    %v363 = vrot.slane %v361, 4
    %v364 = vor.u32 %v363, %v359
    %v365 = vrot.slane %v364, 4
    %v367 = vshll.u32 %v35, 16
    %v369 = vrot.slane %v367, 5
    %v370 = vsel %vm306, %v365, %v369
    %v371 = vshrl.u32 %v35, 16
    %v373 = vrot.slane %v371, 4
    %v374 = vor.u32 %v373, %v369
    %v375 = vrot.slane %v374, 4
    %v377 = vshll.u32 %v36, 16
    %v379 = vrot.slane %v377, 5
    %v380 = vsel %vm306, %v375, %v379
    %v381 = vshrl.u32 %v36, 16
    %v383 = vrot.slane %v381, 4
    %v384 = vor.u32 %v383, %v379
    %v385 = vrot.slane %v384, 4
    %386 = vrot.lane.b32.xlu0 %v320, 32
    %v387 = vpop.permute.xlu0 %386
    %388 = vrot.lane.b32.xlu0 %v330, 32
    %v389 = vpop.permute.xlu0 %388
    %390 = vrot.lane.b32.xlu0 %v340, 32
    %v391 = vpop.permute.xlu0 %390
    %392 = vrot.lane.b32.xlu0 %v350, 32
    %v393 = vpop.permute.xlu0 %392
    %394 = vrot.lane.b32.xlu0 %v360, 32
    %v395 = vpop.permute.xlu0 %394
    %396 = vrot.lane.b32.xlu0 %v370, 32
    %v397 = vpop.permute.xlu0 %396
    %398 = vrot.lane.b32.xlu0 %v380, 32
    %v399 = vpop.permute.xlu0 %398
    %400 = vrot.lane.b32.xlu0 %v385, 32
    %v401 = vpop.permute.xlu0 %400
    %vm410 = vcmask 519424
    %411 = vst.msk [vmem:[#allocation2] sm:$0xf] %vm410, %v387
    %412 = vst.msk [vmem:[#allocation2 + $0x8] sm:$0xf] %vm410, %v389
    %413 = vst.msk [vmem:[#allocation2 + $0x10] sm:$0xf] %vm410, %v391
    %414 = vst.msk [vmem:[#allocation2 + $0x18] sm:$0xf] %vm410, %v393
    %415 = vst.msk [vmem:[#allocation2 + $0x20] sm:$0xf] %vm410, %v395
    %416 = vst.msk [vmem:[#allocation2 + $0x28] sm:$0xf] %vm410, %v397
    %417 = vst.msk [vmem:[#allocation2 + $0x30] sm:$0xf] %vm410, %v399
    %vm418 = vcmask 517376
    %419 = vst.msk [vmem:[#allocation2 + $0x38] sm:$0x3] %vm418, %v401
    %vm428 = vcmask 1042432
    %vm429 = vcmask 1046532
    %vm430 = vmor %vm428, %vm429
    %v431 = vrot.slane %v29, 5
    %v432 = vrot.slane %v431, 4
    %v433 = vrot.slane %v30, 5
    %v434 = vsel %vm430, %v432, %v433
    %v435 = vrot.slane %v433, 4
    %v436 = vrot.slane %v31, 5
    %v437 = vsel %vm430, %v435, %v436
    %v438 = vrot.slane %v436, 4
    %v439 = vrot.slane %v32, 5
    %v440 = vsel %vm430, %v438, %v439
    %v441 = vrot.slane %v439, 4
    %v442 = vrot.slane %v33, 5
    %v443 = vsel %vm430, %v441, %v442
    %v444 = vrot.slane %v442, 4
    %v445 = vrot.slane %v34, 5
    %v446 = vsel %vm430, %v444, %v445
    %v447 = vrot.slane %v445, 4
    %v448 = vrot.slane %v35, 5
    %v449 = vsel %vm430, %v447, %v448
    %v450 = vrot.slane %v448, 4
    %v451 = vrot.slane %v36, 5
    %v452 = vsel %vm430, %v450, %v451
    %v453 = vrot.slane %v451, 4
    %454 = vrot.lane.b32.xlu0 %v434, 64
    %v455 = vpop.permute.xlu0 %454
    %456 = vrot.lane.b32.xlu0 %v437, 64
    %v457 = vpop.permute.xlu0 %456
    %458 = vrot.lane.b32.xlu0 %v440, 64
    %v459 = vpop.permute.xlu0 %458
    %460 = vrot.lane.b32.xlu0 %v443, 64
    %v461 = vpop.permute.xlu0 %460
    %462 = vrot.lane.b32.xlu0 %v446, 64
    %v463 = vpop.permute.xlu0 %462
    %464 = vrot.lane.b32.xlu0 %v449, 64
    %v465 = vpop.permute.xlu0 %464
    %466 = vrot.lane.b32.xlu0 %v452, 64
    %v467 = vpop.permute.xlu0 %466
    %468 = vrot.lane.b32.xlu0 %v453, 64
    %v469 = vpop.permute.xlu0 %468
    %vm478 = vcmask 781824
    %479 = vst.msk [vmem:[#allocation2] sm:$0xf] %vm478, %v455
    %480 = vst.msk [vmem:[#allocation2 + $0x8] sm:$0xf] %vm478, %v457
    %481 = vst.msk [vmem:[#allocation2 + $0x10] sm:$0xf] %vm478, %v459
    %482 = vst.msk [vmem:[#allocation2 + $0x18] sm:$0xf] %vm478, %v461
    %483 = vst.msk [vmem:[#allocation2 + $0x20] sm:$0xf] %vm478, %v463
    %484 = vst.msk [vmem:[#allocation2 + $0x28] sm:$0xf] %vm478, %v465
    %485 = vst.msk [vmem:[#allocation2 + $0x30] sm:$0xf] %vm478, %v467
    %vm486 = vcmask 779776
    %487 = vst.msk [vmem:[#allocation2 + $0x38] sm:$0x3] %vm486, %v469
    %vm488 = vsmask.f32 2304
    %vm489 = vsmask.f32 6416
    %vm490 = vmor %vm488, %vm489
    %v491 = vrot.slane %v308, 5
    %v492 = vrot.slane %v311, 6
    %v493 = vor.u32 %v491, %v492
    %v494 = vrot.slane %v493, 4
    %v495 = vrot.slane %v321, 5
    %v496 = vrot.slane %v317, 6
    %v497 = vor.u32 %v495, %v496
    %v498 = vsel %vm490, %v494, %v497
    %v499 = vrot.slane %v497, 4
    %v500 = vrot.slane %v331, 5
    %v501 = vrot.slane %v327, 6
    %v502 = vor.u32 %v500, %v501
    %v503 = vsel %vm490, %v499, %v502
    %v504 = vrot.slane %v502, 4
    %v505 = vrot.slane %v341, 5
    %v506 = vrot.slane %v337, 6
    %v507 = vor.u32 %v505, %v506
    %v508 = vsel %vm490, %v504, %v507
    %v509 = vrot.slane %v507, 4
    %v510 = vrot.slane %v351, 5
    %v511 = vrot.slane %v347, 6
    %v512 = vor.u32 %v510, %v511
    %v513 = vsel %vm490, %v509, %v512
    %v514 = vrot.slane %v512, 4
    %v515 = vrot.slane %v361, 5
    %v516 = vrot.slane %v357, 6
    %v517 = vor.u32 %v515, %v516
    %v518 = vsel %vm490, %v514, %v517
    %v519 = vrot.slane %v517, 4
    %v520 = vrot.slane %v371, 5
    %v521 = vrot.slane %v367, 6
    %v522 = vor.u32 %v520, %v521
    %v523 = vsel %vm490, %v519, %v522
    %v524 = vrot.slane %v522, 4
    %v525 = vrot.slane %v381, 5
    %v526 = vrot.slane %v377, 6
    %v527 = vor.u32 %v525, %v526
    %v528 = vsel %vm490, %v524, %v527
    %v529 = vrot.slane %v527, 4
    %530 = vrot.lane.b32.xlu0 %v498, 96
    %v531 = vpop.permute.xlu0 %530
    %532 = vrot.lane.b32.xlu0 %v503, 96
    %v533 = vpop.permute.xlu0 %532
    %534 = vrot.lane.b32.xlu0 %v508, 96
    %v535 = vpop.permute.xlu0 %534
    %536 = vrot.lane.b32.xlu0 %v513, 96
    %v537 = vpop.permute.xlu0 %536
    %538 = vrot.lane.b32.xlu0 %v518, 96
    %v539 = vpop.permute.xlu0 %538
    %540 = vrot.lane.b32.xlu0 %v523, 96
    %v541 = vpop.permute.xlu0 %540
    %542 = vrot.lane.b32.xlu0 %v528, 96
    %v543 = vpop.permute.xlu0 %542
    %544 = vrot.lane.b32.xlu0 %v529, 96
    %v545 = vpop.permute.xlu0 %544
    %vm554 = vcmask 1044224
    %555 = vst.msk [vmem:[#allocation2] sm:$0xf] %vm554, %v531
    %556 = vst.msk [vmem:[#allocation2 + $0x8] sm:$0xf] %vm554, %v533
    %557 = vst.msk [vmem:[#allocation2 + $0x10] sm:$0xf] %vm554, %v535
    %558 = vst.msk [vmem:[#allocation2 + $0x18] sm:$0xf] %vm554, %v537
    %559 = vst.msk [vmem:[#allocation2 + $0x20] sm:$0xf] %vm554, %v539
    %560 = vst.msk [vmem:[#allocation2 + $0x28] sm:$0xf] %vm554, %v541
    %561 = vst.msk [vmem:[#allocation2 + $0x30] sm:$0xf] %vm554, %v543
    %vm562 = vcmask 1042176
    %563 = vst.msk [vmem:[#allocation2 + $0x38] sm:$0x3] %vm562, %v545
    %vm564 = vcmask 1041408
    %vm565 = vcmask 1045508
    %vm566 = vmor %vm564, %vm565
    %v567 = vrot.slane %v29, 6
    %v568 = vrot.slane %v567, 4
    %v569 = vrot.slane %v30, 6
    %v570 = vsel %vm566, %v568, %v569
    %v571 = vrot.slane %v569, 4
    %v572 = vrot.slane %v31, 6
    %v573 = vsel %vm566, %v571, %v572
    %v574 = vrot.slane %v572, 4
    %v575 = vrot.slane %v32, 6
    %v576 = vsel %vm566, %v574, %v575
    %v577 = vrot.slane %v575, 4
    %v578 = vrot.slane %v33, 6
    %v579 = vsel %vm566, %v577, %v578
    %v580 = vrot.slane %v578, 4
    %v581 = vrot.slane %v34, 6
    %v582 = vsel %vm566, %v580, %v581
    %v583 = vrot.slane %v581, 4
    %v584 = vrot.slane %v35, 6
    %v585 = vsel %vm566, %v583, %v584
    %v586 = vrot.slane %v584, 4
    %v587 = vrot.slane %v36, 6
    %v588 = vsel %vm566, %v586, %v587
    %v589 = vrot.slane %v587, 4
    %598 = vst.msk [vmem:[#allocation2 + $0x4] sm:$0xf] %vm294, %v570
    %599 = vst.msk [vmem:[#allocation2 + $0xc] sm:$0xf] %vm294, %v573
    %600 = vst.msk [vmem:[#allocation2 + $0x14] sm:$0xf] %vm294, %v576
    %601 = vst.msk [vmem:[#allocation2 + $0x1c] sm:$0xf] %vm294, %v579
    %602 = vst.msk [vmem:[#allocation2 + $0x24] sm:$0xf] %vm294, %v582
    %603 = vst.msk [vmem:[#allocation2 + $0x2c] sm:$0xf] %vm294, %v585
    %604 = vst.msk [vmem:[#allocation2 + $0x34] sm:$0xf] %vm294, %v588
    %605 = vst.msk [vmem:[#allocation2 + $0x3c] sm:$0x3] %vm302, %v589
    %v606 = vld [vmem:[#allocation2] sm:$0xff]
    %v607 = vld [vmem:[#allocation2 + $0x8] sm:$0xff]
    %v608 = vld [vmem:[#allocation2 + $0x10] sm:$0xff]
    %v609 = vld [vmem:[#allocation2 + $0x18] sm:$0xff]
    %v610 = vld [vmem:[#allocation2 + $0x20] sm:$0xff]
    %v611 = vld [vmem:[#allocation2 + $0x28] sm:$0xff]
    %v612 = vld [vmem:[#allocation2 + $0x30] sm:$0xff]
    %v613 = vld [vmem:[#allocation2 + $0x38] sm:$0x33]
    %v614 = vld [vmem:[%s1] sm:$0xff]
    %v615 = vld [vmem:[%s1 + $0x8] sm:$0xff]
    %v616 = vld [vmem:[%s1 + $0x10] sm:$0xff]
    %v617 = vld [vmem:[%s1 + $0x18] sm:$0xff]
    %v618 = vld [vmem:[%s1 + $0x20] sm:$0xff]
    %v619 = vld [vmem:[%s1 + $0x28] sm:$0xff]
    %v620 = vld [vmem:[%s1 + $0x30] sm:$0xff]
    %v621 = vld [vmem:[%s1 + $0x38] sm:$0xff]
    %v622 = vld [vmem:[%s1 + $0x40] sm:$0xff]
    %v623 = vld [vmem:[%s1 + $0x48] sm:$0xff]
    %v624 = vld [vmem:[%s1 + $0x50] sm:$0xff]
    %v625 = vld [vmem:[%s1 + $0x58] sm:$0xff]
    %v626 = vld [vmem:[%s1 + $0x60] sm:$0xff]
    %v627 = vld [vmem:[%s1 + $0x68] sm:$0xff]
    %v628 = vld [vmem:[%s1 + $0x70] sm:$0xff]
    %v629 = vld [vmem:[%s1 + $0x78] sm:$0xff]
    %v630 = vld [vmem:[%s1 + $0x80] sm:$0xff]
    %v631 = vld [vmem:[%s1 + $0x88] sm:$0xff]
    %v632 = vld [vmem:[%s1 + $0x90] sm:$0xff]
    %v633 = vld [vmem:[%s1 + $0x98] sm:$0xff]
    %v642 = vunpack.c.l.b16 %v606
    %v643 = vunpack.c.h.b16 %v606
    %v644 = vunpack.c.l.b16 %v607
    %v645 = vunpack.c.h.b16 %v607
    %v646 = vunpack.c.l.b16 %v608
    %v647 = vunpack.c.h.b16 %v608
    %v648 = vunpack.c.l.b16 %v609
    %v649 = vunpack.c.h.b16 %v609
    %v650 = vunpack.c.l.b16 %v610
    %v651 = vunpack.c.h.b16 %v610
    %v652 = vunpack.c.l.b16 %v611
    %v653 = vunpack.c.h.b16 %v611
    %v654 = vunpack.c.l.b16 %v612
    %v655 = vunpack.c.h.b16 %v612
    %v656 = vunpack.c.l.b16 %v613
    %v657 = vunpack.c.h.b16 %v613
    %v658 = vpack.c.b16 %v644, %v642
    %v659 = vpack.c.b16 %v645, %v643
    %v660 = vpack.c.b16 %v648, %v646
    %v661 = vpack.c.b16 %v649, %v647
    %v662 = vpack.c.b16 %v652, %v650
    %v663 = vpack.c.b16 %v653, %v651
    %v664 = vpack.c.b16 %v656, %v654
    %v665 = vpack.c.b16 %v657, %v655
    %v690 = vunpack.c.l.b16 %v614
    %v691 = vunpack.c.h.b16 %v614
    %v692 = vunpack.c.l.b16 %v615
    %v693 = vunpack.c.h.b16 %v615
    %v694 = vunpack.c.l.b16 %v616
    %v695 = vunpack.c.h.b16 %v616
    %v696 = vunpack.c.l.b16 %v617
    %v697 = vunpack.c.h.b16 %v617
    %v698 = vunpack.c.l.b16 %v618
    %v699 = vunpack.c.h.b16 %v618
    %v700 = vunpack.c.l.b16 %v619
    %v701 = vunpack.c.h.b16 %v619
    %v702 = vunpack.c.l.b16 %v620
    %v703 = vunpack.c.h.b16 %v620
    %v704 = vunpack.c.l.b16 %v621
    %v705 = vunpack.c.h.b16 %v621
    %v706 = vunpack.c.l.b16 %v622
    %v707 = vunpack.c.h.b16 %v622
    %v708 = vunpack.c.l.b16 %v623
    %v709 = vunpack.c.h.b16 %v623
    %v710 = vunpack.c.l.b16 %v624
    %v711 = vunpack.c.h.b16 %v624
    %v712 = vunpack.c.l.b16 %v625
    %v713 = vunpack.c.h.b16 %v625
    %v714 = vunpack.c.l.b16 %v626
    %v715 = vunpack.c.h.b16 %v626
    %v716 = vunpack.c.l.b16 %v627
    %v717 = vunpack.c.h.b16 %v627
    %v718 = vunpack.c.l.b16 %v628
    %v719 = vunpack.c.h.b16 %v628
    %v720 = vunpack.c.l.b16 %v629
    %v721 = vunpack.c.h.b16 %v629
    %v722 = vunpack.c.l.b16 %v630
    %v723 = vunpack.c.h.b16 %v630
    %v724 = vunpack.c.l.b16 %v631
    %v725 = vunpack.c.h.b16 %v631
    %v726 = vunpack.c.l.b16 %v632
    %v727 = vunpack.c.h.b16 %v632
    %v728 = vunpack.c.l.b16 %v633
    %v729 = vunpack.c.h.b16 %v633
    %v730 = vpack.c.b16 %v692, %v690
    %v731 = vpack.c.b16 %v693, %v691
    %v732 = vpack.c.b16 %v696, %v694
    %v733 = vpack.c.b16 %v697, %v695
    %v734 = vpack.c.b16 %v700, %v698
    %v735 = vpack.c.b16 %v701, %v699
    %v736 = vpack.c.b16 %v704, %v702
    %v737 = vpack.c.b16 %v705, %v703
    %v738 = vpack.c.b16 %v708, %v706
    %v739 = vpack.c.b16 %v709, %v707
    %v740 = vpack.c.b16 %v712, %v710
    %v741 = vpack.c.b16 %v713, %v711
    %v742 = vpack.c.b16 %v716, %v714
    %v743 = vpack.c.b16 %v717, %v715
    %v744 = vpack.c.b16 %v720, %v718
    %v745 = vpack.c.b16 %v721, %v719
    %v746 = vpack.c.b16 %v724, %v722
    %v747 = vpack.c.b16 %v725, %v723
    %v748 = vpack.c.b16 %v728, %v726
    %v749 = vpack.c.b16 %v729, %v727
    %vm770 = vcmask 261120
    %v772 = vsel %vm770, %v659, 0
    %v775 = vsel %vm770, %v661, 0
    %v778 = vsel %vm770, %v663, 0
    %v781 = vsel %vm770, %v665, 0
    %783 = vmatprep.subr.bf16.mxu0 %v745
    %784 = vmatpush1.bf16.msra.mxu0 %v744
    %785 = vmatprep.subr.bf16.mxu0 %v743
    %786 = vmatpush1.bf16.msra.mxu0 %v742
    %787 = vmatprep.subr.bf16.mxu0 %v741
    %788 = vmatpush1.bf16.msra.mxu0 %v740
    %789 = vmatprep.subr.bf16.mxu0 %v739
    %790 = vmatpush1.bf16.msra.mxu0 %v738
    %791 = vmatprep.subr.bf16.mxu0 %v737
    %792 = vmatpush1.bf16.msra.mxu0 %v736
    %793 = vmatprep.subr.bf16.mxu0 %v735
    %794 = vmatpush1.bf16.msra.mxu0 %v734
    %795 = vmatprep.subr.bf16.mxu0 %v733
    %796 = vmatpush1.bf16.msra.mxu0 %v732
    %797 = vmatprep.subr.bf16.mxu0 %v731
    %798 = vmatpush1.bf16.msra.mxu0 %v730
    %799 = vmatprep.subr.bf16.mxu0 0
    %800 = vmatpush2.bf16.msra.mxu0 0
    %801 = vmatprep.subr.bf16.mxu0 0
    %802 = vmatpush2.bf16.msra.mxu0 0
    %803 = vmatprep.subr.bf16.mxu0 0
    %804 = vmatpush2.bf16.msra.mxu0 0
    %805 = vmatprep.subr.bf16.mxu0 0
    %806 = vmatpush2.bf16.msra.mxu0 0
    %807 = vmatprep.subr.bf16.mxu0 0
    %808 = vmatpush2.bf16.msra.mxu0 0
    %809 = vmatprep.subr.bf16.mxu0 0
    %810 = vmatpush2.bf16.msra.mxu0 0
    %811 = vmatprep.subr.bf16.mxu0 %v749
    %812 = vmatpush2.bf16.msra.mxu0 %v748
    %813 = vmatprep.subr.bf16.mxu0 %v747
    %814 = vmatpush2.bf16.msra.mxu0 %v746
    %815 = vmatprep.mubr.bf16.mxu0 %v772
    %816 = vmatmul.mubr.bf16.gmra.mxu0 %v658
    %v817 = vpop.f32.mrf.mxu0
    %v818 = vadd.f32 0.0, %v817
    %v819 = vpop.f32.mrf.mxu0
    %v820 = vadd.f32 0.0, %v819
    %v821 = vpop.f32.mrf.mxu0
    %v822 = vadd.f32 0.0, %v821
    %v823 = vpop.f32.mrf.mxu0
    %v824 = vadd.f32 0.0, %v823
    %825 = vmatprep.mubr.bf16.mxu0 %v775
    %826 = vmatmul.mubr.bf16.gmra.mxu0 %v660
    %v827 = vpop.f32.mrf.mxu0
    %v828 = vadd.f32 0.0, %v827
    %v829 = vpop.f32.mrf.mxu0
    %v830 = vadd.f32 0.0, %v829
    %v831 = vpop.f32.mrf.mxu0
    %v832 = vadd.f32 0.0, %v831
    %v833 = vpop.f32.mrf.mxu0
    %v834 = vadd.f32 0.0, %v833
    %835 = vmatprep.mubr.bf16.mxu0 %v778
    %836 = vmatmul.mubr.bf16.gmra.mxu0 %v662
    %v837 = vpop.f32.mrf.mxu0
    %v838 = vadd.f32 0.0, %v837
    %v839 = vpop.f32.mrf.mxu0
    %v840 = vadd.f32 0.0, %v839
    %v841 = vpop.f32.mrf.mxu0
    %v842 = vadd.f32 0.0, %v841
    %v843 = vpop.f32.mrf.mxu0
    %v844 = vadd.f32 0.0, %v843
    %845 = vmatprep.mubr.bf16.mxu0 %v781
    %846 = vmatmul.mubr.bf16.gmra.mxu0 %v664
    %v847 = vpop.f32.mrf.mxu0
    %v848 = vadd.f32 0.0, %v847
    %v849 = vpop.f32.mrf.mxu0
    %v850 = vadd.f32 0.0, %v849
    %v851 = vpop.f32.mrf.mxu0
    %v852 = vadd.f32 0.0, %v851
    %v853 = vpop.f32.mrf.mxu0
    %v854 = vadd.f32 0.0, %v853
    %855 = vdwg.mxu0
    %v856 = vmul.f32 %v818, %v102
    %v857 = vmul.f32 %v820, %v102
    %v858 = vmul.f32 %v822, %v103
    %v859 = vmul.f32 %v824, %v103
    %v860 = vmul.f32 %v828, %v104
    %v861 = vmul.f32 %v830, %v104
    %v862 = vmul.f32 %v832, %v105
    %v863 = vmul.f32 %v834, %v105
    %v864 = vmul.f32 %v838, %v106
    %v865 = vmul.f32 %v840, %v106
    %v866 = vmul.f32 %v842, %v107
    %v867 = vmul.f32 %v844, %v107
    %v868 = vmul.f32 %v848, %v108
    %v869 = vmul.f32 %v850, %v108
    %v870 = vmul.f32 %v852, %v109
    %v871 = vmul.f32 %v854, %v109
    %v872 = vadd.f32 %v856, %v858
    %v873 = vadd.f32 %v872, %v860
    %v874 = vadd.f32 %v873, %v862
    %v875 = vadd.f32 %v874, %v864
    %v876 = vadd.f32 %v875, %v866
    %v877 = vadd.f32 %v876, %v868
    %vm878 = vcmask 1043456
    %v879 = vsel %vm878, %v870, 0.0
    %v880 = vadd.f32 %v877, %v879
    %v881 = vrot.slane %v880, 4
    %v882 = vadd.f32 %v880, %v881
    %v883 = vrot.slane %v882, 2
    %v884 = vadd.f32 %v882, %v883
    %v885 = vrot.slane %v884, 1
    %v886 = vadd.f32 %v884, %v885
    %vm887 = vcmask 326656
    %v888 = vsel %vm887, %v857, 0.0
    %v889 = vsel %vm887, %v859, 0.0
    %v890 = vadd.f32 %v888, %v889
    %v891 = vsel %vm887, %v861, 0.0
    %v892 = vadd.f32 %v890, %v891
    %v893 = vsel %vm887, %v863, 0.0
    %v894 = vadd.f32 %v892, %v893
    %v895 = vsel %vm887, %v865, 0.0
    %v896 = vadd.f32 %v894, %v895
    %v897 = vsel %vm887, %v867, 0.0
    %v898 = vadd.f32 %v896, %v897
    %v899 = vsel %vm887, %v869, 0.0
    %v900 = vadd.f32 %v898, %v899
    %vm901 = vcmask 322560
    %v902 = vsel %vm901, %v871, 0.0
    %v903 = vadd.f32 %v900, %v902
    %v904 = vrot.slane %v903, 4
    %v905 = vadd.f32 %v903, %v904
    %v906 = vrot.slane %v905, 2
    %v907 = vadd.f32 %v905, %v906
    %v908 = vrot.slane %v907, 1
    %v909 = vadd.f32 %v907, %v908
    %v910 = vmul.f32 %v856, %v818
    %v911 = vmul.f32 %v857, %v820
    %v912 = vmul.f32 %v858, %v822
    %v913 = vmul.f32 %v859, %v824
    %v914 = vmul.f32 %v860, %v828
    %v915 = vmul.f32 %v861, %v830
    %v916 = vmul.f32 %v862, %v832
    %v917 = vmul.f32 %v863, %v834
    %v918 = vmul.f32 %v864, %v838
    %v919 = vmul.f32 %v865, %v840
    %v920 = vmul.f32 %v866, %v842
    %v921 = vmul.f32 %v867, %v844
    %v922 = vmul.f32 %v868, %v848
    %v923 = vmul.f32 %v869, %v850
    %v924 = vmul.f32 %v870, %v852
    %v925 = vmul.f32 %v871, %v854
    %v926 = vadd.f32 %v910, %v912
    %v927 = vadd.f32 %v926, %v914
    %v928 = vadd.f32 %v927, %v916
    %v929 = vadd.f32 %v928, %v918
    %v930 = vadd.f32 %v929, %v920
    %v931 = vadd.f32 %v930, %v922
    %v932 = vsel %vm878, %v924, 0.0
    %v933 = vadd.f32 %v931, %v932
    %v934 = vrot.slane %v933, 4
    %v935 = vadd.f32 %v933, %v934
    %v936 = vrot.slane %v935, 2
    %v937 = vadd.f32 %v935, %v936
    %v938 = vrot.slane %v937, 1
    %v939 = vadd.f32 %v937, %v938
    %v940 = vsel %vm887, %v911, 0.0
    %v941 = vsel %vm887, %v913, 0.0
    %v942 = vadd.f32 %v940, %v941
    %v943 = vsel %vm887, %v915, 0.0
    %v944 = vadd.f32 %v942, %v943
    %v945 = vsel %vm887, %v917, 0.0
    %v946 = vadd.f32 %v944, %v945
    %v947 = vsel %vm887, %v919, 0.0
    %v948 = vadd.f32 %v946, %v947
    %v949 = vsel %vm887, %v921, 0.0
    %v950 = vadd.f32 %v948, %v949
    %v951 = vsel %vm887, %v923, 0.0
    %v952 = vadd.f32 %v950, %v951
    %v953 = vsel %vm901, %v925, 0.0
    %v954 = vadd.f32 %v952, %v953
    %v955 = vrot.slane %v954, 4
    %v956 = vadd.f32 %v954, %v955
    %v957 = vrot.slane %v956, 2
    %v958 = vadd.f32 %v956, %v957
    %v959 = vrot.slane %v958, 1
    %v960 = vadd.f32 %v958, %v959
    %v962 = vsel %vm887, %v909, 0
    %964 = vmatprep.subr.mxu0 0.0
    %965 = vmatpush1.msra.mxu0 %v271
    %966 = vmatprep.subr.mxu0 0.0
    %967 = vmatpush1.msra.mxu0 %v270
    %968 = vmatprep.subr.mxu0 0.0
    %969 = vmatpush1.msra.mxu0 %v269
    %970 = vmatprep.subr.mxu0 0.0
    %971 = vmatpush1.msra.mxu0 %v268
    %972 = vmatprep.subr.mxu0 0.0
    %973 = vmatpush1.msra.mxu0 %v267
    %974 = vmatprep.subr.mxu0 0.0
    %975 = vmatpush1.msra.mxu0 %v266
    %976 = vmatprep.subr.mxu0 0.0
    %977 = vmatpush1.msra.mxu0 %v265
    %978 = vmatprep.subr.mxu0 0.0
    %979 = vmatpush1.msra.mxu0 %v264
    %980 = vmatprep.subr.mxu0 0.0
    %981 = vmatpush1.msra.mxu0 %v263
    %982 = vmatprep.subr.mxu0 0.0
    %983 = vmatpush1.msra.mxu0 %v262
    %984 = vmatprep.subr.mxu0 0.0
    %985 = vmatpush1.msra.mxu0 %v261
    %986 = vmatprep.subr.mxu0 0.0
    %987 = vmatpush1.msra.mxu0 %v260
    %988 = vmatprep.subr.mxu0 0.0
    %989 = vmatpush1.msra.mxu0 %v259
    %990 = vmatprep.subr.mxu0 0.0
    %991 = vmatpush1.msra.mxu0 %v258
    %992 = vmatprep.subr.mxu0 0.0
    %993 = vmatpush1.msra.mxu0 %v257
    %994 = vmatprep.subr.mxu0 0.0
    %995 = vmatpush1.msra.mxu0 %v256
    %996 = vmatprep.subr.mxu0 0.0
    %997 = vmatpush2.msra.mxu0 0.0
    %998 = vmatprep.subr.mxu0 0.0
    %999 = vmatpush2.msra.mxu0 0.0
    %1000 = vmatprep.subr.mxu0 0.0
    %1001 = vmatpush2.msra.mxu0 0.0
    %1002 = vmatprep.subr.mxu0 0.0
    %1003 = vmatpush2.msra.mxu0 0.0
    %1004 = vmatprep.subr.mxu0 0.0
    %1005 = vmatpush2.msra.mxu0 0.0
    %1006 = vmatprep.subr.mxu0 0.0
    %1007 = vmatpush2.msra.mxu0 0.0
    %1008 = vmatprep.subr.mxu0 0.0
    %1009 = vmatpush2.msra.mxu0 0.0
    %1010 = vmatprep.subr.mxu0 0.0
    %1011 = vmatpush2.msra.mxu0 0.0
    %1012 = vmatprep.subr.mxu0 0.0
    %1013 = vmatpush2.msra.mxu0 0.0
    %1014 = vmatprep.subr.mxu0 0.0
    %1015 = vmatpush2.msra.mxu0 0.0
    %1016 = vmatprep.subr.mxu0 0.0
    %1017 = vmatpush2.msra.mxu0 0.0
    %1018 = vmatprep.subr.mxu0 0.0
    %1019 = vmatpush2.msra.mxu0 %v276
    %1020 = vmatprep.subr.mxu0 0.0
    %1021 = vmatpush2.msra.mxu0 %v275
    %1022 = vmatprep.subr.mxu0 0.0
    %1023 = vmatpush2.msra.mxu0 %v274
    %1024 = vmatprep.subr.mxu0 0.0
    %1025 = vmatpush2.msra.mxu0 %v273
    %1026 = vmatprep.subr.mxu0 0.0
    %1027 = vmatpush2.msra.mxu0 %v272
    %1028 = vmatprep.mubr.f32.mxu0 %v962
    %1029 = vmatmul.mubr.f32.gmra.mxu0 %v886
    %v1030 = vpop.f32.mrf.mxu0
    %v1031 = vadd.f32 0.0, %v1030
    %v1032 = vpop.f32.mrf.mxu0
    %1033 = vdwg.mxu0
    %v1035 = vsel %vm887, %v960, 0
    %1037 = vmatprep.subr.mxu0 0.0
    %1038 = vmatpush1.msra.mxu0 %v271
    %1039 = vmatprep.subr.mxu0 0.0
    %1040 = vmatpush1.msra.mxu0 %v270
    %1041 = vmatprep.subr.mxu0 0.0
    %1042 = vmatpush1.msra.mxu0 %v269
    %1043 = vmatprep.subr.mxu0 0.0
    %1044 = vmatpush1.msra.mxu0 %v268
    %1045 = vmatprep.subr.mxu0 0.0
    %1046 = vmatpush1.msra.mxu0 %v267
    %1047 = vmatprep.subr.mxu0 0.0
    %1048 = vmatpush1.msra.mxu0 %v266
    %1049 = vmatprep.subr.mxu0 0.0
    %1050 = vmatpush1.msra.mxu0 %v265
    %1051 = vmatprep.subr.mxu0 0.0
    %1052 = vmatpush1.msra.mxu0 %v264
    %1053 = vmatprep.subr.mxu0 0.0
    %1054 = vmatpush1.msra.mxu0 %v263
    %1055 = vmatprep.subr.mxu0 0.0
    %1056 = vmatpush1.msra.mxu0 %v262
    %1057 = vmatprep.subr.mxu0 0.0
    %1058 = vmatpush1.msra.mxu0 %v261
    %1059 = vmatprep.subr.mxu0 0.0
    %1060 = vmatpush1.msra.mxu0 %v260
    %1061 = vmatprep.subr.mxu0 0.0
    %1062 = vmatpush1.msra.mxu0 %v259
    %1063 = vmatprep.subr.mxu0 0.0
    %1064 = vmatpush1.msra.mxu0 %v258
    %1065 = vmatprep.subr.mxu0 0.0
    %1066 = vmatpush1.msra.mxu0 %v257
    %1067 = vmatprep.subr.mxu0 0.0
    %1068 = vmatpush1.msra.mxu0 %v256
    %1069 = vmatprep.subr.mxu0 0.0
    %1070 = vmatpush2.msra.mxu0 0.0
    %1071 = vmatprep.subr.mxu0 0.0
    %1072 = vmatpush2.msra.mxu0 0.0
    %1073 = vmatprep.subr.mxu0 0.0
    %1074 = vmatpush2.msra.mxu0 0.0
    %1075 = vmatprep.subr.mxu0 0.0
    %1076 = vmatpush2.msra.mxu0 0.0
    %1077 = vmatprep.subr.mxu0 0.0
    %1078 = vmatpush2.msra.mxu0 0.0
    %1079 = vmatprep.subr.mxu0 0.0
    %1080 = vmatpush2.msra.mxu0 0.0
    %1081 = vmatprep.subr.mxu0 0.0
    %1082 = vmatpush2.msra.mxu0 0.0
    %1083 = vmatprep.subr.mxu0 0.0
    %1084 = vmatpush2.msra.mxu0 0.0
    %1085 = vmatprep.subr.mxu0 0.0
    %1086 = vmatpush2.msra.mxu0 0.0
    %1087 = vmatprep.subr.mxu0 0.0
    %1088 = vmatpush2.msra.mxu0 0.0
    %1089 = vmatprep.subr.mxu0 0.0
    %1090 = vmatpush2.msra.mxu0 0.0
    %1091 = vmatprep.subr.mxu0 0.0
    %1092 = vmatpush2.msra.mxu0 %v276
    %1093 = vmatprep.subr.mxu0 0.0
    %1094 = vmatpush2.msra.mxu0 %v275
    %1095 = vmatprep.subr.mxu0 0.0
    %1096 = vmatpush2.msra.mxu0 %v274
    %1097 = vmatprep.subr.mxu0 0.0
    %1098 = vmatpush2.msra.mxu0 %v273
    %1099 = vmatprep.subr.mxu0 0.0
    %1100 = vmatpush2.msra.mxu0 %v272
    %1101 = vmatprep.mubr.f32.mxu0 %v1035
    %1102 = vmatmul.mubr.f32.gmra.mxu0 %v939
    %v1103 = vpop.f32.mrf.mxu0
    %v1104 = vadd.f32 0.0, %v1103
    %v1105 = vpop.f32.mrf.mxu0
    %1106 = vdwg.mxu0
    %v1107 = vmul.f32 %v1031, 0.0006377551
    %v1108 = vmul.f32 %v1104, 0.0006377551
    %v1109 = vmul.f32 %v1107, %v1107
    %v1110 = vsub.f32 %v1108, %v1109
    %v1111 = vmax.f32 %v1110, 0.0
    %v1112 = vadd.f32 %v1111, 1e-05
    %v1113 = vrsqrt.pop %v1112
    %v1114 = vmul.f32 %v28, %v1113
    %v1115 = vmul.f32 %v1107, %v1114
    %v1117 = vrot.slane %v1115, 7
    %v1119 = vsub.f32 %v28, %v1117
    %vm1120 = vcmask 48128
    %v1122 = vsel %vm1120, %v1114, 0
    %vm1124 = vcmask 1045504
    %v1126 = vsel %vm1124, %v292, 0
    %v1129 = vsel %vm1124, %v293, 0
    %1131 = vmatprep.subr.mxu0 0.0
    %1132 = vmatpush1.msra.mxu0 0.0
    %1133 = vmatprep.subr.mxu0 0.0
    %1134 = vmatpush1.msra.mxu0 0.0
    %1135 = vmatprep.subr.mxu0 0.0
    %1136 = vmatpush1.msra.mxu0 0.0
    %1137 = vmatprep.subr.mxu0 0.0
    %1138 = vmatpush1.msra.mxu0 0.0
    %1139 = vmatprep.subr.mxu0 0.0
    %1140 = vmatpush1.msra.mxu0 0.0
    %1141 = vmatprep.subr.mxu0 0.0
    %1142 = vmatpush1.msra.mxu0 0.0
    %1143 = vmatprep.subr.mxu0 0.0
    %1144 = vmatpush1.msra.mxu0 0.0
    %1145 = vmatprep.subr.mxu0 0.0
    %1146 = vmatpush1.msra.mxu0 0.0
    %1147 = vmatprep.subr.mxu0 0.0
    %1148 = vmatpush1.msra.mxu0 0.0
    %1149 = vmatprep.subr.mxu0 0.0
    %1150 = vmatpush1.msra.mxu0 0.0
    %1151 = vmatprep.subr.mxu0 0.0
    %1152 = vmatpush1.msra.mxu0 0.0
    %1153 = vmatprep.subr.mxu0 0.0
    %1154 = vmatpush1.msra.mxu0 0.0
    %1155 = vmatprep.subr.mxu0 0.0
    %1156 = vmatpush1.msra.mxu0 0.0
    %1157 = vmatprep.subr.mxu0 0.0
    %1158 = vmatpush1.msra.mxu0 0.0
    %1159 = vmatprep.subr.mxu0 0.0
    %1160 = vmatpush1.msra.mxu0 0.0
    %1161 = vmatprep.subr.mxu0 %v1129
    %1162 = vmatpush1.msra.mxu0 %v1126
    %1163 = vmatprep.subr.mxu0 0.0
    %1164 = vmatpush2.msra.mxu0 0.0
    %1165 = vmatprep.subr.mxu0 0.0
    %1166 = vmatpush2.msra.mxu0 0.0
    %1167 = vmatprep.subr.mxu0 0.0
    %1168 = vmatpush2.msra.mxu0 0.0
    %1169 = vmatprep.subr.mxu0 0.0
    %1170 = vmatpush2.msra.mxu0 0.0
    %1171 = vmatprep.subr.mxu0 0.0
    %1172 = vmatpush2.msra.mxu0 0.0
    %1173 = vmatprep.subr.mxu0 0.0
    %1174 = vmatpush2.msra.mxu0 0.0
    %1175 = vmatprep.subr.mxu0 0.0
    %1176 = vmatpush2.msra.mxu0 0.0
    %1177 = vmatprep.subr.mxu0 0.0
    %1178 = vmatpush2.msra.mxu0 0.0
    %1179 = vmatprep.subr.mxu0 0.0
    %1180 = vmatpush2.msra.mxu0 0.0
    %1181 = vmatprep.subr.mxu0 0.0
    %1182 = vmatpush2.msra.mxu0 0.0
    %1183 = vmatprep.subr.mxu0 0.0
    %1184 = vmatpush2.msra.mxu0 0.0
    %1185 = vmatprep.subr.mxu0 0.0
    %1186 = vmatpush2.msra.mxu0 0.0
    %1187 = vmatprep.subr.mxu0 0.0
    %1188 = vmatpush2.msra.mxu0 0.0
    %1189 = vmatprep.subr.mxu0 0.0
    %1190 = vmatpush2.msra.mxu0 0.0
    %1191 = vmatprep.subr.mxu0 0.0
    %1192 = vmatpush2.msra.mxu0 0.0
    %1193 = vmatprep.subr.mxu0 0.0
    %1194 = vmatpush2.msra.mxu0 0.0
    %1195 = vmatprep.mubr.f32.mxu0 0.0
    %1196 = vmatmul.mubr.f32.gmra.mxu0 %v1122
    %v1197 = vpop.f32.mrf.mxu0
    %v1198 = vadd.f32 0.0, %v1197
    %v1199 = vpop.f32.mrf.mxu0
    %v1200 = vadd.f32 0.0, %v1199
    %1201 = vdwg.mxu0
    %v1203 = vrot.slane %v1119, 1
    %v1204 = vsel %vm1120, %v1203, 0
    %1206 = vmatprep.subr.mxu0 0.0
    %1207 = vmatpush1.msra.mxu0 0.0
    %1208 = vmatprep.subr.mxu0 0.0
    %1209 = vmatpush1.msra.mxu0 0.0
    %1210 = vmatprep.subr.mxu0 0.0
    %1211 = vmatpush1.msra.mxu0 0.0
    %1212 = vmatprep.subr.mxu0 0.0
    %1213 = vmatpush1.msra.mxu0 0.0
    %1214 = vmatprep.subr.mxu0 0.0
    %1215 = vmatpush1.msra.mxu0 0.0
    %1216 = vmatprep.subr.mxu0 0.0
    %1217 = vmatpush1.msra.mxu0 0.0
    %1218 = vmatprep.subr.mxu0 0.0
    %1219 = vmatpush1.msra.mxu0 0.0
    %1220 = vmatprep.subr.mxu0 0.0
    %1221 = vmatpush1.msra.mxu0 0.0
    %1222 = vmatprep.subr.mxu0 0.0
    %1223 = vmatpush1.msra.mxu0 0.0
    %1224 = vmatprep.subr.mxu0 0.0
    %1225 = vmatpush1.msra.mxu0 0.0
    %1226 = vmatprep.subr.mxu0 0.0
    %1227 = vmatpush1.msra.mxu0 0.0
    %1228 = vmatprep.subr.mxu0 0.0
    %1229 = vmatpush1.msra.mxu0 0.0
    %1230 = vmatprep.subr.mxu0 0.0
    %1231 = vmatpush1.msra.mxu0 0.0
    %1232 = vmatprep.subr.mxu0 0.0
    %1233 = vmatpush1.msra.mxu0 0.0
    %1234 = vmatprep.subr.mxu0 0.0
    %1235 = vmatpush1.msra.mxu0 0.0
    %1236 = vmatprep.subr.mxu0 %v1129
    %1237 = vmatpush1.msra.mxu0 %v1126
    %1238 = vmatprep.subr.mxu0 0.0
    %1239 = vmatpush2.msra.mxu0 0.0
    %1240 = vmatprep.subr.mxu0 0.0
    %1241 = vmatpush2.msra.mxu0 0.0
    %1242 = vmatprep.subr.mxu0 0.0
    %1243 = vmatpush2.msra.mxu0 0.0
    %1244 = vmatprep.subr.mxu0 0.0
    %1245 = vmatpush2.msra.mxu0 0.0
    %1246 = vmatprep.subr.mxu0 0.0
    %1247 = vmatpush2.msra.mxu0 0.0
    %1248 = vmatprep.subr.mxu0 0.0
    %1249 = vmatpush2.msra.mxu0 0.0
    %1250 = vmatprep.subr.mxu0 0.0
    %1251 = vmatpush2.msra.mxu0 0.0
    %1252 = vmatprep.subr.mxu0 0.0
    %1253 = vmatpush2.msra.mxu0 0.0
    %1254 = vmatprep.subr.mxu0 0.0
    %1255 = vmatpush2.msra.mxu0 0.0
    %1256 = vmatprep.subr.mxu0 0.0
    %1257 = vmatpush2.msra.mxu0 0.0
    %1258 = vmatprep.subr.mxu0 0.0
    %1259 = vmatpush2.msra.mxu0 0.0
    %1260 = vmatprep.subr.mxu0 0.0
    %1261 = vmatpush2.msra.mxu0 0.0
    %1262 = vmatprep.subr.mxu0 0.0
    %1263 = vmatpush2.msra.mxu0 0.0
    %1264 = vmatprep.subr.mxu0 0.0
    %1265 = vmatpush2.msra.mxu0 0.0
    %1266 = vmatprep.subr.mxu0 0.0
    %1267 = vmatpush2.msra.mxu0 0.0
    %1268 = vmatprep.subr.mxu0 0.0
    %1269 = vmatpush2.msra.mxu0 0.0
    %1270 = vmatprep.mubr.f32.mxu0 0.0
    %1271 = vmatmul.mubr.f32.gmra.mxu0 %v1204
    %v1272 = vpop.f32.mrf.mxu0
    %v1273 = vadd.f32 0.0, %v1272
    %v1274 = vpop.f32.mrf.mxu0
    %v1275 = vadd.f32 0.0, %v1274
    %1276 = vdwg.mxu0
    %v1277 = vlaneseq
    %v1278 = vshrl.u32 %v1277, 7
    %v1279 = vsub.s32 0, %v1278
    %v1280 = vrot.slane %v1198, %v1279
    %v1281 = vlaneseq
    %v1282 = vshrl.u32 %v1281, 7
    %v1283 = vsub.s32 0, %v1282
    %v1284 = vrot.slane %v1200, %v1283
    %v1285 = vmul.f32 %v818, %v1280
    %v1286 = vmul.f32 %v820, %v1284
    %v1287 = vmul.f32 %v822, %v1280
    %v1288 = vmul.f32 %v824, %v1284
    %v1289 = vmul.f32 %v828, %v1280
    %v1290 = vmul.f32 %v830, %v1284
    %v1291 = vmul.f32 %v832, %v1280
    %v1292 = vmul.f32 %v834, %v1284
    %v1293 = vmul.f32 %v838, %v1280
    %v1294 = vmul.f32 %v840, %v1284
    %v1295 = vmul.f32 %v842, %v1280
    %v1296 = vmul.f32 %v844, %v1284
    %v1297 = vmul.f32 %v848, %v1280
    %v1298 = vmul.f32 %v850, %v1284
    %v1299 = vmul.f32 %v852, %v1280
    %v1300 = vmul.f32 %v854, %v1284
    %v1301 = vlaneseq
    %v1302 = vshrl.u32 %v1301, 7
    %v1303 = vsub.s32 0, %v1302
    %v1304 = vrot.slane %v1273, %v1303
    %v1305 = vlaneseq
    %v1306 = vshrl.u32 %v1305, 7
    %v1307 = vsub.s32 0, %v1306
    %v1308 = vrot.slane %v1275, %v1307
    %v1309 = vadd.f32 %v1285, %v1304
    %v1310 = vadd.f32 %v1286, %v1308
    %v1311 = vadd.f32 %v1287, %v1304
    %v1312 = vadd.f32 %v1288, %v1308
    %v1313 = vadd.f32 %v1289, %v1304
    %v1314 = vadd.f32 %v1290, %v1308
    %v1315 = vadd.f32 %v1291, %v1304
    %v1316 = vadd.f32 %v1292, %v1308
    %v1317 = vadd.f32 %v1293, %v1304
    %v1318 = vadd.f32 %v1294, %v1308
    %v1319 = vadd.f32 %v1295, %v1304
    %v1320 = vadd.f32 %v1296, %v1308
    %v1321 = vadd.f32 %v1297, %v1304
    %v1322 = vadd.f32 %v1298, %v1308
    %v1323 = vadd.f32 %v1299, %v1304
    %v1324 = vadd.f32 %v1300, %v1308
    %v1325 = vmax.f32 %v1309, 0.0
    %v1326 = vmax.f32 %v1310, 0.0
    %v1327 = vmax.f32 %v1311, 0.0
    %v1328 = vmax.f32 %v1312, 0.0
    %v1329 = vmax.f32 %v1313, 0.0
    %v1330 = vmax.f32 %v1314, 0.0
    %v1331 = vmax.f32 %v1315, 0.0
    %v1332 = vmax.f32 %v1316, 0.0
    %v1333 = vmax.f32 %v1317, 0.0
    %v1334 = vmax.f32 %v1318, 0.0
    %v1335 = vmax.f32 %v1319, 0.0
    %v1336 = vmax.f32 %v1320, 0.0
    %v1337 = vmax.f32 %v1321, 0.0
    %v1338 = vmax.f32 %v1322, 0.0
    %v1339 = vmax.f32 %v1323, 0.0
    %v1340 = vmax.f32 %v1324, 0.0
    %v1341 = vmul.f32 %v54, 0.071428575
    %v1342 = vmul.f32 %v55, 0.071428575
    %v1343 = vmul.f32 %v56, 0.071428575
    %v1344 = vmul.f32 %v57, 0.071428575
    %v1345 = vcvt.f32.s32.to.zero.pseudo %v1341
    %v1346 = vcvt.f32.s32.to.zero.pseudo %v1342
    %v1347 = vcvt.f32.s32.to.zero.pseudo %v1343
    %v1348 = vcvt.f32.s32.to.zero.pseudo %v1344
    %v1349 = vmul.u32 %v1345, 32
    %v1350 = vmul.u32 %v1346, 32
    %v1351 = vmul.u32 %v1347, 32
    %v1352 = vmul.u32 %v1348, 32
    %v1353 = vmul.u32 %v1345, 14
    %v1354 = vmul.u32 %v1346, 14
    %v1355 = vmul.u32 %v1347, 14
    %v1356 = vmul.u32 %v1348, 14
    %v1357 = vsub.s32 %v38, %v1353
    %v1358 = vsub.s32 %v39, %v1354
    %v1359 = vsub.s32 %v40, %v1355
    %v1360 = vsub.s32 %v41, %v1356
    %v1361 = vmul.u32 %v1357, 2
    %v1362 = vmul.u32 %v1358, 2
    %v1363 = vmul.u32 %v1359, 2
    %v1364 = vmul.u32 %v1360, 2
    %v1365 = vadd.s32 %v1349, %v1361
    %v1366 = vadd.s32 %v1350, %v1362
    %v1367 = vadd.s32 %v1351, %v1363
    %v1368 = vadd.s32 %v1352, %v1364
    %vm1369 = vcmp.eq.s32.totalorder %v124, %v1365
    %vm1370 = vcmp.eq.s32.totalorder %v124, %v1366
    %vm1371 = vcmp.eq.s32.totalorder %v124, %v1367
    %vm1372 = vcmp.eq.s32.totalorder %v124, %v1368
    %v1373 = vsel %vm1369, 1.0, 0.0
    %v1374 = vsel %vm1370, 1.0, 0.0
    %v1375 = vsel %vm1371, 1.0, 0.0
    %v1376 = vsel %vm1372, 1.0, 0.0
    %v1377 = vpack.c.bf16 %v1374, %v1373
    %v1378 = vpack.c.bf16 %v1376, %v1375
    %vm1395 = vcmask 1046528
    %v1396 = vrot.slane %v1325, 1
    %v1397 = vrot.slane %v1327, 1
    %v1398 = vsel %vm1395, %v1396, %v1397
    %v1399 = vrot.slane %v1326, 1
    %v1400 = vrot.slane %v1328, 1
    %v1401 = vsel %vm1395, %v1399, %v1400
    %v1402 = vrot.slane %v1329, 1
    %v1403 = vsel %vm1395, %v1397, %v1402
    %v1404 = vrot.slane %v1330, 1
    %v1405 = vsel %vm1395, %v1400, %v1404
    %v1406 = vrot.slane %v1331, 1
    %v1407 = vsel %vm1395, %v1402, %v1406
    %v1408 = vrot.slane %v1332, 1
    %v1409 = vsel %vm1395, %v1404, %v1408
    %v1410 = vrot.slane %v1333, 1
    %v1411 = vsel %vm1395, %v1406, %v1410
    %v1412 = vrot.slane %v1334, 1
    %v1413 = vsel %vm1395, %v1408, %v1412
    %v1414 = vrot.slane %v1335, 1
    %v1415 = vsel %vm1395, %v1410, %v1414
    %v1416 = vrot.slane %v1336, 1
    %v1417 = vsel %vm1395, %v1412, %v1416
    %v1418 = vrot.slane %v1337, 1
    %v1419 = vsel %vm1395, %v1414, %v1418
    %v1420 = vrot.slane %v1338, 1
    %v1421 = vsel %vm1395, %v1416, %v1420
    %v1422 = vrot.slane %v1339, 1
    %v1423 = vsel %vm1395, %v1418, %v1422
    %v1424 = vrot.slane %v1340, 1
    %v1425 = vsel %vm1395, %v1420, %v1424
    %v1442 = vmax.f32 %v1325, %v1398
    %v1443 = vmax.f32 %v1326, %v1401
    %v1444 = vmax.f32 %v1327, %v1403
    %v1445 = vmax.f32 %v1328, %v1405
    %v1446 = vmax.f32 %v1329, %v1407
    %v1447 = vmax.f32 %v1330, %v1409
    %v1448 = vmax.f32 %v1331, %v1411
    %v1449 = vmax.f32 %v1332, %v1413
    %v1450 = vmax.f32 %v1333, %v1415
    %v1451 = vmax.f32 %v1334, %v1417
    %v1452 = vmax.f32 %v1335, %v1419
    %v1453 = vmax.f32 %v1336, %v1421
    %v1454 = vmax.f32 %v1337, %v1423
    %v1455 = vmax.f32 %v1338, %v1425
    %v1456 = vmax.f32 %v1339, %v1422
    %v1457 = vmax.f32 %v1340, %v1424
    %v1458 = vpack.c.bf16 %v1444, %v1442
    %v1459 = vpack.c.bf16 %v1445, %v1443
    %v1460 = vpack.c.bf16 %v1448, %v1446
    %v1461 = vpack.c.bf16 %v1449, %v1447
    %v1462 = vpack.c.bf16 %v1452, %v1450
    %v1463 = vpack.c.bf16 %v1453, %v1451
    %v1464 = vpack.c.bf16 %v1456, %v1454
    %v1465 = vpack.c.bf16 %v1457, %v1455
    %vm1466 = vcmask 482304
    %v1468 = vsel %vm1466, %v1377, 0
    %v1471 = vsel %vm1466, %v1378, 0
    %vm1473 = vcmask 1044480
    %v1474 = vsel %vm1473, 4294967295, 65535
    %v1475 = vsel %vm1124, %v1474, 0
    %v1477 = vand.u32 %v1464, %v1475
    %v1480 = vand.u32 %v1465, %v1475
    %1482 = vmatprep.subr.bf16.mxu0 0
    %1483 = vmatpush1.bf16.msra.mxu0 0
    %1484 = vmatprep.subr.bf16.mxu0 0
    %1485 = vmatpush1.bf16.msra.mxu0 0
    %1486 = vmatprep.subr.bf16.mxu0 0
    %1487 = vmatpush1.bf16.msra.mxu0 0
    %1488 = vmatprep.subr.bf16.mxu0 0
    %1489 = vmatpush1.bf16.msra.mxu0 0
    %1490 = vmatprep.subr.bf16.mxu0 %v1480
    %1491 = vmatpush1.bf16.msra.mxu0 %v1477
    %1492 = vmatprep.subr.bf16.mxu0 %v1463
    %1493 = vmatpush1.bf16.msra.mxu0 %v1462
    %1494 = vmatprep.subr.bf16.mxu0 %v1461
    %1495 = vmatpush1.bf16.msra.mxu0 %v1460
    %1496 = vmatprep.subr.bf16.mxu0 %v1459
    %1497 = vmatpush1.bf16.msra.mxu0 %v1458
    %1498 = vmatprep.subr.bf16.mxu0 0
    %1499 = vmatpush2.bf16.msra.mxu0 0
    %1500 = vmatprep.subr.bf16.mxu0 0
    %1501 = vmatpush2.bf16.msra.mxu0 0
    %1502 = vmatprep.subr.bf16.mxu0 0
    %1503 = vmatpush2.bf16.msra.mxu0 0
    %1504 = vmatprep.subr.bf16.mxu0 0
    %1505 = vmatpush2.bf16.msra.mxu0 0
    %1506 = vmatprep.subr.bf16.mxu0 0
    %1507 = vmatpush2.bf16.msra.mxu0 0
    %1508 = vmatprep.subr.bf16.mxu0 0
    %1509 = vmatpush2.bf16.msra.mxu0 0
    %1510 = vmatprep.subr.bf16.mxu0 0
    %1511 = vmatpush2.bf16.msra.mxu0 0
    %1512 = vmatprep.subr.bf16.mxu0 0
    %1513 = vmatpush2.bf16.msra.mxu0 0
    %1514 = vmatprep.mubr.bf16.mxu0 0
    %1515 = vmatmul.mubr.bf16.gmra.mxu0 %v1468
    %v1516 = vpop.f32.mrf.mxu0
    %v1517 = vadd.f32 0.0, %v1516
    %v1518 = vpop.f32.mrf.mxu0
    %v1519 = vadd.f32 0.0, %v1518
    %v1520 = vpop.f32.mrf.mxu0
    %v1521 = vadd.f32 0.0, %v1520
    %v1522 = vpop.f32.mrf.mxu0
    %v1523 = vadd.f32 0.0, %v1522
    %1524 = vmatprep.mubr.bf16.mxu0 0
    %1525 = vmatmul.mubr.bf16.gmra.mxu0 %v1471
    %v1526 = vpop.f32.mrf.mxu0
    %v1527 = vadd.f32 0.0, %v1526
    %v1528 = vpop.f32.mrf.mxu0
    %v1529 = vadd.f32 0.0, %v1528
    %v1530 = vpop.f32.mrf.mxu0
    %v1531 = vadd.f32 0.0, %v1530
    %v1532 = vpop.f32.mrf.mxu0
    %v1533 = vadd.f32 0.0, %v1532
    %1534 = vdwg.mxu0
    %1543 = vrot.lane.b32.xlu0 %v1517, 122
    %v1544 = vpop.permute.xlu0 %1543
    %1545 = vrot.lane.b32.xlu0 %v1519, 122
    %v1546 = vpop.permute.xlu0 %1545
    %1547 = vrot.lane.b32.xlu0 %v1521, 122
    %v1548 = vpop.permute.xlu0 %1547
    %1549 = vrot.lane.b32.xlu0 %v1523, 122
    %v1550 = vpop.permute.xlu0 %1549
    %1551 = vrot.lane.b32.xlu0 %v1527, 122
    %v1552 = vpop.permute.xlu0 %1551
    %1553 = vrot.lane.b32.xlu0 %v1529, 122
    %v1554 = vpop.permute.xlu0 %1553
    %1555 = vrot.lane.b32.xlu0 %v1531, 122
    %v1556 = vpop.permute.xlu0 %1555
    %1557 = vrot.lane.b32.xlu0 %v1533, 122
    %v1558 = vpop.permute.xlu0 %1557
    %vm1559 = vcmask 998400
    %v1560 = vsel %vm1559, %v1544, %v1546
    %v1561 = vsel %vm1559, %v1548, %v1550
    %v1562 = vsel %vm1559, %v1552, %v1554
    %v1563 = vsel %vm1559, %v1556, %v1558
    %v1572 = vmax.f32 %v1517, %v1560
    %v1573 = vmax.f32 %v1519, %v1546
    %v1574 = vmax.f32 %v1521, %v1561
    %v1575 = vmax.f32 %v1523, %v1550
    %v1576 = vmax.f32 %v1527, %v1562
    %v1577 = vmax.f32 %v1529, %v1554
    %v1578 = vmax.f32 %v1531, %v1563
    %v1579 = vmax.f32 %v1533, %v1558
    %v1580 = vpack.c.bf16 %v1574, %v1572
    %v1581 = vpack.c.bf16 %v1575, %v1573
    %v1582 = vpack.c.bf16 %v1578, %v1576
    %v1583 = vpack.c.bf16 %v1579, %v1577
    %vm1584 = vcmp.lt.s32.totalorder %v1357, 10
    %vm1585 = vcmp.lt.s32.totalorder %v1358, 10
    %vm1586 = vcmp.lt.s32.totalorder %v1359, 10
    %v1587 = vsel %vm1584, 1.0, 0.0
    %v1588 = vsel %vm1585, 1.0, 0.0
    %v1589 = vsel %vm1586, 1.0, 0.0
    %v1590 = vmul.f32 %v54, 0.0625
    %v1591 = vmul.f32 %v55, 0.0625
    %v1592 = vmul.f32 %v56, 0.0625
    %v1593 = vmul.f32 %v57, 0.0625
    %v1594 = vmul.f32 %v58, 0.0625
    %v1595 = vmul.f32 %v59, 0.0625
    %v1596 = vmul.f32 %v60, 0.0625
    %v1597 = vmul.f32 %v61, 0.0625
    %v1598 = vmul.f32 %v138, 0.0625
    %v1599 = vmul.f32 %v139, 0.0625
    %v1600 = vmul.f32 %v140, 0.0625
    %v1601 = vmul.f32 %v141, 0.0625
    %v1602 = vmul.f32 %v142, 0.0625
    %v1603 = vmul.f32 %v143, 0.0625
    %v1604 = vmul.f32 %v144, 0.0625
    %v1605 = vmul.f32 %v145, 0.0625
    %v1606 = vmul.f32 %v146, 0.0625
    %v1607 = vmul.f32 %v147, 0.0625
    %v1608 = vmul.f32 %v148, 0.0625
    %v1609 = vmul.f32 %v149, 0.0625
    %v1610 = vcvt.f32.s32.to.zero.pseudo %v1590
    %v1611 = vcvt.f32.s32.to.zero.pseudo %v1591
    %v1612 = vcvt.f32.s32.to.zero.pseudo %v1592
    %v1613 = vcvt.f32.s32.to.zero.pseudo %v1593
    %v1614 = vcvt.f32.s32.to.zero.pseudo %v1594
    %v1615 = vcvt.f32.s32.to.zero.pseudo %v1595
    %v1616 = vcvt.f32.s32.to.zero.pseudo %v1596
    %v1617 = vcvt.f32.s32.to.zero.pseudo %v1597
    %v1618 = vcvt.f32.s32.to.zero.pseudo %v1598
    %v1619 = vcvt.f32.s32.to.zero.pseudo %v1599
    %v1620 = vcvt.f32.s32.to.zero.pseudo %v1600
    %v1621 = vcvt.f32.s32.to.zero.pseudo %v1601
    %v1622 = vcvt.f32.s32.to.zero.pseudo %v1602
    %v1623 = vcvt.f32.s32.to.zero.pseudo %v1603
    %v1624 = vcvt.f32.s32.to.zero.pseudo %v1604
    %v1625 = vcvt.f32.s32.to.zero.pseudo %v1605
    %v1626 = vcvt.f32.s32.to.zero.pseudo %v1606
    %v1627 = vcvt.f32.s32.to.zero.pseudo %v1607
    %v1628 = vcvt.f32.s32.to.zero.pseudo %v1608
    %v1629 = vcvt.f32.s32.to.zero.pseudo %v1609
    %v1630 = vmul.u32 %v1610, 16
    %v1631 = vmul.u32 %v1611, 16
    %v1632 = vmul.u32 %v1612, 16
    %v1633 = vmul.u32 %v1613, 16
    %v1634 = vmul.u32 %v1614, 16
    %v1635 = vmul.u32 %v1615, 16
    %v1636 = vmul.u32 %v1616, 16
    %v1637 = vmul.u32 %v1617, 16
    %v1638 = vmul.u32 %v1618, 16
    %v1639 = vmul.u32 %v1619, 16
    %v1640 = vmul.u32 %v1620, 16
    %v1641 = vmul.u32 %v1621, 16
    %v1642 = vmul.u32 %v1622, 16
    %v1643 = vmul.u32 %v1623, 16
    %v1644 = vmul.u32 %v1624, 16
    %v1645 = vmul.u32 %v1625, 16
    %v1646 = vmul.u32 %v1626, 16
    %v1647 = vmul.u32 %v1627, 16
    %v1648 = vmul.u32 %v1628, 16
    %v1649 = vmul.u32 %v1629, 16
    %v1650 = vsub.s32 %v38, %v1630
    %v1651 = vsub.s32 %v39, %v1631
    %v1652 = vsub.s32 %v40, %v1632
    %v1653 = vsub.s32 %v41, %v1633
    %v1654 = vsub.s32 %v42, %v1634
    %v1655 = vsub.s32 %v43, %v1635
    %v1656 = vsub.s32 %v44, %v1636
    %v1657 = vsub.s32 %v45, %v1637
    %v1658 = vsub.s32 %v110, %v1638
    %v1659 = vsub.s32 %v111, %v1639
    %v1660 = vsub.s32 %v112, %v1640
    %v1661 = vsub.s32 %v113, %v1641
    %v1662 = vsub.s32 %v114, %v1642
    %v1663 = vsub.s32 %v115, %v1643
    %v1664 = vsub.s32 %v116, %v1644
    %v1665 = vsub.s32 %v117, %v1645
    %v1666 = vsub.s32 %v118, %v1646
    %v1667 = vsub.s32 %v119, %v1647
    %v1668 = vsub.s32 %v120, %v1648
    %v1669 = vsub.s32 %v121, %v1649
    %vm1670 = vcmp.eq.s32.totalorder %v1650, %v124
    %vm1671 = vcmp.eq.s32.totalorder %v1651, %v124
    %vm1672 = vcmp.eq.s32.totalorder %v1652, %v124
    %vm1673 = vcmp.eq.s32.totalorder %v1653, %v124
    %vm1674 = vcmp.eq.s32.totalorder %v1654, %v124
    %vm1675 = vcmp.eq.s32.totalorder %v1655, %v124
    %vm1676 = vcmp.eq.s32.totalorder %v1656, %v124
    %vm1677 = vcmp.eq.s32.totalorder %v1657, %v124
    %vm1678 = vcmp.eq.s32.totalorder %v1658, %v124
    %vm1679 = vcmp.eq.s32.totalorder %v1659, %v124
    %vm1680 = vcmp.eq.s32.totalorder %v1660, %v124
    %vm1681 = vcmp.eq.s32.totalorder %v1661, %v124
    %vm1682 = vcmp.eq.s32.totalorder %v1662, %v124
    %vm1683 = vcmp.eq.s32.totalorder %v1663, %v124
    %vm1684 = vcmp.eq.s32.totalorder %v1664, %v124
    %vm1685 = vcmp.eq.s32.totalorder %v1665, %v124
    %vm1686 = vcmp.eq.s32.totalorder %v1666, %v124
    %vm1687 = vcmp.eq.s32.totalorder %v1667, %v124
    %vm1688 = vcmp.eq.s32.totalorder %v1668, %v124
    %vm1689 = vcmp.eq.s32.totalorder %v1669, %v124
    %v1690 = vsel %vm1670, 1.0, 0.0
    %v1691 = vsel %vm1671, 1.0, 0.0
    %v1692 = vsel %vm1672, 1.0, 0.0
    %v1693 = vsel %vm1673, 1.0, 0.0
    %v1694 = vsel %vm1674, 1.0, 0.0
    %v1695 = vsel %vm1675, 1.0, 0.0
    %v1696 = vsel %vm1676, 1.0, 0.0
    %v1697 = vsel %vm1677, 1.0, 0.0
    %v1698 = vsel %vm1678, 1.0, 0.0
    %v1699 = vsel %vm1679, 1.0, 0.0
    %v1700 = vsel %vm1680, 1.0, 0.0
    %v1701 = vsel %vm1681, 1.0, 0.0
    %v1702 = vsel %vm1682, 1.0, 0.0
    %v1703 = vsel %vm1683, 1.0, 0.0
    %v1704 = vsel %vm1684, 1.0, 0.0
    %v1705 = vsel %vm1685, 1.0, 0.0
    %v1706 = vsel %vm1686, 1.0, 0.0
    %v1707 = vsel %vm1687, 1.0, 0.0
    %v1708 = vsel %vm1688, 1.0, 0.0
    %v1709 = vsel %vm1689, 1.0, 0.0
    %v1710 = vmul.f32 %v280, 0.0625
    %v1711 = vmul.f32 %v281, 0.0625
    %v1712 = vcvt.f32.s32.to.zero.pseudo %v1710
    %v1713 = vcvt.f32.s32.to.zero.pseudo %v1711
    %v1714 = vmul.u32 %v1712, 16
    %v1715 = vmul.u32 %v1713, 16
    %v1716 = vsub.s32 %v124, %v1714
    %v1717 = vsub.s32 %v277, %v1715
    %vm1718 = vcmp.eq.s32.totalorder %v1716, %v38
    %vm1719 = vcmp.eq.s32.totalorder %v1717, %v38
    %vm1720 = vcmp.eq.s32.totalorder %v1716, %v39
    %vm1721 = vcmp.eq.s32.totalorder %v1717, %v39
    %v1722 = vsel %vm1718, 1.0, 0.0
    %v1723 = vsel %vm1719, 1.0, 0.0
    %v1724 = vsel %vm1720, 1.0, 0.0
    %v1725 = vsel %vm1721, 1.0, 0.0
    %v1730 = vunpack.c.l.b16 %v1580
    %v1731 = vunpack.c.l.b16 %v1581
    %v1732 = vunpack.c.h.b16 %v1580
    %v1733 = vunpack.c.h.b16 %v1581
    %v1734 = vunpack.c.l.b16 %v1582
    %v1735 = vunpack.c.l.b16 %v1583
    %v1736 = vpack.c.b16 %v1731, %v1730
    %v1737 = vpack.c.b16 %v1733, %v1732
    %v1738 = vpack.c.b16 %v1735, %v1734
    %vm1742 = vcmask 277508
    %vm1743 = vmor %vm1742, %vm878
    %1744 = vst.msk [vmem:[#allocation3] sm:$0xff] %vm1743, %v1736
    %1745 = vst.msk [vmem:[#allocation3 + $0x1c] sm:$0xff] %vm1743, %v1737
    %1746 = vst.msk [vmem:[#allocation3 + $0x38] sm:$0xff] %vm1743, %v1738
    %v1747 = vunpack.c.h.b16 %v1582
    %v1748 = vunpack.c.h.b16 %v1583
    %v1749 = vpack.c.b16 %v1748, %v1747
    %v1751 = vshrl.u32 %v1736, 16
    %v1753 = vrot.slane %v1751, 4
    %v1754 = vshll.u32 %v1736, 16
    %v1756 = vrot.slane %v1754, 5
    %v1757 = vor.u32 %v1753, %v1756
    %v1758 = vrot.slane %v1757, 4
    %v1760 = vshll.u32 %v1737, 16
    %v1762 = vrot.slane %v1760, 5
    %v1763 = vsel %vm306, %v1758, %v1762
    %v1764 = vshrl.u32 %v1737, 16
    %v1766 = vrot.slane %v1764, 4
    %v1767 = vor.u32 %v1766, %v1762
    %v1768 = vrot.slane %v1767, 4
    %v1770 = vshll.u32 %v1738, 16
    %v1772 = vrot.slane %v1770, 5
    %v1773 = vsel %vm306, %v1768, %v1772
    %v1774 = vshrl.u32 %v1738, 16
    %v1776 = vrot.slane %v1774, 4
    %v1777 = vor.u32 %v1776, %v1772
    %v1778 = vrot.slane %v1777, 4
    %v1780 = vshll.u32 %v1749, 16
    %v1782 = vrot.slane %v1780, 5
    %v1783 = vsel %vm306, %v1778, %v1782
    %1784 = vrot.lane.b32.xlu0 %v1763, 34
    %v1785 = vpop.permute.xlu0 %1784
    %1786 = vrot.lane.b32.xlu0 %v1773, 34
    %v1787 = vpop.permute.xlu0 %1786
    %1788 = vrot.lane.b32.xlu0 %v1783, 34
    %v1789 = vpop.permute.xlu0 %1788
    %v1790 = vrot.slane %v1785, 4
    %v1791 = vrot.slane %v1787, 4
    %v1792 = vrot.slane %v1789, 4
    %vm1793 = vcmask 277504
    %v1794 = vsel %vm1793, %v1790, %v1785
    %v1795 = vsel %vm1793, %v1791, %v1787
    %v1796 = vsel %vm1793, %v1792, %v1789
    %vm1800 = vcmask 1043728
    %vm1801 = vcmask 556036
    %vm1802 = vmor %vm1801, %vm1800
    %1803 = vst.msk [vmem:[#allocation3 + $0x4] sm:$0xff] %vm1802, %v1794
    %1804 = vst.msk [vmem:[#allocation3 + $0x20] sm:$0xff] %vm1802, %v1795
    %1805 = vst.msk [vmem:[#allocation3 + $0x3c] sm:$0xff] %vm1802, %v1796
    %v1806 = vrot.slane %v1736, 5
    %v1807 = vrot.slane %v1806, 4
    %v1808 = vrot.slane %v1737, 5
    %v1809 = vsel %vm430, %v1807, %v1808
    %v1810 = vrot.slane %v1808, 4
    %v1811 = vrot.slane %v1738, 5
    %v1812 = vsel %vm430, %v1810, %v1811
    %v1813 = vrot.slane %v1811, 4
    %v1814 = vrot.slane %v1749, 5
    %v1815 = vsel %vm430, %v1813, %v1814
    %1816 = vrot.lane.b32.xlu0 %v1809, 68
    %v1817 = vpop.permute.xlu0 %1816
    %1818 = vrot.lane.b32.xlu0 %v1812, 68
    %v1819 = vpop.permute.xlu0 %1818
    %1820 = vrot.lane.b32.xlu0 %v1815, 68
    %v1821 = vpop.permute.xlu0 %1820
    %v1822 = vrot.slane %v1817, 4
    %v1823 = vrot.slane %v1819, 4
    %v1824 = vrot.slane %v1821, 4
    %vm1825 = vcmask 556032
    %v1826 = vsel %vm1825, %v1822, %v1817
    %v1827 = vsel %vm1825, %v1823, %v1819
    %v1828 = vsel %vm1825, %v1824, %v1821
    %vm1832 = vcmask 1044000
    %vm1833 = vcmask 834564
    %vm1834 = vmor %vm1833, %vm1832
    %1835 = vst.msk [vmem:[#allocation3 + $0x8] sm:$0xff] %vm1834, %v1826
    %1836 = vst.msk [vmem:[#allocation3 + $0x24] sm:$0xff] %vm1834, %v1827
    %1837 = vst.msk [vmem:[#allocation3 + $0x40] sm:$0xff] %vm1834, %v1828
    %v1838 = vrot.slane %v1751, 5
    %v1839 = vrot.slane %v1754, 6
    %v1840 = vor.u32 %v1838, %v1839
    %v1841 = vrot.slane %v1840, 4
    %v1842 = vrot.slane %v1764, 5
    %v1843 = vrot.slane %v1760, 6
    %v1844 = vor.u32 %v1842, %v1843
    %v1845 = vsel %vm490, %v1841, %v1844
    %v1846 = vrot.slane %v1844, 4
    %v1847 = vrot.slane %v1774, 5
    %v1848 = vrot.slane %v1770, 6
    %v1849 = vor.u32 %v1847, %v1848
    %v1850 = vsel %vm490, %v1846, %v1849
    %v1851 = vrot.slane %v1849, 4
    %v1852 = vshrl.u32 %v1749, 16
    %v1854 = vrot.slane %v1852, 5
    %v1855 = vrot.slane %v1780, 6
    %v1856 = vor.u32 %v1854, %v1855
    %v1857 = vsel %vm490, %v1851, %v1856
    %1858 = vrot.lane.b32.xlu0 %v1845, 102
    %v1859 = vpop.permute.xlu0 %1858
    %1860 = vrot.lane.b32.xlu0 %v1850, 102
    %v1861 = vpop.permute.xlu0 %1860
    %1862 = vrot.lane.b32.xlu0 %v1857, 102
    %v1863 = vpop.permute.xlu0 %1862
    %v1864 = vrot.slane %v1859, 4
    %v1865 = vrot.slane %v1861, 4
    %v1866 = vrot.slane %v1863, 4
    %vm1867 = vcmask 834560
    %v1868 = vsel %vm1867, %v1864, %v1859
    %v1869 = vsel %vm1867, %v1865, %v1861
    %v1870 = vsel %vm1867, %v1866, %v1863
    %vm1877 = vcmask 1044272
    %vm1878 = vcmask 1047556
    %vm1879 = vmor %vm1878, %vm1877
    %1880 = vst.msk [vmem:[#allocation3 + $0xc] sm:$0xff] %vm1879, %v1868
    %vm1881 = vcmask 60416
    %1882 = vst.msk [vmem:[#allocation3 + $0x14] sm:$0xf] %vm1881, %v1864
    %1883 = vst.msk [vmem:[#allocation3 + $0x28] sm:$0xff] %vm1879, %v1869
    %1884 = vst.msk [vmem:[#allocation3 + $0x30] sm:$0xf] %vm1881, %v1865
    %1885 = vst.msk [vmem:[#allocation3 + $0x44] sm:$0xff] %vm1879, %v1870
    %1886 = vst.msk [vmem:[#allocation3 + $0x4c] sm:$0xf] %vm1881, %v1866
    %v1887 = vrot.slane %v1736, 6
    %v1888 = vrot.slane %v1887, 4
    %v1889 = vrot.slane %v1737, 6
    %v1890 = vsel %vm566, %v1888, %v1889
    %v1891 = vrot.slane %v1889, 4
    %v1892 = vrot.slane %v1738, 6
    %v1893 = vsel %vm566, %v1891, %v1892
    %v1894 = vrot.slane %v1892, 4
    %v1895 = vrot.slane %v1749, 6
    %v1896 = vsel %vm566, %v1894, %v1895
    %1897 = vrot.lane.b32.xlu0 %v1890, 8
    %v1898 = vpop.permute.xlu0 %1897
    %1899 = vrot.lane.b32.xlu0 %v1893, 8
    %v1900 = vpop.permute.xlu0 %1899
    %1901 = vrot.lane.b32.xlu0 %v1896, 8
    %v1902 = vpop.permute.xlu0 %1901
    %v1903 = vrot.slane %v1898, 4
    %v1904 = vrot.slane %v1900, 4
    %v1905 = vrot.slane %v1902, 4
    %vm1906 = vcmask 64512
    %v1907 = vsel %vm1906, %v1903, %v1898
    %v1908 = vsel %vm1906, %v1904, %v1900
    %v1909 = vsel %vm1906, %v1905, %v1902
    %vm1913 = vcmask 1043520
    %vm1914 = vcmask 343044
    %vm1915 = vmor %vm1914, %vm1913
    %1916 = vst.msk [vmem:[#allocation3 + $0x14] sm:$0xff] %vm1915, %v1907
    %1917 = vst.msk [vmem:[#allocation3 + $0x30] sm:$0xff] %vm1915, %v1908
    %1918 = vst.msk [vmem:[#allocation3 + $0x4c] sm:$0xff] %vm1915, %v1909
    %v1919 = vld [vmem:[#allocation3] sm:$0xff]
    %v1920 = vld [vmem:[#allocation3 + $0x8] sm:$0xff]
    %v1921 = vld [vmem:[#allocation3 + $0x10] sm:$0xff]
    %v1922 = vld [vmem:[#allocation3 + $0x18] sm:$0xf]
    %v1923 = vld [vmem:[#allocation3 + $0x1c] sm:$0xff]
    %v1924 = vld [vmem:[#allocation3 + $0x24] sm:$0xff]
    %v1925 = vld [vmem:[#allocation3 + $0x2c] sm:$0xff]
    %v1926 = vld [vmem:[#allocation3 + $0x34] sm:$0xf]
    %v1927 = vld [vmem:[#allocation3 + $0x38] sm:$0xff]
    %v1928 = vld [vmem:[#allocation3 + $0x40] sm:$0xff]
    %v1929 = vld [vmem:[#allocation3 + $0x48] sm:$0xff]
    %v1930 = vld [vmem:[#allocation3 + $0x50] sm:$0xf]
    %v1931 = vld [vmem:[%s2] sm:$0xff]
    %v1932 = vld [vmem:[%s2 + $0x8] sm:$0xff]
    %v1933 = vld [vmem:[%s2 + $0x10] sm:$0xff]
    %v1934 = vld [vmem:[%s2 + $0x18] sm:$0xff]
    %v1935 = vld [vmem:[%s2 + $0x20] sm:$0xff]
    %v1936 = vld [vmem:[%s2 + $0x28] sm:$0xff]
    %v1937 = vld [vmem:[%s2 + $0x30] sm:$0xff]
    %v1938 = vld [vmem:[%s2 + $0x38] sm:$0xff]
    %v1939 = vld [vmem:[%s2 + $0x40] sm:$0xff]
    %v1940 = vld [vmem:[%s2 + $0x48] sm:$0xff]
    %v1941 = vld [vmem:[%s2 + $0x50] sm:$0xff]
    %v1942 = vld [vmem:[%s2 + $0x58] sm:$0xff]
    %v1943 = vld [vmem:[%s2 + $0x60] sm:$0xff]
    %v1944 = vld [vmem:[%s2 + $0x68] sm:$0xff]
    %v1945 = vld [vmem:[%s2 + $0x70] sm:$0xff]
    %v1946 = vld [vmem:[%s2 + $0x78] sm:$0xff]
    %v1947 = vld [vmem:[%s2 + $0x80] sm:$0xff]
    %v1948 = vld [vmem:[%s2 + $0x88] sm:$0xff]
    %v1949 = vld [vmem:[%s2 + $0x90] sm:$0xff]
    %v1950 = vld [vmem:[%s2 + $0x98] sm:$0xff]
    %v1951 = vld [vmem:[%s2 + $0xa0] sm:$0xff]
    %v1952 = vld [vmem:[%s2 + $0xa8] sm:$0xff]
    %v1953 = vld [vmem:[%s2 + $0xb0] sm:$0xff]
    %v1954 = vld [vmem:[%s2 + $0xb8] sm:$0xff]
    %v1955 = vld [vmem:[%s2 + $0xc0] sm:$0xff]
    %v1956 = vld [vmem:[%s2 + $0xc8] sm:$0xff]
    %v1957 = vld [vmem:[%s2 + $0xd0] sm:$0xff]
    %v1958 = vld [vmem:[%s2 + $0xd8] sm:$0xff]
    %v1959 = vld [vmem:[%s2 + $0xe0] sm:$0xff]
    %v1960 = vld [vmem:[%s2 + $0xe8] sm:$0xff]
    %v1961 = vld [vmem:[%s2 + $0xf0] sm:$0xff]
    %v1962 = vld [vmem:[%s2 + $0xf8] sm:$0xff]
    %v1963 = vld [vmem:[%s2 + $0x100] sm:$0xff]
    %v1964 = vld [vmem:[%s2 + $0x108] sm:$0xff]
    %v1965 = vld [vmem:[%s2 + $0x110] sm:$0xff]
    %v1966 = vld [vmem:[%s2 + $0x118] sm:$0xff]
    %v1967 = vld [vmem:[%s2 + $0x120] sm:$0xff]
    %v1968 = vld [vmem:[%s2 + $0x128] sm:$0xff]
    %v1969 = vld [vmem:[%s2 + $0x130] sm:$0xff]
    %v1970 = vld [vmem:[%s2 + $0x138] sm:$0xff]
    %v1971 = vld [vmem:[%s2 + $0x140] sm:$0xff]
    %v1972 = vld [vmem:[%s2 + $0x148] sm:$0xff]
    %v1973 = vld [vmem:[%s2 + $0x150] sm:$0xff]
    %v1974 = vld [vmem:[%s2 + $0x158] sm:$0xff]
    %v1975 = vld [vmem:[%s2 + $0x160] sm:$0xff]
    %v1976 = vld [vmem:[%s2 + $0x168] sm:$0xff]
    %v1977 = vld [vmem:[%s2 + $0x170] sm:$0xff]
    %v1978 = vld [vmem:[%s2 + $0x178] sm:$0xff]
    %v1979 = vld [vmem:[%s2 + $0x180] sm:$0xff]
    %v1980 = vld [vmem:[%s2 + $0x188] sm:$0xff]
    %v1981 = vld [vmem:[%s2 + $0x190] sm:$0xff]
    %v1982 = vld [vmem:[%s2 + $0x198] sm:$0xff]
    %v1983 = vld [vmem:[%s2 + $0x1a0] sm:$0xff]
    %v1984 = vld [vmem:[%s2 + $0x1a8] sm:$0xff]
    %v1985 = vld [vmem:[%s2 + $0x1b0] sm:$0xff]
    %v1986 = vld [vmem:[%s2 + $0x1b8] sm:$0xff]
    %v1987 = vld [vmem:[%s2 + $0x1c0] sm:$0xff]
    %v1988 = vld [vmem:[%s2 + $0x1c8] sm:$0xff]
    %v1989 = vld [vmem:[%s2 + $0x1d0] sm:$0xff]
    %v1990 = vld [vmem:[%s2 + $0x1d8] sm:$0xff]
    %v1991 = vld [vmem:[%s2 + $0x1e0] sm:$0xff]
    %v1992 = vld [vmem:[%s2 + $0x1e8] sm:$0xff]
    %v1993 = vld [vmem:[%s2 + $0x1f0] sm:$0xff]
    %v1994 = vld [vmem:[%s2 + $0x1f8] sm:$0xff]
    %v1995 = vld [vmem:[%s2 + $0x200] sm:$0xff]
    %v1996 = vld [vmem:[%s2 + $0x208] sm:$0xff]
    %v1997 = vld [vmem:[%s2 + $0x210] sm:$0xff]
    %v1998 = vld [vmem:[%s2 + $0x218] sm:$0xff]
    %v1999 = vld [vmem:[%s2 + $0x220] sm:$0xff]
    %v2000 = vld [vmem:[%s2 + $0x228] sm:$0xff]
    %v2001 = vld [vmem:[%s2 + $0x230] sm:$0xff]
    %v2002 = vld [vmem:[%s2 + $0x238] sm:$0xff]
    %v2003 = vld [vmem:[%s2 + $0x240] sm:$0xff]
    %v2004 = vld [vmem:[%s2 + $0x248] sm:$0xff]
    %v2005 = vld [vmem:[%s2 + $0x250] sm:$0xff]
    %v2006 = vld [vmem:[%s2 + $0x258] sm:$0xff]
    %v2007 = vld [vmem:[%s2 + $0x260] sm:$0xff]
    %v2008 = vld [vmem:[%s2 + $0x268] sm:$0xff]
    %v2009 = vld [vmem:[%s2 + $0x270] sm:$0xff]
    %v2010 = vld [vmem:[%s2 + $0x278] sm:$0xff]
    %v2011 = vld [vmem:[%s2 + $0x280] sm:$0xff]
    %v2012 = vld [vmem:[%s2 + $0x288] sm:$0xff]
    %v2013 = vld [vmem:[%s2 + $0x290] sm:$0xff]
    %v2014 = vld [vmem:[%s2 + $0x298] sm:$0xff]
    %v2015 = vld [vmem:[%s2 + $0x2a0] sm:$0xff]
    %v2016 = vld [vmem:[%s2 + $0x2a8] sm:$0xff]
    %v2017 = vld [vmem:[%s2 + $0x2b0] sm:$0xff]
    %v2018 = vld [vmem:[%s2 + $0x2b8] sm:$0xff]
    %v2019 = vld [vmem:[%s2 + $0x2c0] sm:$0xff]
    %v2020 = vld [vmem:[%s2 + $0x2c8] sm:$0xff]
    %v2021 = vld [vmem:[%s2 + $0x2d0] sm:$0xff]
    %v2022 = vld [vmem:[%s2 + $0x2d8] sm:$0xff]
    %v2023 = vld [vmem:[%s2 + $0x2e0] sm:$0xff]
    %v2024 = vld [vmem:[%s2 + $0x2e8] sm:$0xff]
    %v2025 = vld [vmem:[%s2 + $0x2f0] sm:$0xff]
    %v2026 = vld [vmem:[%s2 + $0x2f8] sm:$0xff]
    %v2027 = vld [vmem:[%s2 + $0x300] sm:$0xff]
    %v2028 = vld [vmem:[%s2 + $0x308] sm:$0xff]
    %v2029 = vld [vmem:[%s2 + $0x310] sm:$0xff]
    %v2030 = vld [vmem:[%s2 + $0x318] sm:$0xff]
    %v2031 = vld [vmem:[%s2 + $0x320] sm:$0xff]
    %v2032 = vld [vmem:[%s2 + $0x328] sm:$0x11]
    %v2045 = vunpack.c.l.b16 %v1919
    %v2046 = vunpack.c.h.b16 %v1919
    %v2047 = vunpack.c.l.b16 %v1920
    %v2048 = vunpack.c.h.b16 %v1920
    %v2049 = vunpack.c.l.b16 %v1921
    %v2050 = vunpack.c.h.b16 %v1921
    %v2051 = vunpack.c.l.b16 %v1922
    %v2052 = vunpack.c.l.b16 %v1923
    %v2053 = vunpack.c.h.b16 %v1923
    %v2054 = vunpack.c.l.b16 %v1924
    %v2055 = vunpack.c.h.b16 %v1924
    %v2056 = vunpack.c.l.b16 %v1925
    %v2057 = vunpack.c.h.b16 %v1925
    %v2058 = vunpack.c.l.b16 %v1926
    %v2059 = vunpack.c.l.b16 %v1927
    %v2060 = vunpack.c.h.b16 %v1927
    %v2061 = vunpack.c.l.b16 %v1928
    %v2062 = vunpack.c.h.b16 %v1928
    %v2063 = vunpack.c.l.b16 %v1929
    %v2064 = vunpack.c.h.b16 %v1929
    %v2065 = vunpack.c.l.b16 %v1930
    %v2066 = vpack.c.b16 %v2052, %v2045
    %v2067 = vpack.c.b16 %v2053, %v2046
    %v2068 = vpack.c.b16 %v2054, %v2047
    %v2069 = vpack.c.b16 %v2055, %v2048
    %v2070 = vpack.c.b16 %v2056, %v2049
    %v2071 = vpack.c.b16 %v2057, %v2050
    %v2072 = vpack.c.b16 %v2058, %v2051
    %v2073 = vpack.c.b16 %v2059, %v2059
    %v2074 = vpack.c.b16 %v2060, %v2060
    %v2075 = vpack.c.b16 %v2061, %v2061
    %v2076 = vpack.c.b16 %v2062, %v2062
    %v2077 = vpack.c.b16 %v2063, %v2063
    %v2078 = vpack.c.b16 %v2064, %v2064
    %v2079 = vpack.c.b16 %v2065, %v2065
    %v2194 = vunpack.c.l.b16 %v1931
    %v2195 = vunpack.c.h.b16 %v1931
    %v2196 = vunpack.c.l.b16 %v1932
    %v2197 = vunpack.c.h.b16 %v1932
    %v2198 = vunpack.c.l.b16 %v1933
    %v2199 = vunpack.c.h.b16 %v1933
    %v2200 = vunpack.c.l.b16 %v1934
    %v2201 = vunpack.c.h.b16 %v1934
    %v2202 = vunpack.c.l.b16 %v1935
    %v2203 = vunpack.c.h.b16 %v1935
    %v2204 = vunpack.c.l.b16 %v1936
    %v2205 = vunpack.c.h.b16 %v1936
    %v2206 = vunpack.c.l.b16 %v1937
    %v2207 = vunpack.c.h.b16 %v1937
    %v2208 = vunpack.c.l.b16 %v1938
    %v2209 = vunpack.c.h.b16 %v1938
    %v2210 = vunpack.c.l.b16 %v1939
    %v2211 = vunpack.c.h.b16 %v1939
    %v2212 = vunpack.c.l.b16 %v1940
    %v2213 = vunpack.c.h.b16 %v1940
    %v2214 = vunpack.c.l.b16 %v1941
    %v2215 = vunpack.c.h.b16 %v1941
    %v2216 = vunpack.c.l.b16 %v1942
    %v2217 = vunpack.c.h.b16 %v1942
    %v2218 = vunpack.c.l.b16 %v1943
    %v2219 = vunpack.c.h.b16 %v1943
    %v2220 = vunpack.c.l.b16 %v1944
    %v2221 = vunpack.c.h.b16 %v1944
    %v2222 = vunpack.c.l.b16 %v1945
    %v2223 = vunpack.c.h.b16 %v1945
    %v2224 = vunpack.c.l.b16 %v1946
    %v2225 = vunpack.c.h.b16 %v1946
    %v2226 = vunpack.c.l.b16 %v1947
    %v2227 = vunpack.c.h.b16 %v1947
    %v2228 = vunpack.c.l.b16 %v1948
    %v2229 = vunpack.c.h.b16 %v1948
    %v2230 = vunpack.c.l.b16 %v1949
    %v2231 = vunpack.c.h.b16 %v1949
    %v2232 = vunpack.c.l.b16 %v1950
    %v2233 = vunpack.c.h.b16 %v1950
    %v2234 = vunpack.c.l.b16 %v1951
    %v2235 = vunpack.c.h.b16 %v1951
    %v2236 = vunpack.c.l.b16 %v1952
    %v2237 = vunpack.c.h.b16 %v1952
    %v2238 = vunpack.c.l.b16 %v1953
    %v2239 = vunpack.c.h.b16 %v1953
    %v2240 = vunpack.c.l.b16 %v1954
    %v2241 = vunpack.c.h.b16 %v1954
    %v2242 = vunpack.c.l.b16 %v1955
    %v2243 = vunpack.c.h.b16 %v1955
    %v2244 = vunpack.c.l.b16 %v1956
    %v2245 = vunpack.c.h.b16 %v1956
    %v2246 = vunpack.c.l.b16 %v1957
    %v2247 = vunpack.c.h.b16 %v1957
    %v2248 = vunpack.c.l.b16 %v1958
    %v2249 = vunpack.c.h.b16 %v1958
    %v2250 = vunpack.c.l.b16 %v1959
    %v2251 = vunpack.c.h.b16 %v1959
    %v2252 = vunpack.c.l.b16 %v1960
    %v2253 = vunpack.c.h.b16 %v1960
    %v2254 = vunpack.c.l.b16 %v1961
    %v2255 = vunpack.c.h.b16 %v1961
    %v2256 = vunpack.c.l.b16 %v1962
    %v2257 = vunpack.c.h.b16 %v1962
    %v2258 = vunpack.c.l.b16 %v1963
    %v2259 = vunpack.c.h.b16 %v1963
    %v2260 = vunpack.c.l.b16 %v1964
    %v2261 = vunpack.c.h.b16 %v1964
    %v2262 = vunpack.c.l.b16 %v1965
    %v2263 = vunpack.c.h.b16 %v1965
    %v2264 = vunpack.c.l.b16 %v1966
    %v2265 = vunpack.c.h.b16 %v1966
    %v2266 = vunpack.c.l.b16 %v1967
    %v2267 = vunpack.c.h.b16 %v1967
    %v2268 = vunpack.c.l.b16 %v1968
    %v2269 = vunpack.c.h.b16 %v1968
    %v2270 = vunpack.c.l.b16 %v1969
    %v2271 = vunpack.c.h.b16 %v1969
    %v2272 = vunpack.c.l.b16 %v1970
    %v2273 = vunpack.c.h.b16 %v1970
    %v2274 = vunpack.c.l.b16 %v1971
    %v2275 = vunpack.c.h.b16 %v1971
    %v2276 = vunpack.c.l.b16 %v1972
    %v2277 = vunpack.c.h.b16 %v1972
    %v2278 = vunpack.c.l.b16 %v1973
    %v2279 = vunpack.c.h.b16 %v1973
    %v2280 = vunpack.c.l.b16 %v1974
    %v2281 = vunpack.c.h.b16 %v1974
    %v2282 = vunpack.c.l.b16 %v1975
    %v2283 = vunpack.c.h.b16 %v1975
    %v2284 = vunpack.c.l.b16 %v1976
    %v2285 = vunpack.c.h.b16 %v1976
    %v2286 = vunpack.c.l.b16 %v1977
    %v2287 = vunpack.c.h.b16 %v1977
    %v2288 = vunpack.c.l.b16 %v1978
    %v2289 = vunpack.c.h.b16 %v1978
    %v2290 = vunpack.c.l.b16 %v1979
    %v2291 = vunpack.c.h.b16 %v1979
    %v2292 = vunpack.c.l.b16 %v1980
    %v2293 = vunpack.c.h.b16 %v1980
    %v2294 = vunpack.c.l.b16 %v1981
    %v2295 = vunpack.c.h.b16 %v1981
    %v2296 = vunpack.c.l.b16 %v1982
    %v2297 = vunpack.c.h.b16 %v1982
    %v2298 = vunpack.c.l.b16 %v1983
    %v2299 = vunpack.c.h.b16 %v1983
    %v2300 = vunpack.c.l.b16 %v1984
    %v2301 = vunpack.c.h.b16 %v1984
    %v2302 = vunpack.c.l.b16 %v1985
    %v2303 = vunpack.c.h.b16 %v1985
    %v2304 = vunpack.c.l.b16 %v1986
    %v2305 = vunpack.c.h.b16 %v1986
    %v2306 = vunpack.c.l.b16 %v1987
    %v2307 = vunpack.c.h.b16 %v1987
    %v2308 = vunpack.c.l.b16 %v1988
    %v2309 = vunpack.c.h.b16 %v1988
    %v2310 = vunpack.c.l.b16 %v1989
    %v2311 = vunpack.c.h.b16 %v1989
    %v2312 = vunpack.c.l.b16 %v1990
    %v2313 = vunpack.c.h.b16 %v1990
    %v2314 = vunpack.c.l.b16 %v1991
    %v2315 = vunpack.c.h.b16 %v1991
    %v2316 = vunpack.c.l.b16 %v1992
    %v2317 = vunpack.c.h.b16 %v1992
    %v2318 = vunpack.c.l.b16 %v1993
    %v2319 = vunpack.c.h.b16 %v1993
    %v2320 = vunpack.c.l.b16 %v1994
    %v2321 = vunpack.c.h.b16 %v1994
    %v2322 = vunpack.c.l.b16 %v1995
    %v2323 = vunpack.c.h.b16 %v1995
    %v2324 = vunpack.c.l.b16 %v1996
    %v2325 = vunpack.c.h.b16 %v1996
    %v2326 = vunpack.c.l.b16 %v1997
    %v2327 = vunpack.c.h.b16 %v1997
    %v2328 = vunpack.c.l.b16 %v1998
    %v2329 = vunpack.c.h.b16 %v1998
    %v2330 = vunpack.c.l.b16 %v1999
    %v2331 = vunpack.c.h.b16 %v1999
    %v2332 = vunpack.c.l.b16 %v2000
    %v2333 = vunpack.c.h.b16 %v2000
    %v2334 = vunpack.c.l.b16 %v2001
    %v2335 = vunpack.c.h.b16 %v2001
    %v2336 = vunpack.c.l.b16 %v2002
    %v2337 = vunpack.c.h.b16 %v2002
    %v2338 = vunpack.c.l.b16 %v2003
    %v2339 = vunpack.c.h.b16 %v2003
    %v2340 = vunpack.c.l.b16 %v2004
    %v2341 = vunpack.c.h.b16 %v2004
    %v2342 = vunpack.c.l.b16 %v2005
    %v2343 = vunpack.c.h.b16 %v2005
    %v2344 = vunpack.c.l.b16 %v2006
    %v2345 = vunpack.c.h.b16 %v2006
    %v2346 = vunpack.c.l.b16 %v2007
    %v2347 = vunpack.c.h.b16 %v2007
    %v2348 = vunpack.c.l.b16 %v2008
    %v2349 = vunpack.c.h.b16 %v2008
    %v2350 = vunpack.c.l.b16 %v2009
    %v2351 = vunpack.c.h.b16 %v2009
    %v2352 = vunpack.c.l.b16 %v2010
    %v2353 = vunpack.c.h.b16 %v2010
    %v2354 = vunpack.c.l.b16 %v2011
    %v2355 = vunpack.c.h.b16 %v2011
    %v2356 = vunpack.c.l.b16 %v2012
    %v2357 = vunpack.c.h.b16 %v2012
    %v2358 = vunpack.c.l.b16 %v2013
    %v2359 = vunpack.c.h.b16 %v2013
    %v2360 = vunpack.c.l.b16 %v2014
    %v2361 = vunpack.c.h.b16 %v2014
    %v2362 = vunpack.c.l.b16 %v2015
    %v2363 = vunpack.c.h.b16 %v2015
    %v2364 = vunpack.c.l.b16 %v2016
    %v2365 = vunpack.c.h.b16 %v2016
    %v2366 = vunpack.c.l.b16 %v2017
    %v2367 = vunpack.c.h.b16 %v2017
    %v2368 = vunpack.c.l.b16 %v2018
    %v2369 = vunpack.c.h.b16 %v2018
    %v2370 = vunpack.c.l.b16 %v2019
    %v2371 = vunpack.c.h.b16 %v2019
    %v2372 = vunpack.c.l.b16 %v2020
    %v2373 = vunpack.c.h.b16 %v2020
    %v2374 = vunpack.c.l.b16 %v2021
    %v2375 = vunpack.c.h.b16 %v2021
    %v2376 = vunpack.c.l.b16 %v2022
    %v2377 = vunpack.c.h.b16 %v2022
    %v2378 = vunpack.c.l.b16 %v2023
    %v2379 = vunpack.c.h.b16 %v2023
    %v2380 = vunpack.c.l.b16 %v2024
    %v2381 = vunpack.c.h.b16 %v2024
    %v2382 = vunpack.c.l.b16 %v2025
    %v2383 = vunpack.c.h.b16 %v2025
    %v2384 = vunpack.c.l.b16 %v2026
    %v2385 = vunpack.c.h.b16 %v2026
    %v2386 = vunpack.c.l.b16 %v2027
    %v2387 = vunpack.c.h.b16 %v2027
    %v2388 = vunpack.c.l.b16 %v2028
    %v2389 = vunpack.c.h.b16 %v2028
    %v2390 = vunpack.c.l.b16 %v2029
    %v2391 = vunpack.c.h.b16 %v2029
    %v2392 = vunpack.c.l.b16 %v2030
    %v2393 = vunpack.c.h.b16 %v2030
    %v2394 = vunpack.c.l.b16 %v2031
    %v2395 = vunpack.c.h.b16 %v2031
    %v2396 = vunpack.c.l.b16 %v2032
    %v2397 = vunpack.c.h.b16 %v2032
    %v2398 = vpack.c.b16 %v2196, %v2194
    %v2399 = vpack.c.b16 %v2197, %v2195
    %v2400 = vpack.c.b16 %v2200, %v2198
    %v2401 = vpack.c.b16 %v2201, %v2199
    %v2402 = vpack.c.b16 %v2204, %v2202
    %v2403 = vpack.c.b16 %v2205, %v2203
    %v2404 = vpack.c.b16 %v2208, %v2206
    %v2405 = vpack.c.b16 %v2209, %v2207
    %v2406 = vpack.c.b16 %v2212, %v2210
    %v2407 = vpack.c.b16 %v2213, %v2211
    %v2408 = vpack.c.b16 %v2216, %v2214
    %v2409 = vpack.c.b16 %v2217, %v2215
    %v2410 = vpack.c.b16 %v2220, %v2218
    %v2411 = vpack.c.b16 %v2221, %v2219
    %v2412 = vpack.c.b16 %v2224, %v2222
    %v2413 = vpack.c.b16 %v2225, %v2223
    %v2414 = vpack.c.b16 %v2228, %v2226
    %v2415 = vpack.c.b16 %v2229, %v2227
    %v2416 = vpack.c.b16 %v2232, %v2230
    %v2417 = vpack.c.b16 %v2233, %v2231
    %v2418 = vpack.c.b16 %v2236, %v2234
    %v2419 = vpack.c.b16 %v2237, %v2235
    %v2420 = vpack.c.b16 %v2240, %v2238
    %v2421 = vpack.c.b16 %v2241, %v2239
    %v2422 = vpack.c.b16 %v2244, %v2242
    %v2423 = vpack.c.b16 %v2245, %v2243
    %v2424 = vpack.c.b16 %v2248, %v2246
    %v2425 = vpack.c.b16 %v2249, %v2247
    %v2426 = vpack.c.b16 %v2252, %v2250
    %v2427 = vpack.c.b16 %v2253, %v2251
    %v2428 = vpack.c.b16 %v2256, %v2254
    %v2429 = vpack.c.b16 %v2257, %v2255
    %v2430 = vpack.c.b16 %v2260, %v2258
    %v2431 = vpack.c.b16 %v2261, %v2259
    %v2432 = vpack.c.b16 %v2264, %v2262
    %v2433 = vpack.c.b16 %v2265, %v2263
    %v2434 = vpack.c.b16 %v2268, %v2266
    %v2435 = vpack.c.b16 %v2269, %v2267
    %v2436 = vpack.c.b16 %v2272, %v2270
    %v2437 = vpack.c.b16 %v2273, %v2271
    %v2438 = vpack.c.b16 %v2276, %v2274
    %v2439 = vpack.c.b16 %v2277, %v2275
    %v2440 = vpack.c.b16 %v2280, %v2278
    %v2441 = vpack.c.b16 %v2281, %v2279
    %v2442 = vpack.c.b16 %v2284, %v2282
    %v2443 = vpack.c.b16 %v2285, %v2283
    %v2444 = vpack.c.b16 %v2288, %v2286
    %v2445 = vpack.c.b16 %v2289, %v2287
    %v2446 = vpack.c.b16 %v2292, %v2290
    %v2447 = vpack.c.b16 %v2293, %v2291
    %v2448 = vpack.c.b16 %v2296, %v2294
    %v2449 = vpack.c.b16 %v2297, %v2295
    %v2450 = vpack.c.b16 %v2300, %v2298
    %v2451 = vpack.c.b16 %v2301, %v2299
    %v2452 = vpack.c.b16 %v2304, %v2302
    %v2453 = vpack.c.b16 %v2305, %v2303
    %v2454 = vpack.c.b16 %v2308, %v2306
    %v2455 = vpack.c.b16 %v2309, %v2307
    %v2456 = vpack.c.b16 %v2312, %v2310
    %v2457 = vpack.c.b16 %v2313, %v2311
    %v2458 = vpack.c.b16 %v2316, %v2314
    %v2459 = vpack.c.b16 %v2317, %v2315
    %v2460 = vpack.c.b16 %v2320, %v2318
    %v2461 = vpack.c.b16 %v2321, %v2319
    %v2462 = vpack.c.b16 %v2324, %v2322
    %v2463 = vpack.c.b16 %v2325, %v2323
    %v2464 = vpack.c.b16 %v2328, %v2326
    %v2465 = vpack.c.b16 %v2329, %v2327
    %v2466 = vpack.c.b16 %v2332, %v2330
    %v2467 = vpack.c.b16 %v2333, %v2331
    %v2468 = vpack.c.b16 %v2336, %v2334
    %v2469 = vpack.c.b16 %v2337, %v2335
    %v2470 = vpack.c.b16 %v2340, %v2338
    %v2471 = vpack.c.b16 %v2341, %v2339
    %v2472 = vpack.c.b16 %v2344, %v2342
    %v2473 = vpack.c.b16 %v2345, %v2343
    %v2474 = vpack.c.b16 %v2348, %v2346
    %v2475 = vpack.c.b16 %v2349, %v2347
    %v2476 = vpack.c.b16 %v2352, %v2350
    %v2477 = vpack.c.b16 %v2353, %v2351
    %v2478 = vpack.c.b16 %v2356, %v2354
    %v2479 = vpack.c.b16 %v2357, %v2355
    %v2480 = vpack.c.b16 %v2360, %v2358
    %v2481 = vpack.c.b16 %v2361, %v2359
    %v2482 = vpack.c.b16 %v2364, %v2362
    %v2483 = vpack.c.b16 %v2365, %v2363
    %v2484 = vpack.c.b16 %v2368, %v2366
    %v2485 = vpack.c.b16 %v2369, %v2367
    %v2486 = vpack.c.b16 %v2372, %v2370
    %v2487 = vpack.c.b16 %v2373, %v2371
    %v2488 = vpack.c.b16 %v2376, %v2374
    %v2489 = vpack.c.b16 %v2377, %v2375
    %v2490 = vpack.c.b16 %v2380, %v2378
    %v2491 = vpack.c.b16 %v2381, %v2379
    %v2492 = vpack.c.b16 %v2384, %v2382
    %v2493 = vpack.c.b16 %v2385, %v2383
    %v2494 = vpack.c.b16 %v2388, %v2386
    %v2495 = vpack.c.b16 %v2389, %v2387
    %v2496 = vpack.c.b16 %v2392, %v2390
    %v2497 = vpack.c.b16 %v2393, %v2391
    %v2498 = vpack.c.b16 %v2396, %v2394
    %v2499 = vpack.c.b16 %v2397, %v2395
    %vm2600 = vcmask 343040
    %v2602 = vsel %vm2600, %v2072, 0
    %v2605 = vsel %vm2600, %v2079, 0
    %v2608 = vsel %vm1473, %v2498, 0
    %v2611 = vsel %vm1473, %v2499, 0
    %2613 = vmatprep.subr.bf16.mxu0 %v2413
    %2614 = vmatpush1.bf16.msra.mxu0 %v2412
    %2615 = vmatprep.subr.bf16.mxu0 %v2411
    %2616 = vmatpush1.bf16.msra.mxu0 %v2410
    %2617 = vmatprep.subr.bf16.mxu0 %v2409
    %2618 = vmatpush1.bf16.msra.mxu0 %v2408
    %2619 = vmatprep.subr.bf16.mxu0 %v2407
    %2620 = vmatpush1.bf16.msra.mxu0 %v2406
    %2621 = vmatprep.subr.bf16.mxu0 %v2405
    %2622 = vmatpush1.bf16.msra.mxu0 %v2404
    %2623 = vmatprep.subr.bf16.mxu0 %v2403
    %2624 = vmatpush1.bf16.msra.mxu0 %v2402
    %2625 = vmatprep.subr.bf16.mxu0 %v2401
    %2626 = vmatpush1.bf16.msra.mxu0 %v2400
    %2627 = vmatprep.subr.bf16.mxu0 %v2399
    %2628 = vmatpush1.bf16.msra.mxu0 %v2398
    %2629 = vmatprep.subr.bf16.mxu0 %v2429
    %2630 = vmatpush2.bf16.msra.mxu0 %v2428
    %2631 = vmatprep.subr.bf16.mxu0 %v2427
    %2632 = vmatpush2.bf16.msra.mxu0 %v2426
    %2633 = vmatprep.subr.bf16.mxu0 %v2425
    %2634 = vmatpush2.bf16.msra.mxu0 %v2424
    %2635 = vmatprep.subr.bf16.mxu0 %v2423
    %2636 = vmatpush2.bf16.msra.mxu0 %v2422
    %2637 = vmatprep.subr.bf16.mxu0 %v2421
    %2638 = vmatpush2.bf16.msra.mxu0 %v2420
    %2639 = vmatprep.subr.bf16.mxu0 %v2419
    %2640 = vmatpush2.bf16.msra.mxu0 %v2418
    %2641 = vmatprep.subr.bf16.mxu0 %v2417
    %2642 = vmatpush2.bf16.msra.mxu0 %v2416
    %2643 = vmatprep.subr.bf16.mxu0 %v2415
    %2644 = vmatpush2.bf16.msra.mxu0 %v2414
    %2645 = vmatprep.mubr.bf16.mxu0 %v2067
    %2646 = vmatmul.mubr.bf16.gmra.mxu0 %v2066
    %v2647 = vpop.f32.mrf.mxu0
    %v2648 = vadd.f32 0.0, %v2647
    %v2649 = vpop.f32.mrf.mxu0
    %v2650 = vadd.f32 0.0, %v2649
    %v2651 = vpop.f32.mrf.mxu0
    %v2652 = vadd.f32 0.0, %v2651
    %v2653 = vpop.f32.mrf.mxu0
    %v2654 = vadd.f32 0.0, %v2653
    %2655 = vmatprep.mubr.bf16.mxu0 %v2074
    %2656 = vmatmul.mubr.bf16.gmra.mxu0 %v2073
    %v2657 = vpop.f32.mrf.mxu0
    %v2658 = vadd.f32 0.0, %v2657
    %v2659 = vpop.f32.mrf.mxu0
    %v2660 = vadd.f32 0.0, %v2659
    %v2661 = vpop.f32.mrf.mxu0
    %v2662 = vpop.f32.mrf.mxu0
    %2663 = vdwg.mxu0
    %2664 = vmatprep.subr.bf16.mxu0 %v2445
    %2665 = vmatpush1.bf16.msra.mxu0 %v2444
    %2666 = vmatprep.subr.bf16.mxu0 %v2443
    %2667 = vmatpush1.bf16.msra.mxu0 %v2442
    %2668 = vmatprep.subr.bf16.mxu0 %v2441
    %2669 = vmatpush1.bf16.msra.mxu0 %v2440
    %2670 = vmatprep.subr.bf16.mxu0 %v2439
    %2671 = vmatpush1.bf16.msra.mxu0 %v2438
    %2672 = vmatprep.subr.bf16.mxu0 %v2437
    %2673 = vmatpush1.bf16.msra.mxu0 %v2436
    %2674 = vmatprep.subr.bf16.mxu0 %v2435
    %2675 = vmatpush1.bf16.msra.mxu0 %v2434
    %2676 = vmatprep.subr.bf16.mxu0 %v2433
    %2677 = vmatpush1.bf16.msra.mxu0 %v2432
    %2678 = vmatprep.subr.bf16.mxu0 %v2431
    %2679 = vmatpush1.bf16.msra.mxu0 %v2430
    %2680 = vmatprep.subr.bf16.mxu0 %v2461
    %2681 = vmatpush2.bf16.msra.mxu0 %v2460
    %2682 = vmatprep.subr.bf16.mxu0 %v2459
    %2683 = vmatpush2.bf16.msra.mxu0 %v2458
    %2684 = vmatprep.subr.bf16.mxu0 %v2457
    %2685 = vmatpush2.bf16.msra.mxu0 %v2456
    %2686 = vmatprep.subr.bf16.mxu0 %v2455
    %2687 = vmatpush2.bf16.msra.mxu0 %v2454
    %2688 = vmatprep.subr.bf16.mxu0 %v2453
    %2689 = vmatpush2.bf16.msra.mxu0 %v2452
    %2690 = vmatprep.subr.bf16.mxu0 %v2451
    %2691 = vmatpush2.bf16.msra.mxu0 %v2450
    %2692 = vmatprep.subr.bf16.mxu0 %v2449
    %2693 = vmatpush2.bf16.msra.mxu0 %v2448
    %2694 = vmatprep.subr.bf16.mxu0 %v2447
    %2695 = vmatpush2.bf16.msra.mxu0 %v2446
    %2696 = vmatprep.mubr.bf16.mxu0 %v2069
    %2697 = vmatmul.mubr.bf16.gmra.mxu0 %v2068
    %v2698 = vpop.f32.mrf.mxu0
    %v2699 = vadd.f32 %v2648, %v2698
    %v2700 = vpop.f32.mrf.mxu0
    %v2701 = vadd.f32 %v2650, %v2700
    %v2702 = vpop.f32.mrf.mxu0
    %v2703 = vadd.f32 %v2652, %v2702
    %v2704 = vpop.f32.mrf.mxu0
    %v2705 = vadd.f32 %v2654, %v2704
    %2706 = vmatprep.mubr.bf16.mxu0 %v2076
    %2707 = vmatmul.mubr.bf16.gmra.mxu0 %v2075
    %v2708 = vpop.f32.mrf.mxu0
    %v2709 = vadd.f32 %v2658, %v2708
    %v2710 = vpop.f32.mrf.mxu0
    %v2711 = vadd.f32 %v2660, %v2710
    %v2712 = vpop.f32.mrf.mxu0
    %v2713 = vpop.f32.mrf.mxu0
    %2714 = vdwg.mxu0
    %2715 = vmatprep.subr.bf16.mxu0 %v2477
    %2716 = vmatpush1.bf16.msra.mxu0 %v2476
    %2717 = vmatprep.subr.bf16.mxu0 %v2475
    %2718 = vmatpush1.bf16.msra.mxu0 %v2474
    %2719 = vmatprep.subr.bf16.mxu0 %v2473
    %2720 = vmatpush1.bf16.msra.mxu0 %v2472
    %2721 = vmatprep.subr.bf16.mxu0 %v2471
    %2722 = vmatpush1.bf16.msra.mxu0 %v2470
    %2723 = vmatprep.subr.bf16.mxu0 %v2469
    %2724 = vmatpush1.bf16.msra.mxu0 %v2468
    %2725 = vmatprep.subr.bf16.mxu0 %v2467
    %2726 = vmatpush1.bf16.msra.mxu0 %v2466
    %2727 = vmatprep.subr.bf16.mxu0 %v2465
    %2728 = vmatpush1.bf16.msra.mxu0 %v2464
    %2729 = vmatprep.subr.bf16.mxu0 %v2463
    %2730 = vmatpush1.bf16.msra.mxu0 %v2462
    %2731 = vmatprep.subr.bf16.mxu0 %v2493
    %2732 = vmatpush2.bf16.msra.mxu0 %v2492
    %2733 = vmatprep.subr.bf16.mxu0 %v2491
    %2734 = vmatpush2.bf16.msra.mxu0 %v2490
    %2735 = vmatprep.subr.bf16.mxu0 %v2489
    %2736 = vmatpush2.bf16.msra.mxu0 %v2488
    %2737 = vmatprep.subr.bf16.mxu0 %v2487
    %2738 = vmatpush2.bf16.msra.mxu0 %v2486
    %2739 = vmatprep.subr.bf16.mxu0 %v2485
    %2740 = vmatpush2.bf16.msra.mxu0 %v2484
    %2741 = vmatprep.subr.bf16.mxu0 %v2483
    %2742 = vmatpush2.bf16.msra.mxu0 %v2482
    %2743 = vmatprep.subr.bf16.mxu0 %v2481
    %2744 = vmatpush2.bf16.msra.mxu0 %v2480
    %2745 = vmatprep.subr.bf16.mxu0 %v2479
    %2746 = vmatpush2.bf16.msra.mxu0 %v2478
    %2747 = vmatprep.mubr.bf16.mxu0 %v2071
    %2748 = vmatmul.mubr.bf16.gmra.mxu0 %v2070
    %v2749 = vpop.f32.mrf.mxu0
    %v2750 = vadd.f32 %v2699, %v2749
    %v2751 = vpop.f32.mrf.mxu0
    %v2752 = vadd.f32 %v2701, %v2751
    %v2753 = vpop.f32.mrf.mxu0
    %v2754 = vadd.f32 %v2703, %v2753
    %v2755 = vpop.f32.mrf.mxu0
    %v2756 = vadd.f32 %v2705, %v2755
    %2757 = vmatprep.mubr.bf16.mxu0 %v2078
    %2758 = vmatmul.mubr.bf16.gmra.mxu0 %v2077
    %v2759 = vpop.f32.mrf.mxu0
    %v2760 = vadd.f32 %v2709, %v2759
    %v2761 = vpop.f32.mrf.mxu0
    %v2762 = vadd.f32 %v2711, %v2761
    %v2763 = vpop.f32.mrf.mxu0
    %v2764 = vpop.f32.mrf.mxu0
    %2765 = vdwg.mxu0
    %2766 = vmatprep.subr.bf16.mxu0 0
    %2767 = vmatpush1.bf16.msra.mxu0 0
    %2768 = vmatprep.subr.bf16.mxu0 0
    %2769 = vmatpush1.bf16.msra.mxu0 0
    %2770 = vmatprep.subr.bf16.mxu0 0
    %2771 = vmatpush1.bf16.msra.mxu0 0
    %2772 = vmatprep.subr.bf16.mxu0 0
    %2773 = vmatpush1.bf16.msra.mxu0 0
    %2774 = vmatprep.subr.bf16.mxu0 0
    %2775 = vmatpush1.bf16.msra.mxu0 0
    %2776 = vmatprep.subr.bf16.mxu0 %v2611
    %2777 = vmatpush1.bf16.msra.mxu0 %v2608
    %2778 = vmatprep.subr.bf16.mxu0 %v2497
    %2779 = vmatpush1.bf16.msra.mxu0 %v2496
    %2780 = vmatprep.subr.bf16.mxu0 %v2495
    %2781 = vmatpush1.bf16.msra.mxu0 %v2494
    %2782 = vmatprep.subr.bf16.mxu0 0
    %2783 = vmatpush2.bf16.msra.mxu0 0
    %2784 = vmatprep.subr.bf16.mxu0 0
    %2785 = vmatpush2.bf16.msra.mxu0 0
    %2786 = vmatprep.subr.bf16.mxu0 0
    %2787 = vmatpush2.bf16.msra.mxu0 0
    %2788 = vmatprep.subr.bf16.mxu0 0
    %2789 = vmatpush2.bf16.msra.mxu0 0
    %2790 = vmatprep.subr.bf16.mxu0 0
    %2791 = vmatpush2.bf16.msra.mxu0 0
    %2792 = vmatprep.subr.bf16.mxu0 0
    %2793 = vmatpush2.bf16.msra.mxu0 0
    %2794 = vmatprep.subr.bf16.mxu0 0
    %2795 = vmatpush2.bf16.msra.mxu0 0
    %2796 = vmatprep.subr.bf16.mxu0 0
    %2797 = vmatpush2.bf16.msra.mxu0 0
    %2798 = vmatprep.mubr.bf16.mxu0 0
    %2799 = vmatmul.mubr.bf16.gmra.mxu0 %v2602
    %v2800 = vpop.f32.mrf.mxu0
    %v2801 = vadd.f32 %v2750, %v2800
    %v2802 = vpop.f32.mrf.mxu0
    %v2803 = vadd.f32 %v2752, %v2802
    %v2804 = vpop.f32.mrf.mxu0
    %v2805 = vadd.f32 %v2754, %v2804
    %v2806 = vpop.f32.mrf.mxu0
    %v2807 = vadd.f32 %v2756, %v2806
    %2808 = vmatprep.mubr.bf16.mxu0 0
    %2809 = vmatmul.mubr.bf16.gmra.mxu0 %v2605
    %v2810 = vpop.f32.mrf.mxu0
    %v2811 = vadd.f32 %v2760, %v2810
    %v2812 = vpop.f32.mrf.mxu0
    %v2813 = vadd.f32 %v2762, %v2812
    %v2814 = vpop.f32.mrf.mxu0
    %v2815 = vpop.f32.mrf.mxu0
    %2816 = vdwg.mxu0
    %v2817 = vmul.f32 %v2801, %v1587
    %v2818 = vmul.f32 %v2803, %v1587
    %v2819 = vmul.f32 %v2805, %v1588
    %v2820 = vmul.f32 %v2807, %v1588
    %v2821 = vmul.f32 %v2811, %v1589
    %v2822 = vmul.f32 %v2813, %v1589
    %v2823 = vadd.f32 %v2817, %v2819
    %v2824 = vadd.f32 %v2823, %v2821
    %v2825 = vrot.slane %v2824, 4
    %v2826 = vadd.f32 %v2824, %v2825
    %v2827 = vrot.slane %v2826, 2
    %v2828 = vadd.f32 %v2826, %v2827
    %v2829 = vrot.slane %v2828, 1
    %v2830 = vadd.f32 %v2828, %v2829
    %v2831 = vsel %vm770, %v2818, 0.0
    %v2832 = vsel %vm770, %v2820, 0.0
    %v2833 = vadd.f32 %v2831, %v2832
    %v2834 = vsel %vm770, %v2822, 0.0
    %v2835 = vadd.f32 %v2833, %v2834
    %v2836 = vrot.slane %v2835, 4
    %v2837 = vadd.f32 %v2835, %v2836
    %v2838 = vrot.slane %v2837, 2
    %v2839 = vadd.f32 %v2837, %v2838
    %v2840 = vrot.slane %v2839, 1
    %v2841 = vadd.f32 %v2839, %v2840
    %v2842 = vmul.f32 %v2817, %v2801
    %v2843 = vmul.f32 %v2818, %v2803
    %v2844 = vmul.f32 %v2819, %v2805
    %v2845 = vmul.f32 %v2820, %v2807
    %v2846 = vmul.f32 %v2821, %v2811
    %v2847 = vmul.f32 %v2822, %v2813
    %v2848 = vadd.f32 %v2842, %v2844
    %v2849 = vadd.f32 %v2848, %v2846
    %v2850 = vrot.slane %v2849, 4
    %v2851 = vadd.f32 %v2849, %v2850
    %v2852 = vrot.slane %v2851, 2
    %v2853 = vadd.f32 %v2851, %v2852
    %v2854 = vrot.slane %v2853, 1
    %v2855 = vadd.f32 %v2853, %v2854
    %v2856 = vsel %vm770, %v2843, 0.0
    %v2857 = vsel %vm770, %v2845, 0.0
    %v2858 = vadd.f32 %v2856, %v2857
    %v2859 = vsel %vm770, %v2847, 0.0
    %v2860 = vadd.f32 %v2858, %v2859
    %v2861 = vrot.slane %v2860, 4
    %v2862 = vadd.f32 %v2860, %v2861
    %v2863 = vrot.slane %v2862, 2
    %v2864 = vadd.f32 %v2862, %v2863
    %v2865 = vrot.slane %v2864, 1
    %v2866 = vadd.f32 %v2864, %v2865
    %v2868 = vsel %vm770, %v2841, 0
    %2870 = vmatprep.subr.mxu0 0.0
    %2871 = vmatpush1.msra.mxu0 %v1705
    %2872 = vmatprep.subr.mxu0 0.0
    %2873 = vmatpush1.msra.mxu0 %v1704
    %2874 = vmatprep.subr.mxu0 0.0
    %2875 = vmatpush1.msra.mxu0 %v1703
    %2876 = vmatprep.subr.mxu0 0.0
    %2877 = vmatpush1.msra.mxu0 %v1702
    %2878 = vmatprep.subr.mxu0 0.0
    %2879 = vmatpush1.msra.mxu0 %v1701
    %2880 = vmatprep.subr.mxu0 0.0
    %2881 = vmatpush1.msra.mxu0 %v1700
    %2882 = vmatprep.subr.mxu0 0.0
    %2883 = vmatpush1.msra.mxu0 %v1699
    %2884 = vmatprep.subr.mxu0 0.0
    %2885 = vmatpush1.msra.mxu0 %v1698
    %2886 = vmatprep.subr.mxu0 0.0
    %2887 = vmatpush1.msra.mxu0 %v1697
    %2888 = vmatprep.subr.mxu0 0.0
    %2889 = vmatpush1.msra.mxu0 %v1696
    %2890 = vmatprep.subr.mxu0 0.0
    %2891 = vmatpush1.msra.mxu0 %v1695
    %2892 = vmatprep.subr.mxu0 0.0
    %2893 = vmatpush1.msra.mxu0 %v1694
    %2894 = vmatprep.subr.mxu0 0.0
    %2895 = vmatpush1.msra.mxu0 %v1693
    %2896 = vmatprep.subr.mxu0 0.0
    %2897 = vmatpush1.msra.mxu0 %v1692
    %2898 = vmatprep.subr.mxu0 0.0
    %2899 = vmatpush1.msra.mxu0 %v1691
    %2900 = vmatprep.subr.mxu0 0.0
    %2901 = vmatpush1.msra.mxu0 %v1690
    %2902 = vmatprep.subr.mxu0 0.0
    %2903 = vmatpush2.msra.mxu0 0.0
    %2904 = vmatprep.subr.mxu0 0.0
    %2905 = vmatpush2.msra.mxu0 0.0
    %2906 = vmatprep.subr.mxu0 0.0
    %2907 = vmatpush2.msra.mxu0 0.0
    %2908 = vmatprep.subr.mxu0 0.0
    %2909 = vmatpush2.msra.mxu0 0.0
    %2910 = vmatprep.subr.mxu0 0.0
    %2911 = vmatpush2.msra.mxu0 0.0
    %2912 = vmatprep.subr.mxu0 0.0
    %2913 = vmatpush2.msra.mxu0 0.0
    %2914 = vmatprep.subr.mxu0 0.0
    %2915 = vmatpush2.msra.mxu0 0.0
    %2916 = vmatprep.subr.mxu0 0.0
    %2917 = vmatpush2.msra.mxu0 0.0
    %2918 = vmatprep.subr.mxu0 0.0
    %2919 = vmatpush2.msra.mxu0 0.0
    %2920 = vmatprep.subr.mxu0 0.0
    %2921 = vmatpush2.msra.mxu0 0.0
    %2922 = vmatprep.subr.mxu0 0.0
    %2923 = vmatpush2.msra.mxu0 0.0
    %2924 = vmatprep.subr.mxu0 0.0
    %2925 = vmatpush2.msra.mxu0 0.0
    %2926 = vmatprep.subr.mxu0 0.0
    %2927 = vmatpush2.msra.mxu0 %v1709
    %2928 = vmatprep.subr.mxu0 0.0
    %2929 = vmatpush2.msra.mxu0 %v1708
    %2930 = vmatprep.subr.mxu0 0.0
    %2931 = vmatpush2.msra.mxu0 %v1707
    %2932 = vmatprep.subr.mxu0 0.0
    %2933 = vmatpush2.msra.mxu0 %v1706
    %2934 = vmatprep.mubr.f32.mxu0 %v2868
    %2935 = vmatmul.mubr.f32.gmra.mxu0 %v2830
    %v2936 = vpop.f32.mrf.mxu0
    %v2937 = vadd.f32 0.0, %v2936
    %v2938 = vpop.f32.mrf.mxu0
    %2939 = vdwg.mxu0
    %v2941 = vsel %vm770, %v2866, 0
    %2943 = vmatprep.subr.mxu0 0.0
    %2944 = vmatpush1.msra.mxu0 %v1705
    %2945 = vmatprep.subr.mxu0 0.0
    %2946 = vmatpush1.msra.mxu0 %v1704
    %2947 = vmatprep.subr.mxu0 0.0
    %2948 = vmatpush1.msra.mxu0 %v1703
    %2949 = vmatprep.subr.mxu0 0.0
    %2950 = vmatpush1.msra.mxu0 %v1702
    %2951 = vmatprep.subr.mxu0 0.0
    %2952 = vmatpush1.msra.mxu0 %v1701
    %2953 = vmatprep.subr.mxu0 0.0
    %2954 = vmatpush1.msra.mxu0 %v1700
    %2955 = vmatprep.subr.mxu0 0.0
    %2956 = vmatpush1.msra.mxu0 %v1699
    %2957 = vmatprep.subr.mxu0 0.0
    %2958 = vmatpush1.msra.mxu0 %v1698
    %2959 = vmatprep.subr.mxu0 0.0
    %2960 = vmatpush1.msra.mxu0 %v1697
    %2961 = vmatprep.subr.mxu0 0.0
    %2962 = vmatpush1.msra.mxu0 %v1696
    %2963 = vmatprep.subr.mxu0 0.0
    %2964 = vmatpush1.msra.mxu0 %v1695
    %2965 = vmatprep.subr.mxu0 0.0
    %2966 = vmatpush1.msra.mxu0 %v1694
    %2967 = vmatprep.subr.mxu0 0.0
    %2968 = vmatpush1.msra.mxu0 %v1693
    %2969 = vmatprep.subr.mxu0 0.0
    %2970 = vmatpush1.msra.mxu0 %v1692
    %2971 = vmatprep.subr.mxu0 0.0
    %2972 = vmatpush1.msra.mxu0 %v1691
    %2973 = vmatprep.subr.mxu0 0.0
    %2974 = vmatpush1.msra.mxu0 %v1690
    %2975 = vmatprep.subr.mxu0 0.0
    %2976 = vmatpush2.msra.mxu0 0.0
    %2977 = vmatprep.subr.mxu0 0.0
    %2978 = vmatpush2.msra.mxu0 0.0
    %2979 = vmatprep.subr.mxu0 0.0
    %2980 = vmatpush2.msra.mxu0 0.0
    %2981 = vmatprep.subr.mxu0 0.0
    %2982 = vmatpush2.msra.mxu0 0.0
    %2983 = vmatprep.subr.mxu0 0.0
    %2984 = vmatpush2.msra.mxu0 0.0
    %2985 = vmatprep.subr.mxu0 0.0
    %2986 = vmatpush2.msra.mxu0 0.0
    %2987 = vmatprep.subr.mxu0 0.0
    %2988 = vmatpush2.msra.mxu0 0.0
    %2989 = vmatprep.subr.mxu0 0.0
    %2990 = vmatpush2.msra.mxu0 0.0
    %2991 = vmatprep.subr.mxu0 0.0
    %2992 = vmatpush2.msra.mxu0 0.0
    %2993 = vmatprep.subr.mxu0 0.0
    %2994 = vmatpush2.msra.mxu0 0.0
    %2995 = vmatprep.subr.mxu0 0.0
    %2996 = vmatpush2.msra.mxu0 0.0
    %2997 = vmatprep.subr.mxu0 0.0
    %2998 = vmatpush2.msra.mxu0 0.0
    %2999 = vmatprep.subr.mxu0 0.0
    %3000 = vmatpush2.msra.mxu0 %v1709
    %3001 = vmatprep.subr.mxu0 0.0
    %3002 = vmatpush2.msra.mxu0 %v1708
    %3003 = vmatprep.subr.mxu0 0.0
    %3004 = vmatpush2.msra.mxu0 %v1707
    %3005 = vmatprep.subr.mxu0 0.0
    %3006 = vmatpush2.msra.mxu0 %v1706
    %3007 = vmatprep.mubr.f32.mxu0 %v2941
    %3008 = vmatmul.mubr.f32.gmra.mxu0 %v2855
    %v3009 = vpop.f32.mrf.mxu0
    %v3010 = vadd.f32 0.0, %v3009
    %v3011 = vpop.f32.mrf.mxu0
    %3012 = vdwg.mxu0
    %v3013 = vmul.f32 %v2937, 0.005
    %v3014 = vmul.f32 %v3010, 0.005
    %v3015 = vmul.f32 %v3013, %v3013
    %v3016 = vsub.f32 %v3014, %v3015
    %v3017 = vmax.f32 %v3016, 0.0
    %v3018 = vadd.f32 %v3017, 1e-05
    %v3019 = vrsqrt.pop %v3018
    %v3021 = vrot.slane %v3019, 6
    %v3023 = vmul.f32 %v28, %v3021
    %v3025 = vrot.slane %v3023, 2
    %v3027 = vmul.f32 %v3013, %v3025
    %v3029 = vrot.slane %v3027, 5
    %v3031 = vsub.f32 %v28, %v3029
    %vm3032 = vcmask 130048
    %v3033 = vsel %vm3032, %v3025, 0
    %3035 = vmatprep.subr.mxu0 0.0
    %3036 = vmatpush1.msra.mxu0 0.0
    %3037 = vmatprep.subr.mxu0 0.0
    %3038 = vmatpush1.msra.mxu0 0.0
    %3039 = vmatprep.subr.mxu0 0.0
    %3040 = vmatpush1.msra.mxu0 0.0
    %3041 = vmatprep.subr.mxu0 0.0
    %3042 = vmatpush1.msra.mxu0 0.0
    %3043 = vmatprep.subr.mxu0 0.0
    %3044 = vmatpush1.msra.mxu0 0.0
    %3045 = vmatprep.subr.mxu0 0.0
    %3046 = vmatpush1.msra.mxu0 0.0
    %3047 = vmatprep.subr.mxu0 0.0
    %3048 = vmatpush1.msra.mxu0 0.0
    %3049 = vmatprep.subr.mxu0 0.0
    %3050 = vmatpush1.msra.mxu0 0.0
    %3051 = vmatprep.subr.mxu0 0.0
    %3052 = vmatpush1.msra.mxu0 0.0
    %3053 = vmatprep.subr.mxu0 0.0
    %3054 = vmatpush1.msra.mxu0 0.0
    %3055 = vmatprep.subr.mxu0 0.0
    %3056 = vmatpush1.msra.mxu0 0.0
    %3057 = vmatprep.subr.mxu0 0.0
    %3058 = vmatpush1.msra.mxu0 0.0
    %3059 = vmatprep.subr.mxu0 0.0
    %3060 = vmatpush1.msra.mxu0 0.0
    %3061 = vmatprep.subr.mxu0 0.0
    %3062 = vmatpush1.msra.mxu0 0.0
    %3063 = vmatprep.subr.mxu0 %v1725
    %3064 = vmatpush1.msra.mxu0 %v1724
    %3065 = vmatprep.subr.mxu0 %v1723
    %3066 = vmatpush1.msra.mxu0 %v1722
    %3067 = vmatprep.subr.mxu0 0.0
    %3068 = vmatpush2.msra.mxu0 0.0
    %3069 = vmatprep.subr.mxu0 0.0
    %3070 = vmatpush2.msra.mxu0 0.0
    %3071 = vmatprep.subr.mxu0 0.0
    %3072 = vmatpush2.msra.mxu0 0.0
    %3073 = vmatprep.subr.mxu0 0.0
    %3074 = vmatpush2.msra.mxu0 0.0
    %3075 = vmatprep.subr.mxu0 0.0
    %3076 = vmatpush2.msra.mxu0 0.0
    %3077 = vmatprep.subr.mxu0 0.0
    %3078 = vmatpush2.msra.mxu0 0.0
    %3079 = vmatprep.subr.mxu0 0.0
    %3080 = vmatpush2.msra.mxu0 0.0
    %3081 = vmatprep.subr.mxu0 0.0
    %3082 = vmatpush2.msra.mxu0 0.0
    %3083 = vmatprep.subr.mxu0 0.0
    %3084 = vmatpush2.msra.mxu0 0.0
    %3085 = vmatprep.subr.mxu0 0.0
    %3086 = vmatpush2.msra.mxu0 0.0
    %3087 = vmatprep.subr.mxu0 0.0
    %3088 = vmatpush2.msra.mxu0 0.0
    %3089 = vmatprep.subr.mxu0 0.0
    %3090 = vmatpush2.msra.mxu0 0.0
    %3091 = vmatprep.subr.mxu0 0.0
    %3092 = vmatpush2.msra.mxu0 0.0
    %3093 = vmatprep.subr.mxu0 0.0
    %3094 = vmatpush2.msra.mxu0 0.0
    %3095 = vmatprep.subr.mxu0 0.0
    %3096 = vmatpush2.msra.mxu0 0.0
    %3097 = vmatprep.subr.mxu0 0.0
    %3098 = vmatpush2.msra.mxu0 0.0
    %3099 = vmatprep.mubr.f32.mxu0 0.0
    %3100 = vmatmul.mubr.f32.gmra.mxu0 %v3033
    %v3101 = vpop.f32.mrf.mxu0
    %v3102 = vadd.f32 0.0, %v3101
    %v3103 = vpop.f32.mrf.mxu0
    %v3104 = vadd.f32 0.0, %v3103
    %3105 = vdwg.mxu0
    %v3107 = vrot.slane %v3031, 3
    %v3108 = vsel %vm3032, %v3107, 0
    %3110 = vmatprep.subr.mxu0 0.0
    %3111 = vmatpush1.msra.mxu0 0.0
    %3112 = vmatprep.subr.mxu0 0.0
    %3113 = vmatpush1.msra.mxu0 0.0
    %3114 = vmatprep.subr.mxu0 0.0
    %3115 = vmatpush1.msra.mxu0 0.0
    %3116 = vmatprep.subr.mxu0 0.0
    %3117 = vmatpush1.msra.mxu0 0.0
    %3118 = vmatprep.subr.mxu0 0.0
    %3119 = vmatpush1.msra.mxu0 0.0
    %3120 = vmatprep.subr.mxu0 0.0
    %3121 = vmatpush1.msra.mxu0 0.0
    %3122 = vmatprep.subr.mxu0 0.0
    %3123 = vmatpush1.msra.mxu0 0.0
    %3124 = vmatprep.subr.mxu0 0.0
    %3125 = vmatpush1.msra.mxu0 0.0
    %3126 = vmatprep.subr.mxu0 0.0
    %3127 = vmatpush1.msra.mxu0 0.0
    %3128 = vmatprep.subr.mxu0 0.0
    %3129 = vmatpush1.msra.mxu0 0.0
    %3130 = vmatprep.subr.mxu0 0.0
    %3131 = vmatpush1.msra.mxu0 0.0
    %3132 = vmatprep.subr.mxu0 0.0
    %3133 = vmatpush1.msra.mxu0 0.0
    %3134 = vmatprep.subr.mxu0 0.0
    %3135 = vmatpush1.msra.mxu0 0.0
    %3136 = vmatprep.subr.mxu0 0.0
    %3137 = vmatpush1.msra.mxu0 0.0
    %3138 = vmatprep.subr.mxu0 %v1725
    %3139 = vmatpush1.msra.mxu0 %v1724
    %3140 = vmatprep.subr.mxu0 %v1723
    %3141 = vmatpush1.msra.mxu0 %v1722
    %3142 = vmatprep.subr.mxu0 0.0
    %3143 = vmatpush2.msra.mxu0 0.0
    %3144 = vmatprep.subr.mxu0 0.0
    %3145 = vmatpush2.msra.mxu0 0.0
    %3146 = vmatprep.subr.mxu0 0.0
    %3147 = vmatpush2.msra.mxu0 0.0
    %3148 = vmatprep.subr.mxu0 0.0
    %3149 = vmatpush2.msra.mxu0 0.0
    %3150 = vmatprep.subr.mxu0 0.0
    %3151 = vmatpush2.msra.mxu0 0.0
    %3152 = vmatprep.subr.mxu0 0.0
    %3153 = vmatpush2.msra.mxu0 0.0
    %3154 = vmatprep.subr.mxu0 0.0
    %3155 = vmatpush2.msra.mxu0 0.0
    %3156 = vmatprep.subr.mxu0 0.0
    %3157 = vmatpush2.msra.mxu0 0.0
    %3158 = vmatprep.subr.mxu0 0.0
    %3159 = vmatpush2.msra.mxu0 0.0
    %3160 = vmatprep.subr.mxu0 0.0
    %3161 = vmatpush2.msra.mxu0 0.0
    %3162 = vmatprep.subr.mxu0 0.0
    %3163 = vmatpush2.msra.mxu0 0.0
    %3164 = vmatprep.subr.mxu0 0.0
    %3165 = vmatpush2.msra.mxu0 0.0
    %3166 = vmatprep.subr.mxu0 0.0
    %3167 = vmatpush2.msra.mxu0 0.0
    %3168 = vmatprep.subr.mxu0 0.0
    %3169 = vmatpush2.msra.mxu0 0.0
    %3170 = vmatprep.subr.mxu0 0.0
    %3171 = vmatpush2.msra.mxu0 0.0
    %3172 = vmatprep.subr.mxu0 0.0
    %3173 = vmatpush2.msra.mxu0 0.0
    %3174 = vmatprep.mubr.f32.mxu0 0.0
    %3175 = vmatmul.mubr.f32.gmra.mxu0 %v3108
    %v3176 = vpop.f32.mrf.mxu0
    %v3177 = vadd.f32 0.0, %v3176
    %v3178 = vpop.f32.mrf.mxu0
    %v3179 = vadd.f32 0.0, %v3178
    %3180 = vdwg.mxu0
    %v3181 = vlaneseq
    %v3182 = vshrl.u32 %v3181, 7
    %v3183 = vsub.s32 0, %v3182
    %v3184 = vrot.slane %v3102, %v3183
    %v3185 = vlaneseq
    %v3186 = vshrl.u32 %v3185, 7
    %v3187 = vsub.s32 0, %v3186
    %v3188 = vrot.slane %v3104, %v3187
    %v3189 = vmul.f32 %v2801, %v3184
    %v3190 = vmul.f32 %v2803, %v3188
    %v3191 = vmul.f32 %v2805, %v3184
    %v3192 = vmul.f32 %v2807, %v3188
    %v3193 = vmul.f32 %v2811, %v3184
    %v3194 = vmul.f32 %v2813, %v3188
    %v3195 = vlaneseq
    %v3196 = vshrl.u32 %v3195, 7
    %v3197 = vsub.s32 0, %v3196
    %v3198 = vrot.slane %v3177, %v3197
    %v3199 = vlaneseq
    %v3200 = vshrl.u32 %v3199, 7
    %v3201 = vsub.s32 0, %v3200
    %v3202 = vrot.slane %v3179, %v3201
    %v3203 = vadd.f32 %v3189, %v3198
    %v3204 = vadd.f32 %v3190, %v3202
    %v3205 = vadd.f32 %v3191, %v3198
    %v3206 = vadd.f32 %v3192, %v3202
    %v3207 = vadd.f32 %v3193, %v3198
    %v3208 = vadd.f32 %v3194, %v3202
    %v3209 = vmax.f32 %v3203, 0.0
    %v3210 = vmax.f32 %v3204, 0.0
    %v3211 = vmax.f32 %v3205, 0.0
    %v3212 = vmax.f32 %v3206, 0.0
    %v3213 = vmax.f32 %v3207, 0.0
    %v3214 = vmax.f32 %v3208, 0.0
    %v3215 = vmul.f32 %v54, 0.2
    %v3216 = vmul.f32 %v55, 0.2
    %v3217 = vcvt.f32.s32.to.zero.pseudo %v3215
    %v3218 = vcvt.f32.s32.to.zero.pseudo %v3216
    %v3219 = vmul.u32 %v3217, 14
    %v3220 = vmul.u32 %v3218, 14
    %v3221 = vmul.u32 %v3217, 5
    %v3222 = vmul.u32 %v3218, 5
    %v3223 = vsub.s32 %v38, %v3221
    %v3224 = vsub.s32 %v39, %v3222
    %v3225 = vmul.u32 %v3223, 2
    %v3226 = vmul.u32 %v3224, 2
    %v3227 = vadd.s32 %v3219, %v3225
    %v3228 = vadd.s32 %v3220, %v3226
    %vm3229 = vcmp.eq.s32.totalorder %v124, %v3227
    %vm3230 = vcmp.eq.s32.totalorder %v124, %v3228
    %v3231 = vsel %vm3229, 1.0, 0.0
    %v3232 = vsel %vm3230, 1.0, 0.0
    %v3233 = vpack.c.bf16 %v3232, %v3231
    %v3240 = vrot.slane %v3209, 1
    %v3241 = vrot.slane %v3211, 1
    %v3242 = vsel %vm1395, %v3240, %v3241
    %v3243 = vrot.slane %v3210, 1
    %v3244 = vrot.slane %v3212, 1
    %v3245 = vsel %vm1395, %v3243, %v3244
    %v3246 = vrot.slane %v3213, 1
    %v3247 = vsel %vm1395, %v3241, %v3246
    %v3248 = vrot.slane %v3214, 1
    %v3249 = vsel %vm1395, %v3244, %v3248
    %v3256 = vmax.f32 %v3209, %v3242
    %v3257 = vmax.f32 %v3210, %v3245
    %v3258 = vmax.f32 %v3211, %v3247
    %v3259 = vmax.f32 %v3212, %v3249
    %v3260 = vmax.f32 %v3213, %v3246
    %v3261 = vmax.f32 %v3214, %v3248
    %v3262 = vpack.c.bf16 %v3258, %v3256
    %v3263 = vpack.c.bf16 %v3259, %v3257
    %v3264 = vpack.c.bf16 %v3260, %v3260
    %v3265 = vpack.c.bf16 %v3261, %v3261
    %vm3266 = vcmask 187392
    %v3268 = vsel %vm3266, %v3233, 0
    %vm3270 = vcmask 1042432
    %v3271 = vsel %vm3270, 4294967295, 65535
    %v3272 = vsel %vm878, %v3271, 0
    %v3274 = vand.u32 %v3264, %v3272
    %v3277 = vand.u32 %v3265, %v3272
    %3279 = vmatprep.subr.bf16.mxu0 0
    %3280 = vmatpush1.bf16.msra.mxu0 0
    %3281 = vmatprep.subr.bf16.mxu0 0
    %3282 = vmatpush1.bf16.msra.mxu0 0
    %3283 = vmatprep.subr.bf16.mxu0 0
    %3284 = vmatpush1.bf16.msra.mxu0 0
    %3285 = vmatprep.subr.bf16.mxu0 0
    %3286 = vmatpush1.bf16.msra.mxu0 0
    %3287 = vmatprep.subr.bf16.mxu0 0
    %3288 = vmatpush1.bf16.msra.mxu0 0
    %3289 = vmatprep.subr.bf16.mxu0 0
    %3290 = vmatpush1.bf16.msra.mxu0 0
    %3291 = vmatprep.subr.bf16.mxu0 %v3277
    %3292 = vmatpush1.bf16.msra.mxu0 %v3274
    %3293 = vmatprep.subr.bf16.mxu0 %v3263
    %3294 = vmatpush1.bf16.msra.mxu0 %v3262
    %3295 = vmatprep.subr.bf16.mxu0 0
    %3296 = vmatpush2.bf16.msra.mxu0 0
    %3297 = vmatprep.subr.bf16.mxu0 0
    %3298 = vmatpush2.bf16.msra.mxu0 0
    %3299 = vmatprep.subr.bf16.mxu0 0
    %3300 = vmatpush2.bf16.msra.mxu0 0
    %3301 = vmatprep.subr.bf16.mxu0 0
    %3302 = vmatpush2.bf16.msra.mxu0 0
    %3303 = vmatprep.subr.bf16.mxu0 0
    %3304 = vmatpush2.bf16.msra.mxu0 0
    %3305 = vmatprep.subr.bf16.mxu0 0
    %3306 = vmatpush2.bf16.msra.mxu0 0
    %3307 = vmatprep.subr.bf16.mxu0 0
    %3308 = vmatpush2.bf16.msra.mxu0 0
    %3309 = vmatprep.subr.bf16.mxu0 0
    %3310 = vmatpush2.bf16.msra.mxu0 0
    %3311 = vmatprep.mubr.bf16.mxu0 0
    %3312 = vmatmul.mubr.bf16.gmra.mxu0 %v3268
    %v3313 = vpop.f32.mrf.mxu0
    %v3314 = vadd.f32 0.0, %v3313
    %v3315 = vpop.f32.mrf.mxu0
    %v3316 = vadd.f32 0.0, %v3315
    %v3317 = vpop.f32.mrf.mxu0
    %v3318 = vadd.f32 0.0, %v3317
    %v3319 = vpop.f32.mrf.mxu0
    %v3320 = vadd.f32 0.0, %v3319
    %3321 = vdwg.mxu0
    %3326 = vrot.lane.b32.xlu0 %v3314, 112
    %v3327 = vpop.permute.xlu0 %3326
    %3328 = vrot.lane.b32.xlu0 %v3316, 112
    %v3329 = vpop.permute.xlu0 %3328
    %3330 = vrot.lane.b32.xlu0 %v3318, 112
    %v3331 = vpop.permute.xlu0 %3330
    %3332 = vrot.lane.b32.xlu0 %v3320, 112
    %v3333 = vpop.permute.xlu0 %3332
    %vm3334 = vcmask 916480
    %v3335 = vsel %vm3334, %v3327, %v3329
    %v3336 = vsel %vm3334, %v3331, %v3333
    %v3341 = vmax.f32 %v3314, %v3335
    %v3342 = vmax.f32 %v3316, %v3329
    %v3343 = vmax.f32 %v3318, %v3336
    %v3344 = vmax.f32 %v3320, %v3333
    %v3345 = vpack.c.bf16 %v3343, %v3341
    %v3346 = vpack.c.bf16 %v3344, %v3342
    %vm3347 = vcmp.lt.s32.totalorder %v3223, 1
    %v3348 = vsel %vm3347, 1.0, 0.0
    %v3351 = vunpack.c.l.b16 %v3345
    %v3352 = vunpack.c.l.b16 %v3346
    %v3353 = vpack.c.b16 %v3352, %v3351
    %vm3355 = vcmask 129028
    %vm3356 = vmor %vm3355, %vm3270
    %3357 = vst.msk [vmem:[#allocation4] sm:$0x77] %vm3356, %v3353
    %v3359 = vshrl.u32 %v3353, 16
    %v3361 = vrot.slane %v3359, 4
    %v3362 = vshll.u32 %v3353, 16
    %v3364 = vrot.slane %v3362, 5
    %v3365 = vor.u32 %v3361, %v3364
    %v3366 = vrot.slane %v3365, 4
    %3367 = vrot.lane.b32.xlu0 %v3366, 16
    %v3368 = vpop.permute.xlu0 %3367
    %v3369 = vrot.slane %v3368, 4
    %vm3370 = vcmask 130048
    %v3371 = vsel %vm3370, %v3369, %v3368
    %vm3373 = vcmask 1042560
    %vm3374 = vcmask 260100
    %vm3375 = vmor %vm3374, %vm3373
    %3376 = vst.msk [vmem:[#allocation4 + $0x4] sm:$0x77] %vm3375, %v3371
    %v3377 = vrot.slane %v3353, 5
    %v3378 = vrot.slane %v3377, 4
    %3379 = vrot.lane.b32.xlu0 %v3378, 32
    %v3380 = vpop.permute.xlu0 %3379
    %v3381 = vrot.slane %v3380, 4
    %vm3382 = vcmask 261120
    %v3383 = vsel %vm3382, %v3381, %v3380
    %vm3385 = vcmask 1042688
    %vm3386 = vcmask 391172
    %vm3387 = vmor %vm3386, %vm3385
    %3388 = vst.msk [vmem:[#allocation4 + $0x8] sm:$0x77] %vm3387, %v3383
    %v3389 = vunpack.c.h.b16 %v3345
    %v3390 = vunpack.c.h.b16 %v3346
    %v3391 = vpack.c.b16 %v3390, %v3389
    %v3392 = vrot.slane %v3359, 5
    %v3393 = vrot.slane %v3362, 6
    %v3394 = vor.u32 %v3392, %v3393
    %v3395 = vrot.slane %v3394, 4
    %v3397 = vshll.u32 %v3391, 16
    %v3399 = vrot.slane %v3397, 6
    %v3400 = vsel %vm490, %v3395, %v3399
    %3401 = vrot.lane.b32.xlu0 %v3400, 48
    %v3402 = vpop.permute.xlu0 %3401
    %v3403 = vrot.slane %v3402, 4
    %vm3404 = vcmask 392192
    %v3405 = vsel %vm3404, %v3403, %v3402
    %vm3407 = vcmask 1042816
    %vm3408 = vcmask 522244
    %vm3409 = vmor %vm3408, %vm3407
    %3410 = vst.msk [vmem:[#allocation4 + $0xc] sm:$0x77] %vm3409, %v3405
    %v3411 = vrot.slane %v3353, 6
    %v3412 = vrot.slane %v3411, 4
    %v3413 = vrot.slane %v3391, 6
    %v3414 = vsel %vm566, %v3412, %v3413
    %3415 = vrot.lane.b32.xlu0 %v3414, 64
    %v3416 = vpop.permute.xlu0 %3415
    %v3417 = vrot.slane %v3416, 4
    %vm3418 = vcmask 523264
    %v3419 = vsel %vm3418, %v3417, %v3416
    %vm3421 = vcmask 1042944
    %vm3422 = vcmask 653316
    %vm3423 = vmor %vm3422, %vm3421
    %3424 = vst.msk [vmem:[#allocation4 + $0x10] sm:$0x77] %vm3423, %v3419
    %v3425 = vld [vmem:[#allocation4] sm:$0x77]
    %v3426 = vld [vmem:[#allocation4 + $0x8] sm:$0x77]
    %v3427 = vld [vmem:[#allocation4 + $0x10] sm:$0x77]
    %v3428 = vld [vmem:[%s3] sm:$0xf]
    %v3429 = vld [vmem:[%s3 + $0x4] sm:$0xf]
    %v3430 = vld [vmem:[%s3 + $0x8] sm:$0xf]
    %v3431 = vld [vmem:[%s3 + $0xc] sm:$0xf]
    %v3432 = vld [vmem:[%s3 + $0x10] sm:$0xf]
    %v3433 = vld [vmem:[%s3 + $0x14] sm:$0xf]
    %v3434 = vld [vmem:[%s3 + $0x18] sm:$0xf]
    %v3435 = vld [vmem:[%s3 + $0x1c] sm:$0xf]
    %v3436 = vld [vmem:[%s3 + $0x20] sm:$0xf]
    %v3437 = vld [vmem:[%s3 + $0x24] sm:$0xf]
    %v3438 = vld [vmem:[%s3 + $0x28] sm:$0xf]
    %v3439 = vld [vmem:[%s3 + $0x2c] sm:$0xf]
    %v3440 = vld [vmem:[%s3 + $0x30] sm:$0xf]
    %v3441 = vld [vmem:[%s3 + $0x34] sm:$0xf]
    %v3442 = vld [vmem:[%s3 + $0x38] sm:$0xf]
    %v3443 = vld [vmem:[%s3 + $0x3c] sm:$0xf]
    %v3444 = vld [vmem:[%s3 + $0x40] sm:$0xf]
    %v3445 = vld [vmem:[%s3 + $0x44] sm:$0xf]
    %v3446 = vld [vmem:[%s3 + $0x48] sm:$0xf]
    %v3447 = vld [vmem:[%s3 + $0x4c] sm:$0xf]
    %v3448 = vld [vmem:[%s3 + $0x50] sm:$0xf]
    %v3449 = vld [vmem:[%s3 + $0x54] sm:$0xf]
    %v3450 = vld [vmem:[%s3 + $0x58] sm:$0xf]
    %v3451 = vld [vmem:[%s3 + $0x5c] sm:$0xf]
    %v3452 = vld [vmem:[%s3 + $0x60] sm:$0xf]
    %v3453 = vld [vmem:[%s3 + $0x64] sm:$0xf]
    %v3454 = vld [vmem:[%s3 + $0x68] sm:$0xf]
    %v3455 = vld [vmem:[%s3 + $0x6c] sm:$0xf]
    %v3456 = vld [vmem:[%s3 + $0x70] sm:$0xf]
    %v3457 = vld [vmem:[%s3 + $0x74] sm:$0xf]
    %v3458 = vld [vmem:[%s3 + $0x78] sm:$0xf]
    %v3459 = vld [vmem:[%s3 + $0x7c] sm:$0xf]
    %v3460 = vld [vmem:[%s3 + $0x80] sm:$0xf]
    %v3461 = vld [vmem:[%s3 + $0x84] sm:$0xf]
    %v3462 = vld [vmem:[%s3 + $0x88] sm:$0xf]
    %v3463 = vld [vmem:[%s3 + $0x8c] sm:$0xf]
    %v3464 = vld [vmem:[%s3 + $0x90] sm:$0xf]
    %v3465 = vld [vmem:[%s3 + $0x94] sm:$0xf]
    %v3466 = vld [vmem:[%s3 + $0x98] sm:$0xf]
    %v3467 = vld [vmem:[%s3 + $0x9c] sm:$0xf]
    %v3468 = vld [vmem:[%s3 + $0xa0] sm:$0xf]
    %v3469 = vld [vmem:[%s3 + $0xa4] sm:$0xf]
    %v3470 = vld [vmem:[%s3 + $0xa8] sm:$0xf]
    %v3471 = vld [vmem:[%s3 + $0xac] sm:$0xf]
    %v3472 = vld [vmem:[%s3 + $0xb0] sm:$0xf]
    %v3473 = vld [vmem:[%s3 + $0xb4] sm:$0xf]
    %v3474 = vld [vmem:[%s3 + $0xb8] sm:$0xf]
    %v3475 = vld [vmem:[%s3 + $0xbc] sm:$0xf]
    %v3476 = vld [vmem:[%s3 + $0xc0] sm:$0xf]
    %v3477 = vld [vmem:[%s3 + $0xc4] sm:$0xf]
    %v3478 = vld [vmem:[%s3 + $0xc8] sm:$0xf]
    %v3479 = vld [vmem:[%s3 + $0xcc] sm:$0xf]
    %v3480 = vld [vmem:[%s3 + $0xd0] sm:$0xf]
    %v3481 = vld [vmem:[%s3 + $0xd4] sm:$0xf]
    %v3482 = vld [vmem:[%s3 + $0xd8] sm:$0xf]
    %v3483 = vld [vmem:[%s3 + $0xdc] sm:$0xf]
    %v3484 = vld [vmem:[%s3 + $0xe0] sm:$0xf]
    %v3485 = vld [vmem:[%s3 + $0xe4] sm:$0xf]
    %v3486 = vld [vmem:[%s3 + $0xe8] sm:$0xf]
    %v3487 = vld [vmem:[%s3 + $0xec] sm:$0xf]
    %v3488 = vld [vmem:[%s3 + $0xf0] sm:$0xf]
    %v3489 = vld [vmem:[%s3 + $0xf4] sm:$0xf]
    %v3490 = vld [vmem:[%s3 + $0xf8] sm:$0xf]
    %v3491 = vld [vmem:[%s3 + $0xfc] sm:$0xf]
    %v3492 = vld [vmem:[%s3 + $0x100] sm:$0xf]
    %v3493 = vld [vmem:[%s3 + $0x104] sm:$0xf]
    %v3494 = vld [vmem:[%s3 + $0x108] sm:$0xf]
    %v3495 = vld [vmem:[%s3 + $0x10c] sm:$0xf]
    %v3496 = vld [vmem:[%s3 + $0x110] sm:$0xf]
    %v3497 = vld [vmem:[%s3 + $0x114] sm:$0xf]
    %v3498 = vld [vmem:[%s3 + $0x118] sm:$0xf]
    %v3499 = vld [vmem:[%s3 + $0x11c] sm:$0xf]
    %v3500 = vld [vmem:[%s3 + $0x120] sm:$0xf]
    %v3501 = vld [vmem:[%s3 + $0x124] sm:$0xf]
    %v3502 = vld [vmem:[%s3 + $0x128] sm:$0xf]
    %v3503 = vld [vmem:[%s3 + $0x12c] sm:$0xf]
    %v3504 = vld [vmem:[%s3 + $0x130] sm:$0xf]
    %v3505 = vld [vmem:[%s3 + $0x134] sm:$0xf]
    %v3506 = vld [vmem:[%s3 + $0x138] sm:$0xf]
    %v3507 = vld [vmem:[%s3 + $0x13c] sm:$0xf]
    %v3508 = vld [vmem:[%s3 + $0x140] sm:$0xf]
    %v3509 = vld [vmem:[%s3 + $0x144] sm:$0xf]
    %v3510 = vld [vmem:[%s3 + $0x148] sm:$0xf]
    %v3511 = vld [vmem:[%s3 + $0x14c] sm:$0xf]
    %v3512 = vld [vmem:[%s3 + $0x150] sm:$0xf]
    %v3513 = vld [vmem:[%s3 + $0x154] sm:$0xf]
    %v3514 = vld [vmem:[%s3 + $0x158] sm:$0xf]
    %v3515 = vld [vmem:[%s3 + $0x15c] sm:$0xf]
    %v3516 = vld [vmem:[%s3 + $0x160] sm:$0xf]
    %v3517 = vld [vmem:[%s3 + $0x164] sm:$0xf]
    %v3521 = vunpack.c.l.b16 %v3425
    %v3522 = vunpack.c.h.b16 %v3425
    %v3523 = vunpack.c.l.b16 %v3426
    %v3524 = vunpack.c.h.b16 %v3426
    %v3525 = vunpack.c.l.b16 %v3427
    %v3526 = vunpack.c.h.b16 %v3427
    %v3527 = vpack.c.b16 %v3521, %v3521
    %v3528 = vpack.c.b16 %v3522, %v3522
    %v3529 = vpack.c.b16 %v3523, %v3523
    %v3530 = vpack.c.b16 %v3524, %v3524
    %v3531 = vpack.c.b16 %v3525, %v3525
    %v3532 = vpack.c.b16 %v3526, %v3526
    %v3628 = vunpack.c.l.b16 %v3428
    %v3629 = vunpack.c.l.b16 %v3429
    %v3630 = vunpack.c.l.b16 %v3430
    %v3631 = vunpack.c.l.b16 %v3431
    %v3632 = vunpack.c.l.b16 %v3432
    %v3633 = vunpack.c.l.b16 %v3433
    %v3634 = vunpack.c.l.b16 %v3434
    %v3635 = vunpack.c.l.b16 %v3435
    %v3636 = vunpack.c.l.b16 %v3436
    %v3637 = vunpack.c.l.b16 %v3437
    %v3638 = vunpack.c.l.b16 %v3438
    %v3639 = vunpack.c.l.b16 %v3439
    %v3640 = vunpack.c.l.b16 %v3440
    %v3641 = vunpack.c.l.b16 %v3441
    %v3642 = vunpack.c.l.b16 %v3442
    %v3643 = vunpack.c.l.b16 %v3443
    %v3644 = vunpack.c.l.b16 %v3444
    %v3645 = vunpack.c.l.b16 %v3445
    %v3646 = vunpack.c.l.b16 %v3446
    %v3647 = vunpack.c.l.b16 %v3447
    %v3648 = vunpack.c.l.b16 %v3448
    %v3649 = vunpack.c.l.b16 %v3449
    %v3650 = vunpack.c.l.b16 %v3450
    %v3651 = vunpack.c.l.b16 %v3451
    %v3652 = vunpack.c.l.b16 %v3452
    %v3653 = vunpack.c.l.b16 %v3453
    %v3654 = vunpack.c.l.b16 %v3454
    %v3655 = vunpack.c.l.b16 %v3455
    %v3656 = vunpack.c.l.b16 %v3456
    %v3657 = vunpack.c.l.b16 %v3457
    %v3658 = vunpack.c.l.b16 %v3458
    %v3659 = vunpack.c.l.b16 %v3459
    %v3660 = vunpack.c.l.b16 %v3460
    %v3661 = vunpack.c.l.b16 %v3461
    %v3662 = vunpack.c.l.b16 %v3462
    %v3663 = vunpack.c.l.b16 %v3463
    %v3664 = vunpack.c.l.b16 %v3464
    %v3665 = vunpack.c.l.b16 %v3465
    %v3666 = vunpack.c.l.b16 %v3466
    %v3667 = vunpack.c.l.b16 %v3467
    %v3668 = vunpack.c.l.b16 %v3468
    %v3669 = vunpack.c.l.b16 %v3469
    %v3670 = vunpack.c.l.b16 %v3470
    %v3671 = vunpack.c.l.b16 %v3471
    %v3672 = vunpack.c.l.b16 %v3472
    %v3673 = vunpack.c.l.b16 %v3473
    %v3674 = vunpack.c.l.b16 %v3474
    %v3675 = vunpack.c.l.b16 %v3475
    %v3676 = vunpack.c.l.b16 %v3476
    %v3677 = vunpack.c.l.b16 %v3477
    %v3678 = vunpack.c.l.b16 %v3478
    %v3679 = vunpack.c.l.b16 %v3479
    %v3680 = vunpack.c.l.b16 %v3480
    %v3681 = vunpack.c.l.b16 %v3481
    %v3682 = vunpack.c.l.b16 %v3482
    %v3683 = vunpack.c.l.b16 %v3483
    %v3684 = vunpack.c.l.b16 %v3484
    %v3685 = vunpack.c.l.b16 %v3485
    %v3686 = vunpack.c.l.b16 %v3486
    %v3687 = vunpack.c.l.b16 %v3487
    %v3688 = vunpack.c.l.b16 %v3488
    %v3689 = vunpack.c.l.b16 %v3489
    %v3690 = vunpack.c.l.b16 %v3490
    %v3691 = vunpack.c.l.b16 %v3491
    %v3692 = vunpack.c.l.b16 %v3492
    %v3693 = vunpack.c.l.b16 %v3493
    %v3694 = vunpack.c.l.b16 %v3494
    %v3695 = vunpack.c.l.b16 %v3495
    %v3696 = vunpack.c.l.b16 %v3496
    %v3697 = vunpack.c.l.b16 %v3497
    %v3698 = vunpack.c.l.b16 %v3498
    %v3699 = vunpack.c.l.b16 %v3499
    %v3700 = vunpack.c.l.b16 %v3500
    %v3701 = vunpack.c.l.b16 %v3501
    %v3702 = vunpack.c.l.b16 %v3502
    %v3703 = vunpack.c.l.b16 %v3503
    %v3704 = vunpack.c.l.b16 %v3504
    %v3705 = vunpack.c.l.b16 %v3505
    %v3706 = vunpack.c.l.b16 %v3506
    %v3707 = vunpack.c.l.b16 %v3507
    %v3708 = vunpack.c.l.b16 %v3508
    %v3709 = vunpack.c.l.b16 %v3509
    %v3710 = vunpack.c.l.b16 %v3510
    %v3711 = vunpack.c.l.b16 %v3511
    %v3712 = vunpack.c.l.b16 %v3512
    %v3713 = vunpack.c.l.b16 %v3513
    %v3714 = vunpack.c.l.b16 %v3514
    %v3715 = vunpack.c.l.b16 %v3515
    %v3716 = vunpack.c.l.b16 %v3516
    %v3717 = vunpack.c.l.b16 %v3517
    %v3718 = vpack.c.b16 %v3629, %v3628
    %v3719 = vpack.c.b16 %v3631, %v3630
    %v3720 = vpack.c.b16 %v3633, %v3632
    %v3721 = vpack.c.b16 %v3635, %v3634
    %v3722 = vpack.c.b16 %v3637, %v3636
    %v3723 = vpack.c.b16 %v3639, %v3638
    %v3724 = vpack.c.b16 %v3641, %v3640
    %v3725 = vpack.c.b16 %v3643, %v3642
    %v3726 = vpack.c.b16 %v3645, %v3644
    %v3727 = vpack.c.b16 %v3647, %v3646
    %v3728 = vpack.c.b16 %v3649, %v3648
    %v3729 = vpack.c.b16 %v3651, %v3650
    %v3730 = vpack.c.b16 %v3653, %v3652
    %v3731 = vpack.c.b16 %v3655, %v3654
    %v3732 = vpack.c.b16 %v3657, %v3656
    %v3733 = vpack.c.b16 %v3659, %v3658
    %v3734 = vpack.c.b16 %v3661, %v3660
    %v3735 = vpack.c.b16 %v3663, %v3662
    %v3736 = vpack.c.b16 %v3665, %v3664
    %v3737 = vpack.c.b16 %v3667, %v3666
    %v3738 = vpack.c.b16 %v3669, %v3668
    %v3739 = vpack.c.b16 %v3671, %v3670
    %v3740 = vpack.c.b16 %v3673, %v3672
    %v3741 = vpack.c.b16 %v3675, %v3674
    %v3742 = vpack.c.b16 %v3677, %v3676
    %v3743 = vpack.c.b16 %v3679, %v3678
    %v3744 = vpack.c.b16 %v3681, %v3680
    %v3745 = vpack.c.b16 %v3683, %v3682
    %v3746 = vpack.c.b16 %v3685, %v3684
    %v3747 = vpack.c.b16 %v3687, %v3686
    %v3748 = vpack.c.b16 %v3689, %v3688
    %v3749 = vpack.c.b16 %v3691, %v3690
    %v3750 = vpack.c.b16 %v3693, %v3692
    %v3751 = vpack.c.b16 %v3695, %v3694
    %v3752 = vpack.c.b16 %v3697, %v3696
    %v3753 = vpack.c.b16 %v3699, %v3698
    %v3754 = vpack.c.b16 %v3701, %v3700
    %v3755 = vpack.c.b16 %v3703, %v3702
    %v3756 = vpack.c.b16 %v3705, %v3704
    %v3757 = vpack.c.b16 %v3707, %v3706
    %v3758 = vpack.c.b16 %v3709, %v3708
    %v3759 = vpack.c.b16 %v3711, %v3710
    %v3760 = vpack.c.b16 %v3713, %v3712
    %v3761 = vpack.c.b16 %v3715, %v3714
    %v3762 = vpack.c.b16 %v3717, %v3716
    %vm3808 = vcmask 654336
    %v3810 = vsel %vm3808, %v3532, 0
    %3812 = vmatprep.subr.bf16.mxu0 0
    %3813 = vmatpush1.bf16.msra.mxu0 %v3725
    %3814 = vmatprep.subr.bf16.mxu0 0
    %3815 = vmatpush1.bf16.msra.mxu0 %v3724
    %3816 = vmatprep.subr.bf16.mxu0 0
    %3817 = vmatpush1.bf16.msra.mxu0 %v3723
    %3818 = vmatprep.subr.bf16.mxu0 0
    %3819 = vmatpush1.bf16.msra.mxu0 %v3722
    %3820 = vmatprep.subr.bf16.mxu0 0
    %3821 = vmatpush1.bf16.msra.mxu0 %v3721
    %3822 = vmatprep.subr.bf16.mxu0 0
    %3823 = vmatpush1.bf16.msra.mxu0 %v3720
    %3824 = vmatprep.subr.bf16.mxu0 0
    %3825 = vmatpush1.bf16.msra.mxu0 %v3719
    %3826 = vmatprep.subr.bf16.mxu0 0
    %3827 = vmatpush1.bf16.msra.mxu0 %v3718
    %3828 = vmatprep.subr.bf16.mxu0 0
    %3829 = vmatpush2.bf16.msra.mxu0 %v3733
    %3830 = vmatprep.subr.bf16.mxu0 0
    %3831 = vmatpush2.bf16.msra.mxu0 %v3732
    %3832 = vmatprep.subr.bf16.mxu0 0
    %3833 = vmatpush2.bf16.msra.mxu0 %v3731
    %3834 = vmatprep.subr.bf16.mxu0 0
    %3835 = vmatpush2.bf16.msra.mxu0 %v3730
    %3836 = vmatprep.subr.bf16.mxu0 0
    %3837 = vmatpush2.bf16.msra.mxu0 %v3729
    %3838 = vmatprep.subr.bf16.mxu0 0
    %3839 = vmatpush2.bf16.msra.mxu0 %v3728
    %3840 = vmatprep.subr.bf16.mxu0 0
    %3841 = vmatpush2.bf16.msra.mxu0 %v3727
    %3842 = vmatprep.subr.bf16.mxu0 0
    %3843 = vmatpush2.bf16.msra.mxu0 %v3726
    %3844 = vmatprep.mubr.bf16.mxu0 %v3528
    %3845 = vmatmul.mubr.bf16.gmra.mxu0 %v3527
    %v3846 = vpop.f32.mrf.mxu0
    %v3847 = vadd.f32 0.0, %v3846
    %v3848 = vpop.f32.mrf.mxu0
    %v3849 = vpop.f32.mrf.mxu0
    %v3850 = vpop.f32.mrf.mxu0
    %3851 = vdwg.mxu0
    %3852 = vmatprep.subr.bf16.mxu0 0
    %3853 = vmatpush1.bf16.msra.mxu0 %v3741
    %3854 = vmatprep.subr.bf16.mxu0 0
    %3855 = vmatpush1.bf16.msra.mxu0 %v3740
    %3856 = vmatprep.subr.bf16.mxu0 0
    %3857 = vmatpush1.bf16.msra.mxu0 %v3739
    %3858 = vmatprep.subr.bf16.mxu0 0
    %3859 = vmatpush1.bf16.msra.mxu0 %v3738
    %3860 = vmatprep.subr.bf16.mxu0 0
    %3861 = vmatpush1.bf16.msra.mxu0 %v3737
    %3862 = vmatprep.subr.bf16.mxu0 0
    %3863 = vmatpush1.bf16.msra.mxu0 %v3736
    %3864 = vmatprep.subr.bf16.mxu0 0
    %3865 = vmatpush1.bf16.msra.mxu0 %v3735
    %3866 = vmatprep.subr.bf16.mxu0 0
    %3867 = vmatpush1.bf16.msra.mxu0 %v3734
    %3868 = vmatprep.subr.bf16.mxu0 0
    %3869 = vmatpush2.bf16.msra.mxu0 %v3749
    %3870 = vmatprep.subr.bf16.mxu0 0
    %3871 = vmatpush2.bf16.msra.mxu0 %v3748
    %3872 = vmatprep.subr.bf16.mxu0 0
    %3873 = vmatpush2.bf16.msra.mxu0 %v3747
    %3874 = vmatprep.subr.bf16.mxu0 0
    %3875 = vmatpush2.bf16.msra.mxu0 %v3746
    %3876 = vmatprep.subr.bf16.mxu0 0
    %3877 = vmatpush2.bf16.msra.mxu0 %v3745
    %3878 = vmatprep.subr.bf16.mxu0 0
    %3879 = vmatpush2.bf16.msra.mxu0 %v3744
    %3880 = vmatprep.subr.bf16.mxu0 0
    %3881 = vmatpush2.bf16.msra.mxu0 %v3743
    %3882 = vmatprep.subr.bf16.mxu0 0
    %3883 = vmatpush2.bf16.msra.mxu0 %v3742
    %3884 = vmatprep.mubr.bf16.mxu0 %v3530
    %3885 = vmatmul.mubr.bf16.gmra.mxu0 %v3529
    %v3886 = vpop.f32.mrf.mxu0
    %v3887 = vadd.f32 %v3847, %v3886
    %v3888 = vpop.f32.mrf.mxu0
    %v3889 = vpop.f32.mrf.mxu0
    %v3890 = vpop.f32.mrf.mxu0
    %3891 = vdwg.mxu0
    %3892 = vmatprep.subr.bf16.mxu0 0
    %3893 = vmatpush1.bf16.msra.mxu0 %v3757
    %3894 = vmatprep.subr.bf16.mxu0 0
    %3895 = vmatpush1.bf16.msra.mxu0 %v3756
    %3896 = vmatprep.subr.bf16.mxu0 0
    %3897 = vmatpush1.bf16.msra.mxu0 %v3755
    %3898 = vmatprep.subr.bf16.mxu0 0
    %3899 = vmatpush1.bf16.msra.mxu0 %v3754
    %3900 = vmatprep.subr.bf16.mxu0 0
    %3901 = vmatpush1.bf16.msra.mxu0 %v3753
    %3902 = vmatprep.subr.bf16.mxu0 0
    %3903 = vmatpush1.bf16.msra.mxu0 %v3752
    %3904 = vmatprep.subr.bf16.mxu0 0
    %3905 = vmatpush1.bf16.msra.mxu0 %v3751
    %3906 = vmatprep.subr.bf16.mxu0 0
    %3907 = vmatpush1.bf16.msra.mxu0 %v3750
    %3908 = vmatprep.subr.bf16.mxu0 0
    %3909 = vmatpush2.bf16.msra.mxu0 0
    %3910 = vmatprep.subr.bf16.mxu0 0
    %3911 = vmatpush2.bf16.msra.mxu0 0
    %3912 = vmatprep.subr.bf16.mxu0 0
    %3913 = vmatpush2.bf16.msra.mxu0 0
    %3914 = vmatprep.subr.bf16.mxu0 0
    %3915 = vmatpush2.bf16.msra.mxu0 %v3762
    %3916 = vmatprep.subr.bf16.mxu0 0
    %3917 = vmatpush2.bf16.msra.mxu0 %v3761
    %3918 = vmatprep.subr.bf16.mxu0 0
    %3919 = vmatpush2.bf16.msra.mxu0 %v3760
    %3920 = vmatprep.subr.bf16.mxu0 0
    %3921 = vmatpush2.bf16.msra.mxu0 %v3759
    %3922 = vmatprep.subr.bf16.mxu0 0
    %3923 = vmatpush2.bf16.msra.mxu0 %v3758
    %3924 = vmatprep.mubr.bf16.mxu0 %v3810
    %3925 = vmatmul.mubr.bf16.gmra.mxu0 %v3531
    %v3926 = vpop.f32.mrf.mxu0
    %v3927 = vadd.f32 %v3887, %v3926
    %v3928 = vpop.f32.mrf.mxu0
    %v3929 = vpop.f32.mrf.mxu0
    %v3930 = vpop.f32.mrf.mxu0
    %3931 = vdwg.mxu0
    %v3932 = vmul.f32 %v3927, %v3348
    %vm3933 = vcmask 979968
    %v3934 = vsel %vm3933, %v3932, 0.0
    %v3935 = vrot.slane %v3934, 4
    %v3936 = vadd.f32 %v3934, %v3935
    %v3937 = vrot.slane %v3936, 2
    %v3938 = vadd.f32 %v3936, %v3937
    %v3939 = vrot.slane %v3938, 1
    %v3940 = vadd.f32 %v3938, %v3939
    %v3941 = vmul.f32 %v3932, %v3927
    %v3942 = vsel %vm3933, %v3941, 0.0
    %v3943 = vrot.slane %v3942, 4
    %v3944 = vadd.f32 %v3942, %v3943
    %v3945 = vrot.slane %v3944, 2
    %v3946 = vadd.f32 %v3944, %v3945
    %v3947 = vrot.slane %v3946, 1
    %v3948 = vadd.f32 %v3946, %v3947
    %v3949 = vmul.f32 %v3940, 0.5
    %v3950 = vmul.f32 %v3948, 0.5
    %v3951 = vmul.f32 %v3949, %v3949
    %v3952 = vsub.f32 %v3950, %v3951
    %v3953 = vmax.f32 %v3952, 0.0
    %v3954 = vadd.f32 %v3953, 1e-05
    %v3955 = vrsqrt.pop %v3954
    %v3956 = vmul.f32 %v28, %v3955
    %v3957 = vmul.f32 %v3949, %v3956
    %v3959 = vrot.slane %v3957, 7
    %v3961 = vsub.f32 %v28, %v3959
    %v3962 = vlaneseq
    %v3963 = vshrl.u32 %v3962, 7
    %v3964 = vsub.s32 4, %v3963
    %v3965 = vrot.slane %v3956, %v3964
    %v3966 = vmul.f32 %v3927, %v3965
    %v3967 = vlaneseq
    %v3968 = vshrl.u32 %v3967, 7
    %v3969 = vsub.s32 5, %v3968
    %v3970 = vrot.slane %v3961, %v3969
    %v3971 = vadd.f32 %v3966, %v3970
    %v3972 = vmax.f32 %v3971, 0.0
    %v3973 = vmul.u32 %v38, 5
    %vm3974 = vcmp.eq.s32.totalorder %v124, %v3973
    %v3975 = vsel %vm3974, 1.0, 0.0
    %v3976 = vpack.c.bf16 %v3975, %v3975
    %v3977 = vpack.c.bf16 %v3972, %v3972
    %v3979 = vsel %vm1120, %v3976, 0
    %v3982 = vsel %vm3270, %v3977, 0
    %3984 = vmatprep.subr.bf16.mxu0 0
    %3985 = vmatpush1.bf16.msra.mxu0 0
    %3986 = vmatprep.subr.bf16.mxu0 0
    %3987 = vmatpush1.bf16.msra.mxu0 0
    %3988 = vmatprep.subr.bf16.mxu0 0
    %3989 = vmatpush1.bf16.msra.mxu0 0
    %3990 = vmatprep.subr.bf16.mxu0 0
    %3991 = vmatpush1.bf16.msra.mxu0 0
    %3992 = vmatprep.subr.bf16.mxu0 0
    %3993 = vmatpush1.bf16.msra.mxu0 0
    %3994 = vmatprep.subr.bf16.mxu0 0
    %3995 = vmatpush1.bf16.msra.mxu0 0
    %3996 = vmatprep.subr.bf16.mxu0 0
    %3997 = vmatpush1.bf16.msra.mxu0 0
    %3998 = vmatprep.subr.bf16.mxu0 0
    %3999 = vmatpush1.bf16.msra.mxu0 %v3982
    %4000 = vmatprep.subr.bf16.mxu0 0
    %4001 = vmatpush2.bf16.msra.mxu0 0
    %4002 = vmatprep.subr.bf16.mxu0 0
    %4003 = vmatpush2.bf16.msra.mxu0 0
    %4004 = vmatprep.subr.bf16.mxu0 0
    %4005 = vmatpush2.bf16.msra.mxu0 0
    %4006 = vmatprep.subr.bf16.mxu0 0
    %4007 = vmatpush2.bf16.msra.mxu0 0
    %4008 = vmatprep.subr.bf16.mxu0 0
    %4009 = vmatpush2.bf16.msra.mxu0 0
    %4010 = vmatprep.subr.bf16.mxu0 0
    %4011 = vmatpush2.bf16.msra.mxu0 0
    %4012 = vmatprep.subr.bf16.mxu0 0
    %4013 = vmatpush2.bf16.msra.mxu0 0
    %4014 = vmatprep.subr.bf16.mxu0 0
    %4015 = vmatpush2.bf16.msra.mxu0 0
    %4016 = vmatprep.mubr.bf16.mxu0 0
    %4017 = vmatmul.mubr.bf16.gmra.mxu0 %v3979
    %v4018 = vpop.f32.mrf.mxu0
    %v4019 = vadd.f32 0.0, %v4018
    %v4020 = vpop.f32.mrf.mxu0
    %v4021 = vpop.f32.mrf.mxu0
    %v4022 = vpop.f32.mrf.mxu0
    %4023 = vdwg.mxu0
    %v4024 = vpack.c.bf16 %v4019, %v4019
    %v4025 = vld [vmem:[%s4] sm:$0xf]
    %v4026 = vld [vmem:[%s4 + $0x4] sm:$0xf]
    %v4027 = vld [vmem:[%s4 + $0x8] sm:$0xf]
    %v4028 = vld [vmem:[%s4 + $0xc] sm:$0xf]
    %v4029 = vld [vmem:[%s4 + $0x10] sm:$0xf]
    %v4030 = vld [vmem:[%s4 + $0x14] sm:$0xf]
    %v4031 = vld [vmem:[%s4 + $0x18] sm:$0xf]
    %v4032 = vld [vmem:[%s4 + $0x1c] sm:$0xf]
    %v4033 = vld [vmem:[%s4 + $0x20] sm:$0xf]
    %v4034 = vld [vmem:[%s4 + $0x24] sm:$0xf]
    %v4035 = vld [vmem:[%s4 + $0x28] sm:$0xf]
    %v4036 = vld [vmem:[%s4 + $0x2c] sm:$0xf]
    %v4037 = vld [vmem:[%s4 + $0x30] sm:$0xf]
    %v4038 = vld [vmem:[%s4 + $0x34] sm:$0xf]
    %v4039 = vld [vmem:[%s4 + $0x38] sm:$0xf]
    %v4040 = vlaneseq
    %v4041 = vshrl.u32 %v4040, 7
    %v4042 = vsub.s32 6, %v4041
    %v4043 = vrot.slane %v28, %v4042
    %v4059 = vunpack.c.l.b16 %v4025
    %v4060 = vunpack.c.l.b16 %v4026
    %v4061 = vunpack.c.l.b16 %v4027
    %v4062 = vunpack.c.l.b16 %v4028
    %v4063 = vunpack.c.l.b16 %v4029
    %v4064 = vunpack.c.l.b16 %v4030
    %v4065 = vunpack.c.l.b16 %v4031
    %v4066 = vunpack.c.l.b16 %v4032
    %v4067 = vunpack.c.l.b16 %v4033
    %v4068 = vunpack.c.l.b16 %v4034
    %v4069 = vunpack.c.l.b16 %v4035
    %v4070 = vunpack.c.l.b16 %v4036
    %v4071 = vunpack.c.l.b16 %v4037
    %v4072 = vunpack.c.l.b16 %v4038
    %v4073 = vunpack.c.l.b16 %v4039
    %v4074 = vpack.c.b16 %v4060, %v4059
    %v4075 = vpack.c.b16 %v4062, %v4061
    %v4076 = vpack.c.b16 %v4064, %v4063
    %v4077 = vpack.c.b16 %v4066, %v4065
    %v4078 = vpack.c.b16 %v4068, %v4067
    %v4079 = vpack.c.b16 %v4070, %v4069
    %v4080 = vpack.c.b16 %v4072, %v4071
    %v4081 = vpack.c.b16 %v4073, %v4073
    %vm4089 = vcmask 982016
    %v4091 = vsel %vm4089, %v4024, 0
    %v4094 = vsel %vm878, %v4081, 0
    %4096 = vmatprep.subr.bf16.mxu0 0
    %4097 = vmatpush1.bf16.msra.mxu0 %v4094
    %4098 = vmatprep.subr.bf16.mxu0 0
    %4099 = vmatpush1.bf16.msra.mxu0 %v4080
    %4100 = vmatprep.subr.bf16.mxu0 0
    %4101 = vmatpush1.bf16.msra.mxu0 %v4079
    %4102 = vmatprep.subr.bf16.mxu0 0
    %4103 = vmatpush1.bf16.msra.mxu0 %v4078
    %4104 = vmatprep.subr.bf16.mxu0 0
    %4105 = vmatpush1.bf16.msra.mxu0 %v4077
    %4106 = vmatprep.subr.bf16.mxu0 0
    %4107 = vmatpush1.bf16.msra.mxu0 %v4076
    %4108 = vmatprep.subr.bf16.mxu0 0
    %4109 = vmatpush1.bf16.msra.mxu0 %v4075
    %4110 = vmatprep.subr.bf16.mxu0 0
    %4111 = vmatpush1.bf16.msra.mxu0 %v4074
    %4112 = vmatprep.subr.bf16.mxu0 0
    %4113 = vmatpush2.bf16.msra.mxu0 0
    %4114 = vmatprep.subr.bf16.mxu0 0
    %4115 = vmatpush2.bf16.msra.mxu0 0
    %4116 = vmatprep.subr.bf16.mxu0 0
    %4117 = vmatpush2.bf16.msra.mxu0 0
    %4118 = vmatprep.subr.bf16.mxu0 0
    %4119 = vmatpush2.bf16.msra.mxu0 0
    %4120 = vmatprep.subr.bf16.mxu0 0
    %4121 = vmatpush2.bf16.msra.mxu0 0
    %4122 = vmatprep.subr.bf16.mxu0 0
    %4123 = vmatpush2.bf16.msra.mxu0 0
    %4124 = vmatprep.subr.bf16.mxu0 0
    %4125 = vmatpush2.bf16.msra.mxu0 0
    %4126 = vmatprep.subr.bf16.mxu0 0
    %4127 = vmatpush2.bf16.msra.mxu0 0
    %4128 = vmatprep.mubr.bf16.mxu0 0
    %4129 = vmatmul.mubr.bf16.gmra.mxu0 %v4091
    %v4130 = vpop.f32.mrf.mxu0
    %v4131 = vadd.f32 %v4043, %v4130
    %v4132 = vpop.f32.mrf.mxu0
    %v4133 = vpop.f32.mrf.mxu0
    %v4134 = vpop.f32.mrf.mxu0
    %4135 = vdwg.mxu0
    %v4136 = vmax.f32 %v4131, 0.0
    %v4137 = vpack.c.bf16 %v4136, %v4136
    %v4138 = vld [vmem:[%s5] sm:$0xf]
    %v4139 = vld [vmem:[%s5 + $0x4] sm:$0xf]
    %v4140 = vld [vmem:[%s5 + $0x8] sm:$0xf]
    %v4141 = vld [vmem:[%s5 + $0xc] sm:$0xf]
    %v4142 = vld [vmem:[%s5 + $0x10] sm:$0xf]
    %v4143 = vld [vmem:[%s5 + $0x14] sm:$0xf]
    %v4144 = vld [vmem:[%s5 + $0x18] sm:$0xf]
    %v4145 = vld [vmem:[%s5 + $0x1c] sm:$0xf]
    %v4146 = vld [vmem:[%s5 + $0x20] sm:$0xf]
    %v4147 = vld [vmem:[%s5 + $0x24] sm:$0xf]
    %v4148 = vld [vmem:[%s5 + $0x28] sm:$0x3]
    %v4149 = vlaneseq
    %v4150 = vshrl.u32 %v4149, 7
    %v4151 = vsub.s32 7, %v4150
    %v4152 = vrot.slane %v28, %v4151
    %v4164 = vunpack.c.l.b16 %v4138
    %v4165 = vunpack.c.l.b16 %v4139
    %v4166 = vunpack.c.l.b16 %v4140
    %v4167 = vunpack.c.l.b16 %v4141
    %v4168 = vunpack.c.l.b16 %v4142
    %v4169 = vunpack.c.l.b16 %v4143
    %v4170 = vunpack.c.l.b16 %v4144
    %v4171 = vunpack.c.l.b16 %v4145
    %v4172 = vunpack.c.l.b16 %v4146
    %v4173 = vunpack.c.l.b16 %v4147
    %v4174 = vunpack.c.l.b16 %v4148
    %v4175 = vpack.c.b16 %v4165, %v4164
    %v4176 = vpack.c.b16 %v4167, %v4166
    %v4177 = vpack.c.b16 %v4169, %v4168
    %v4178 = vpack.c.b16 %v4171, %v4170
    %v4179 = vpack.c.b16 %v4173, %v4172
    %v4180 = vpack.c.b16 %v4174, %v4174
    %vm4186 = vcmask 687104
    %v4188 = vsel %vm4186, %v4137, 0
    %vm4190 = vcmask 1041408
    %v4192 = vsel %vm4190, %v4180, 0
    %4194 = vmatprep.subr.bf16.mxu0 0
    %4195 = vmatpush1.bf16.msra.mxu0 0
    %4196 = vmatprep.subr.bf16.mxu0 0
    %4197 = vmatpush1.bf16.msra.mxu0 0
    %4198 = vmatprep.subr.bf16.mxu0 0
    %4199 = vmatpush1.bf16.msra.mxu0 %v4192
    %4200 = vmatprep.subr.bf16.mxu0 0
    %4201 = vmatpush1.bf16.msra.mxu0 %v4179
    %4202 = vmatprep.subr.bf16.mxu0 0
    %4203 = vmatpush1.bf16.msra.mxu0 %v4178
    %4204 = vmatprep.subr.bf16.mxu0 0
    %4205 = vmatpush1.bf16.msra.mxu0 %v4177
    %4206 = vmatprep.subr.bf16.mxu0 0
    %4207 = vmatpush1.bf16.msra.mxu0 %v4176
    %4208 = vmatprep.subr.bf16.mxu0 0
    %4209 = vmatpush1.bf16.msra.mxu0 %v4175
    %4210 = vmatprep.subr.bf16.mxu0 0
    %4211 = vmatpush2.bf16.msra.mxu0 0
    %4212 = vmatprep.subr.bf16.mxu0 0
    %4213 = vmatpush2.bf16.msra.mxu0 0
    %4214 = vmatprep.subr.bf16.mxu0 0
    %4215 = vmatpush2.bf16.msra.mxu0 0
    %4216 = vmatprep.subr.bf16.mxu0 0
    %4217 = vmatpush2.bf16.msra.mxu0 0
    %4218 = vmatprep.subr.bf16.mxu0 0
    %4219 = vmatpush2.bf16.msra.mxu0 0
    %4220 = vmatprep.subr.bf16.mxu0 0
    %4221 = vmatpush2.bf16.msra.mxu0 0
    %4222 = vmatprep.subr.bf16.mxu0 0
    %4223 = vmatpush2.bf16.msra.mxu0 0
    %4224 = vmatprep.subr.bf16.mxu0 0
    %4225 = vmatpush2.bf16.msra.mxu0 0
    %4226 = vmatprep.mubr.bf16.mxu0 0
    %4227 = vmatmul.mubr.bf16.gmra.mxu0 %v4188
    %v4228 = vpop.f32.mrf.mxu0
    %v4229 = vadd.f32 %v4152, %v4228
    %v4230 = vpop.f32.mrf.mxu0
    %v4231 = vpop.f32.mrf.mxu0
    %v4232 = vpop.f32.mrf.mxu0
    %4233 = vdwg.mxu0
    %4234 = vst [vmem:[#allocation5] sm:$0x3] %v4229
    // Predicated region
    $region30: #{batchnorm_net_forward.1} parent=1 // pred_check
      _
    $region31: #{batchnorm_net_forward.1} parent=1 // pred_check_branch
      %4236 = sbr.rel (0) target = $region33
    $region32: #{batchnorm_net_forward.1} parent=1 // pred_region
      %s4238 = ssub.s32 32, 32
      %4239 = vsyncadd [#allocation6], %s4238
      %s4241 = sshll.u32 [#allocation5], 4
      %s4242 = int_to_ptr.vmem [resolvable:$true] %s4241
      %4244 = dma.vmem_to_hbm [thread:$0]  %s4242, 32, %s7, [#allocation6]
    $region33: #{batchnorm_net_forward.1} parent=1 // pred_fallthru
      _
    // Predicated region
    $region34: #{batchnorm_net_forward.1} parent=1 // pred_check
      _
    $region35: #{batchnorm_net_forward.1} parent=1 // pred_check_branch
      %4246 = sbr.rel (0) target = $region37
    $region36: #{batchnorm_net_forward.1} parent=1 // pred_region
      %4247 = dma.done [#allocation6], 32
    $region37: #{batchnorm_net_forward.1} parent=1 // pred_fallthru
      _
    %4248 = vsyncpa [#allocation6], 1

</llo_original>
